<compile_context>
chip_gen: v6e
topology: v6e:2x2x1
jax: 0.10.0
libtpu: 0.0.40
codegen_flags: <defaults>
</compile_context>

<pallas_src>
import jax
import jax.numpy as jnp
from jax import lax
from jax.experimental import pallas as pl
from jax.experimental.pallas import tpu as pltpu

# ---- module-consistent config (small shapes) ------------------------------
VOCAB = 50
VOCAB_PAD = 64             # vocab rounded up: clean tiling, free zero rows
EMB_DIM = 32               # word embedding dim E
SEQ_LEN = 16               # sequence length L
NUM_FILTERS = 8            # args.textcnn_num_filters
FILTER_SIZES = (2, 3, 4)   # args.textcnn_filter_sizes = "2,3,4"
TEXT_OUT = 16              # args.text_output_size
OUT_PAD = 128              # lane-dense output slab width (sliced to TEXT_OUT)
BATCH = 2

NK = len(FILTER_SIZES)
NKF = NUM_FILTERS * NK                   # 24 packed conv output channels
KMAX = max(FILTER_SIZES)                 # 4
LQ = SEQ_LEN - min(FILTER_SIZES) + 1     # 15 conv positions (shortest filter)
L_EXT = LQ + KMAX - 1                    # 18 (time pad so every shifted window exists)
K_FUSED = KMAX * VOCAB_PAD               # 256-deep contraction (fills v6e/v7x MXU)


def _round_up(x, m):
    return -(-x // m) * m


def textcnn_kernel(tok_ref, wfused_ref, bpk_ref, mask_ref, fcw_ref, fcb_ref,
                   out_ref):
    bt = tok_ref.shape[0]
    tok = tok_ref[...]                                        # (Bt, L_EXT) i32

    # Window one-hot over (shift, vocab): exactly KMAX ones per (b, t) row.
    # Shift-i tokens land in lanes [i*VOCAB_PAD, i*VOCAB_PAD + VOCAB) -> regions
    # are disjoint, so OR-ing the per-shift compares gives the packed one-hot.
    kidx = lax.broadcasted_iota(jnp.int32, (bt, LQ, K_FUSED), 2)
    hit = None
    for i in range(KMAX):
        tgt = tok[:, i:i + LQ][:, :, None] + i * VOCAB_PAD    # (Bt, LQ, 1)
        m = kidx == tgt
        hit = m if hit is None else (hit | m)
    onehot = hit.astype(wfused_ref.dtype)                     # bf16 0/1 (exact)

    # Fused embedding-gather + im2col + all-filter conv: one MXU matmul.
    conv = lax.dot_general(                                   # (Bt, LQ, NKF) f32
        onehot, wfused_ref[...],
        dimension_numbers=(((2,), (0,)), ((), ())),
        preferred_element_type=jnp.float32)

    # Precomputed additive time-validity mask, then max over time.
    conv = conv + mask_ref[...][None]
    pooled = jnp.max(conv, axis=1)                            # (Bt, NKF)

    # Bias after max + ReLU (equivalent: bias time-constant, ReLU monotone).
    feat = jnp.maximum(pooled + bpk_ref[...], 0.0)            # (Bt, NKF) f32

    # FC into a lane-dense (Bt, 128) slab (columns >= TEXT_OUT are zero).
    out_ref[...] = (jnp.dot(feat, fcw_ref[...],
                            preferred_element_type=jnp.float32)
                    + fcb_ref[...])


def textcnn_forward(tokens, embedding_table, conv_params, fc_w, fc_b,
                    *, block_b=256):
    B, L = tokens.shape
    assert L == SEQ_LEN
    E, F = EMB_DIM, NUM_FILTERS

    # Batch tile: big enough to amortize per-step overhead, multiple of 8,
    # never larger than the padded batch.  If the whole batch would be one
    # grid step and can be split, use two tiles so v7x's two TensorCores both
    # get work (no cost on single-TC v5e/v6e).
    b_tile = min(block_b, _round_up(B, 8))
    if B <= b_tile and b_tile > 8:
        b_tile = _round_up(-(-B // 2), 8)
    b_pad = _round_up(B, b_tile)

    # Packed conv weight (KMAX*E, NKF): filter j occupies cols j*F:(j+1)*F,
    # rows beyond k_j*E are zero (so shifts i >= k_j contribute nothing).
    wpk = jnp.zeros((KMAX * E, NKF), jnp.float32)
    bpk = jnp.zeros((1, NKF), jnp.float32)
    for j, ((w, b), k) in enumerate(zip(conv_params, FILTER_SIZES)):
        for i in range(k):
            wpk = wpk.at[i * E:(i + 1) * E, j * F:(j + 1) * F].set(
                w[:, i, :].T.astype(jnp.float32))
        bpk = bpk.at[0, j * F:(j + 1) * F].set(b.astype(jnp.float32))

    # Fuse the frozen embedding table into the conv weight:
    #   W_fused[i*VOCAB_PAD + v, c] = table[v, :] @ wpk[i*E:(i+1)*E, c]
    # so conv = window_one_hot @ W_fused replaces gather + im2col + conv.
    table_pad = jnp.zeros((VOCAB_PAD, E), jnp.float32).at[:VOCAB].set(
        embedding_table.astype(jnp.float32))
    w_fused = jnp.concatenate(
        [table_pad @ wpk[i * E:(i + 1) * E] for i in range(KMAX)], axis=0)
    w_fused = w_fused.astype(jnp.bfloat16)       # bf16 MXU operands, f32 acc

    # Additive time-validity mask (0 / -1e30), batch- and grid-invariant.
    t = jnp.arange(LQ)[:, None]                                     # (LQ, 1)
    limit = jnp.repeat(
        jnp.array([SEQ_LEN - k + 1 for k in FILTER_SIZES], jnp.int32),
        NUM_FILTERS)[None, :]                                       # (1, NKF)
    mask = jnp.where(t < limit, 0.0, -1e30).astype(jnp.float32)     # (LQ, NKF)

    # FC weight pre-transposed and lane-padded to 128 output columns.
    fcw = jnp.zeros((NKF, OUT_PAD), jnp.float32).at[:, :TEXT_OUT].set(
        fc_w.T.astype(jnp.float32))
    fcb = jnp.zeros((1, OUT_PAD), jnp.float32).at[0, :TEXT_OUT].set(
        fc_b.astype(jnp.float32))

    # Tokens: batch-pad (rows sliced off) and time-pad (pad tokens only ever
    # meet zero W_fused rows or -1e30-masked time positions).
    tok = jnp.zeros((b_pad, L_EXT), jnp.int32).at[:B, :SEQ_LEN].set(
        tokens.astype(jnp.int32))

    flops = 2 * b_pad * (LQ * K_FUSED * NKF + NKF * OUT_PAD)
    bytes_accessed = (4 * tok.size + 2 * w_fused.size
                      + 4 * (bpk.size + mask.size + fcw.size + fcb.size)
                      + 4 * b_pad * OUT_PAD)

    out = pl.pallas_call(
        textcnn_kernel,
        out_shape=jax.ShapeDtypeStruct((b_pad, OUT_PAD), jnp.float32),
        grid=(b_pad // b_tile,),
        in_specs=[
            pl.BlockSpec((b_tile, L_EXT), lambda i: (i, 0)),      # tokens
            pl.BlockSpec((K_FUSED, NKF), lambda i: (0, 0)),       # fused W (bf16)
            pl.BlockSpec((1, NKF), lambda i: (0, 0)),             # packed bias
            pl.BlockSpec((LQ, NKF), lambda i: (0, 0)),            # time mask
            pl.BlockSpec((NKF, OUT_PAD), lambda i: (0, 0)),       # fc_w.T (padded)
            pl.BlockSpec((1, OUT_PAD), lambda i: (0, 0)),         # fc_b (padded)
        ],
        out_specs=pl.BlockSpec((b_tile, OUT_PAD), lambda i: (i, 0)),
        compiler_params=pltpu.CompilerParams(
            dimension_semantics=("parallel",),
            # Above the 16/32 MiB scoped defaults so large batch tiles fit,
            # below v7x's 64 MiB physical VMEM (double-buffer headroom).
            vmem_limit_bytes=48 * 1024 * 1024),
        cost_estimate=pl.CostEstimate(flops=flops, transcendentals=0,
                                      bytes_accessed=bytes_accessed),
    )(tok, w_fused, bpk, mask, fcw, fcb)
    return out[:B, :TEXT_OUT]


def reference(tokens, embedding_table, conv_params, fc_w, fc_b):
    """Pure-JAX reference matching the PyTorch forward (eval mode)."""
    emb = jnp.take(embedding_table, tokens, axis=0).astype(jnp.float32)
    feats = []
    for (w, b), k in zip(conv_params, FILTER_SIZES):
        Lk = SEQ_LEN - k + 1
        rows = []
        for t in range(Lk):
            window = emb[:, t:t + k, :].reshape(tokens.shape[0], -1)   # (B, k*E)
            rows.append(window @ w.reshape(NUM_FILTERS, -1).T + b)     # (B, F)
        conv = jnp.maximum(jnp.stack(rows, axis=1), 0.0)               # (B, Lk, F)
        feats.append(conv.max(axis=1))                                 # (B, F)
    feat = jnp.concatenate(feats, axis=1)                              # (B, F*nk)
    return feat @ fc_w.T + fc_b


if __name__ == "__main__":
    key = jax.random.PRNGKey(0)
    keys = jax.random.split(key, 5 + 2 * len(FILTER_SIZES))

    # "Pretrained" (synthetic, deterministic) word embeddings.
    embedding_table = jax.random.normal(keys[0], (VOCAB, EMB_DIM), jnp.float32) * 0.1

    # Conv params: weight (F, k, E), bias (F,)   (in_channels=1 squeezed out).
    conv_params = []
    for i, k in enumerate(FILTER_SIZES):
        w = jax.random.normal(keys[1 + 2 * i], (NUM_FILTERS, k, EMB_DIM),
                              jnp.float32) * 0.1
        b = jax.random.normal(keys[2 + 2 * i], (NUM_FILTERS,), jnp.float32) * 0.1
        conv_params.append((w, b))

    # FC: (OUT, F*nk) weight, (OUT,) bias  -- PyTorch nn.Linear convention.
    fc_in = NUM_FILTERS * len(FILTER_SIZES)
    fc_w = jax.random.normal(keys[-3], (TEXT_OUT, fc_in), jnp.float32) * 0.1
    fc_b = jax.random.normal(keys[-2], (TEXT_OUT,), jnp.float32) * 0.1

    tokens = jax.random.randint(keys[-1], (BATCH, SEQ_LEN), 0, VOCAB)

    out = textcnn_forward(tokens, embedding_table, conv_params, fc_w, fc_b)
    out = jax.block_until_ready(out)

    ref = reference(tokens, embedding_table, conv_params, fc_w, fc_b)
    assert out.shape == (BATCH, TEXT_OUT), out.shape
    assert jnp.allclose(out, ref, atol=1e-3, rtol=1e-3), (out, ref)

    print("KERNEL_OK")
</pallas_src>

<mosaic_0001>
module attributes {stable_mosaic.version = 11 : i64} {
  func.func @textcnn_kernel(%arg0: i32, %arg1: memref<8x18xi32, #tpu.memory_space<vmem>>, %arg2: memref<256x24xbf16, #tpu.memory_space<vmem>>, %arg3: memref<1x24xf32, #tpu.memory_space<vmem>>, %arg4: memref<15x24xf32, #tpu.memory_space<vmem>>, %arg5: memref<24x128xf32, #tpu.memory_space<vmem>>, %arg6: memref<1x128xf32, #tpu.memory_space<vmem>>, %arg7: memref<8x128xf32, #tpu.memory_space<vmem>>) attributes {dimension_semantics = [#tpu.dimension_semantics<parallel>], iteration_bounds = array<i64: 1>, scalar_prefetch = 0 : i64, scratch_operands = 0 : i64, tpu.core_type = #tpu.core_type<tc>, window_params = [{transform_indices = @transform_0, window_bounds = array<i64: 8, 18>}, {pipeline_mode = #tpu.pipeline_mode<synchronous>, transform_indices = @transform_1, window_bounds = array<i64: 256, 24>}, {pipeline_mode = #tpu.pipeline_mode<synchronous>, transform_indices = @transform_2, window_bounds = array<i64: 1, 24>}, {pipeline_mode = #tpu.pipeline_mode<synchronous>, transform_indices = @transform_3, window_bounds = array<i64: 15, 24>}, {pipeline_mode = #tpu.pipeline_mode<synchronous>, transform_indices = @transform_4, window_bounds = array<i64: 24, 128>}, {pipeline_mode = #tpu.pipeline_mode<synchronous>, transform_indices = @transform_5, window_bounds = array<i64: 1, 128>}, {transform_indices = @transform_6, window_bounds = array<i64: 8, 128>}]} {
    %c0 = arith.constant 0 : index
    %c0_0 = arith.constant 0 : index
    %0 = vector.load %arg1[%c0, %c0_0] : memref<8x18xi32, #tpu.memory_space<vmem>>, vector<8x18xi32>
    %1 = tpu.iota {dimensions = array<i32: 2>} : vector<8x15x256xi32>
    %2 = vector.extract_strided_slice %0 {offsets = [0, 0], sizes = [8, 15], strides = [1, 1]} : vector<8x18xi32> to vector<8x15xi32>
    %3 = vector.shape_cast %2 : vector<8x15xi32> to vector<8x15x1xi32>
    %c0_i32 = arith.constant 0 : i32
    %4 = vector.broadcast %c0_i32 : i32 to vector<8x15x1xi32>
    %5 = arith.addi %3, %4 : vector<8x15x1xi32>
    %6 = vector.broadcast %5 : vector<8x15x1xi32> to vector<8x15x256xi32>
    %7 = arith.cmpi eq, %1, %6 : vector<8x15x256xi32>
    %8 = vector.extract_strided_slice %0 {offsets = [0, 1], sizes = [8, 15], strides = [1, 1]} : vector<8x18xi32> to vector<8x15xi32>
    %9 = vector.shape_cast %8 : vector<8x15xi32> to vector<8x15x1xi32>
    %c64_i32 = arith.constant 64 : i32
    %10 = vector.broadcast %c64_i32 : i32 to vector<8x15x1xi32>
    %11 = arith.addi %9, %10 : vector<8x15x1xi32>
    %12 = vector.broadcast %11 : vector<8x15x1xi32> to vector<8x15x256xi32>
    %13 = arith.cmpi eq, %1, %12 : vector<8x15x256xi32>
    %14 = arith.ori %7, %13 : vector<8x15x256xi1>
    %15 = vector.extract_strided_slice %0 {offsets = [0, 2], sizes = [8, 15], strides = [1, 1]} : vector<8x18xi32> to vector<8x15xi32>
    %16 = vector.shape_cast %15 : vector<8x15xi32> to vector<8x15x1xi32>
    %c128_i32 = arith.constant 128 : i32
    %17 = vector.broadcast %c128_i32 : i32 to vector<8x15x1xi32>
    %18 = arith.addi %16, %17 : vector<8x15x1xi32>
    %19 = vector.broadcast %18 : vector<8x15x1xi32> to vector<8x15x256xi32>
    %20 = arith.cmpi eq, %1, %19 : vector<8x15x256xi32>
    %21 = arith.ori %14, %20 : vector<8x15x256xi1>
    %22 = vector.extract_strided_slice %0 {offsets = [0, 3], sizes = [8, 15], strides = [1, 1]} : vector<8x18xi32> to vector<8x15xi32>
    %23 = vector.shape_cast %22 : vector<8x15xi32> to vector<8x15x1xi32>
    %c192_i32 = arith.constant 192 : i32
    %24 = vector.broadcast %c192_i32 : i32 to vector<8x15x1xi32>
    %25 = arith.addi %23, %24 : vector<8x15x1xi32>
    %26 = vector.broadcast %25 : vector<8x15x1xi32> to vector<8x15x256xi32>
    %27 = arith.cmpi eq, %1, %26 : vector<8x15x256xi32>
    %28 = arith.ori %21, %27 : vector<8x15x256xi1>
    %29 = arith.extui %28 : vector<8x15x256xi1> to vector<8x15x256xi32>
    %30 = arith.sitofp %29 : vector<8x15x256xi32> to vector<8x15x256xf32>
    %31 = arith.truncf %30 : vector<8x15x256xf32> to vector<8x15x256xbf16>
    %c0_1 = arith.constant 0 : index
    %c0_2 = arith.constant 0 : index
    %32 = vector.load %arg2[%c0_1, %c0_2] : memref<256x24xbf16, #tpu.memory_space<vmem>>, vector<256x24xbf16>
    %cst = arith.constant dense<0.000000e+00> : vector<8x15x24xf32>
    %33 = tpu.matmul %31, %32, %cst {dimension_numbers = #tpu.dot_dimension_numbers<[2], [0], [0, 1], [1], [0, 0, 0, 1, 1, 1], [], []>} : vector<8x15x256xbf16>, vector<256x24xbf16>, vector<8x15x24xf32> -> vector<8x15x24xf32>
    %c0_3 = arith.constant 0 : index
    %c0_4 = arith.constant 0 : index
    %34 = vector.load %arg4[%c0_3, %c0_4] : memref<15x24xf32, #tpu.memory_space<vmem>>, vector<15x24xf32>
    %35 = vector.shape_cast %34 : vector<15x24xf32> to vector<1x15x24xf32>
    %36 = vector.broadcast %35 : vector<1x15x24xf32> to vector<8x15x24xf32>
    %37 = arith.addf %33, %36 : vector<8x15x24xf32>
    %cst_5 = arith.constant dense<0xFF800000> : vector<8x24xf32>
    %38 = vector.multi_reduction <maximumf>, %37, %cst_5 [1] : vector<8x15x24xf32> to vector<8x24xf32>
    %c0_6 = arith.constant 0 : index
    %c0_7 = arith.constant 0 : index
    %39 = vector.load %arg3[%c0_6, %c0_7] : memref<1x24xf32, #tpu.memory_space<vmem>>, vector<1x24xf32>
    %40 = vector.broadcast %39 : vector<1x24xf32> to vector<8x24xf32>
    %41 = arith.addf %38, %40 : vector<8x24xf32>
    %cst_8 = arith.constant 0.000000e+00 : f32
    %42 = vector.broadcast %cst_8 : f32 to vector<8x24xf32>
    %43 = arith.maximumf %41, %42 : vector<8x24xf32>
    %c0_9 = arith.constant 0 : index
    %c0_10 = arith.constant 0 : index
    %44 = vector.load %arg5[%c0_9, %c0_10] : memref<24x128xf32, #tpu.memory_space<vmem>>, vector<24x128xf32>
    %cst_11 = arith.constant dense<0.000000e+00> : vector<8x128xf32>
    %45 = tpu.matmul %43, %44, %cst_11 {dimension_numbers = #tpu.dot_dimension_numbers<[1], [0], [0], [1], [0, 0, 1, 1], [], []>} : vector<8x24xf32>, vector<24x128xf32>, vector<8x128xf32> -> vector<8x128xf32>
    %c0_12 = arith.constant 0 : index
    %c0_13 = arith.constant 0 : index
    %46 = vector.load %arg6[%c0_12, %c0_13] : memref<1x128xf32, #tpu.memory_space<vmem>>, vector<1x128xf32>
    %47 = vector.broadcast %46 : vector<1x128xf32> to vector<8x128xf32>
    %48 = arith.addf %45, %47 : vector<8x128xf32>
    %c0_14 = arith.constant 0 : index
    %c0_15 = arith.constant 0 : index
    %49 = vector.load %arg7[%c0_14, %c0_15] : memref<8x128xf32, #tpu.memory_space<vmem>>, vector<8x128xf32>
    tpu.vector_store %arg7[%c0_14, %c0_15], %48 {strides = array<i32>} : memref<8x128xf32, #tpu.memory_space<vmem>>, vector<8x128xf32>,
    return
  }
  func.func @transform_0(%arg0: i32) -> (i32, i32) {
    %c0_i32 = arith.constant 0 : i32
    %c0_i32_0 = arith.constant 0 : i32
    return %arg0, %c0_i32 : i32, i32
  }
  func.func @transform_1(%arg0: i32) -> (i32, i32) {
    %c0_i32 = arith.constant 0 : i32
    %c0_i32_0 = arith.constant 0 : i32
    %c0_i32_1 = arith.constant 0 : i32
    return %c0_i32, %c0_i32_0 : i32, i32
  }
  func.func @transform_2(%arg0: i32) -> (i32, i32) {
    %c0_i32 = arith.constant 0 : i32
    %c0_i32_0 = arith.constant 0 : i32
    %c0_i32_1 = arith.constant 0 : i32
    return %c0_i32, %c0_i32_0 : i32, i32
  }
  func.func @transform_3(%arg0: i32) -> (i32, i32) {
    %c0_i32 = arith.constant 0 : i32
    %c0_i32_0 = arith.constant 0 : i32
    %c0_i32_1 = arith.constant 0 : i32
    return %c0_i32, %c0_i32_0 : i32, i32
  }
  func.func @transform_4(%arg0: i32) -> (i32, i32) {
    %c0_i32 = arith.constant 0 : i32
    %c0_i32_0 = arith.constant 0 : i32
    %c0_i32_1 = arith.constant 0 : i32
    return %c0_i32, %c0_i32_0 : i32, i32
  }
  func.func @transform_5(%arg0: i32) -> (i32, i32) {
    %c0_i32 = arith.constant 0 : i32
    %c0_i32_0 = arith.constant 0 : i32
    %c0_i32_1 = arith.constant 0 : i32
    return %c0_i32, %c0_i32_0 : i32, i32
  }
  func.func @transform_6(%arg0: i32) -> (i32, i32) {
    %c0_i32 = arith.constant 0 : i32
    %c0_i32_0 = arith.constant 0 : i32
    return %arg0, %c0_i32 : i32, i32
  }
}

</mosaic_0001>

<llo_original>
// kernel: tpu_custom_call.1
$region0: #{tpu_custom_call.1}
  #allocation0 [shape = 'u32[]', space=smem, size = 0x4, offset = 0x4, fixed_abs, tag = 'smem constant byte address 0x4 - core index']
  #allocation1 [shape = 'u32[144,128]{1,0:T(1,128)}', space=vmem, size = 0x12000, scoped, tag = 'internal scratch']
  %s0 = inlined_call_operand.vmem [shape: s32[8,18], index: 0, kind: input, shape index: {}]
  %s1 = inlined_call_operand.vmem [shape: bf16[256,24], index: 1, kind: input, shape index: {}]
  %s2 = inlined_call_operand.vmem [shape: f32[1,24], index: 2, kind: input, shape index: {}]
  %s3 = inlined_call_operand.vmem [shape: f32[15,24], index: 3, kind: input, shape index: {}]
  %s4 = inlined_call_operand.vmem [shape: f32[24,128], index: 4, kind: input, shape index: {}]
  %s5 = inlined_call_operand.vmem [shape: f32[1,128], index: 5, kind: input, shape index: {}]
  %s6 = inlined_call_operand.hbm [shape: f32[8,128], index: 6, kind: output, shape index: {}]
  %s7 = sld [smem:[#allocation0]]
  $region34: #{tpu_custom_call.1} parent=0
    _
  %s9 = ssub.s32 1, %s7
  %s10 = scalar_select 0, %s9, %s7
  $region1: #{tpu_custom_call.1} parent=0
    #allocation2 [shape = 'u8[4096]{0}', space=vmem, size = 0x1000, scoped, tag = 'output window, operand 0, single buffered']
    #allocation3 [shape = 's32[1]{0}', space=sflag, size = 0x4, scoped, tag = 'scoped memory for tpu_custom_call.1']
    %11 = vsyncpa [#allocation3], 0
    // Predicated region
    $region2: #{tpu_custom_call.1} parent=1 // pred_check
      _
    $region3: #{tpu_custom_call.1} parent=1 // pred_check_branch
      %13 = sbr.rel (0) target = $region5
    $region4: #{tpu_custom_call.1} parent=1 // pred_region
      _
    $region5: #{tpu_custom_call.1} parent=1 // pred_fallthru
      _
    // Predicated region
    $region6: #{tpu_custom_call.1} parent=1 // pred_check
      _
    $region7: #{tpu_custom_call.1} parent=1 // pred_check_branch
      %15 = sbr.rel (0) target = $region9
    $region8: #{tpu_custom_call.1} parent=1 // pred_region
      _
    $region9: #{tpu_custom_call.1} parent=1 // pred_fallthru
      _
    // Predicated region
    $region10: #{tpu_custom_call.1} parent=1 // pred_check
      _
    $region11: #{tpu_custom_call.1} parent=1 // pred_check_branch
      %17 = sbr.rel (0) target = $region13
    $region12: #{tpu_custom_call.1} parent=1 // pred_region
      _
    $region13: #{tpu_custom_call.1} parent=1 // pred_fallthru
      _
    // Predicated region
    $region14: #{tpu_custom_call.1} parent=1 // pred_check
      _
    $region15: #{tpu_custom_call.1} parent=1 // pred_check_branch
      %19 = sbr.rel (0) target = $region17
    $region16: #{tpu_custom_call.1} parent=1 // pred_region
      _
    $region17: #{tpu_custom_call.1} parent=1 // pred_fallthru
      _
    // Predicated region
    $region18: #{tpu_custom_call.1} parent=1 // pred_check
      _
    $region19: #{tpu_custom_call.1} parent=1 // pred_check_branch
      %21 = sbr.rel (0) target = $region21
    $region20: #{tpu_custom_call.1} parent=1 // pred_region
      _
    $region21: #{tpu_custom_call.1} parent=1 // pred_fallthru
      _
    // Predicated region
    $region22: #{tpu_custom_call.1} parent=1 // pred_check
      _
    $region23: #{tpu_custom_call.1} parent=1 // pred_check_branch
      %23 = sbr.rel (0) target = $region25
    $region24: #{tpu_custom_call.1} parent=1 // pred_region
      _
    $region25: #{tpu_custom_call.1} parent=1 // pred_fallthru
      _
    %v25 = vld [vmem:[%s0] sm:$0xff]
    %v26 = vlaneseq
    %v27 = vand.u32 %v26, 127
    %v28 = vadd.s32 %v27, 128
    %v29 = vlaneseq
    %v30 = vshrl.u32 %v29, 7
    %v31 = vsub.s32 0, %v30
    %v32 = vrot.slane %v25, %v31
    %34 = vbcast.lane.b32.xlu0 %v32, 256
    %v35 = vpop.permute.xlu0 %34
    %s37 = sor.u32 256, 8
    %38 = vbcast.lane.b32.xlu0 %v32, %s37
    %v39 = vpop.permute.xlu0 %38
    %v40 = vlaneseq
    %v41 = vshrl.u32 %v40, 7
    %v42 = vsub.s32 1, %v41
    %v43 = vrot.slane %v25, %v42
    %45 = vbcast.lane.b32.xlu0 %v43, 256
    %v46 = vpop.permute.xlu0 %45
    %s48 = sor.u32 256, 8
    %49 = vbcast.lane.b32.xlu0 %v43, %s48
    %v50 = vpop.permute.xlu0 %49
    %v51 = vlaneseq
    %v52 = vshrl.u32 %v51, 7
    %v53 = vsub.s32 2, %v52
    %v54 = vrot.slane %v25, %v53
    %56 = vbcast.lane.b32.xlu0 %v54, 256
    %v57 = vpop.permute.xlu0 %56
    %s59 = sor.u32 256, 8
    %60 = vbcast.lane.b32.xlu0 %v54, %s59
    %v61 = vpop.permute.xlu0 %60
    %v62 = vlaneseq
    %v63 = vshrl.u32 %v62, 7
    %v64 = vsub.s32 3, %v63
    %v65 = vrot.slane %v25, %v64
    %67 = vbcast.lane.b32.xlu0 %v65, 256
    %v68 = vpop.permute.xlu0 %67
    %s70 = sor.u32 256, 8
    %71 = vbcast.lane.b32.xlu0 %v65, %s70
    %v72 = vpop.permute.xlu0 %71
    %v73 = vlaneseq
    %v74 = vshrl.u32 %v73, 7
    %v75 = vsub.s32 4, %v74
    %v76 = vrot.slane %v25, %v75
    %78 = vbcast.lane.b32.xlu0 %v76, 256
    %v79 = vpop.permute.xlu0 %78
    %s81 = sor.u32 256, 8
    %82 = vbcast.lane.b32.xlu0 %v76, %s81
    %v83 = vpop.permute.xlu0 %82
    %v84 = vlaneseq
    %v85 = vshrl.u32 %v84, 7
    %v86 = vsub.s32 5, %v85
    %v87 = vrot.slane %v25, %v86
    %89 = vbcast.lane.b32.xlu0 %v87, 256
    %v90 = vpop.permute.xlu0 %89
    %s92 = sor.u32 256, 8
    %93 = vbcast.lane.b32.xlu0 %v87, %s92
    %v94 = vpop.permute.xlu0 %93
    %v95 = vlaneseq
    %v96 = vshrl.u32 %v95, 7
    %v97 = vsub.s32 6, %v96
    %v98 = vrot.slane %v25, %v97
    %100 = vbcast.lane.b32.xlu0 %v98, 256
    %v101 = vpop.permute.xlu0 %100
    %s103 = sor.u32 256, 8
    %104 = vbcast.lane.b32.xlu0 %v98, %s103
    %v105 = vpop.permute.xlu0 %104
    %v106 = vlaneseq
    %v107 = vshrl.u32 %v106, 7
    %v108 = vsub.s32 7, %v107
    %v109 = vrot.slane %v25, %v108
    %111 = vbcast.lane.b32.xlu0 %v109, 256
    %v112 = vpop.permute.xlu0 %111
    %s114 = sor.u32 256, 8
    %115 = vbcast.lane.b32.xlu0 %v109, %s114
    %v116 = vpop.permute.xlu0 %115
    %vm117 = vcmp.eq.s32.totalorder %v27, %v35
    %vm118 = vcmp.eq.s32.totalorder %v28, %v35
    %vm119 = vcmp.eq.s32.totalorder %v27, %v39
    %vm120 = vcmp.eq.s32.totalorder %v28, %v39
    %vm121 = vcmp.eq.s32.totalorder %v27, %v46
    %vm122 = vcmp.eq.s32.totalorder %v28, %v46
    %vm123 = vcmp.eq.s32.totalorder %v27, %v50
    %vm124 = vcmp.eq.s32.totalorder %v28, %v50
    %vm125 = vcmp.eq.s32.totalorder %v27, %v57
    %vm126 = vcmp.eq.s32.totalorder %v28, %v57
    %vm127 = vcmp.eq.s32.totalorder %v27, %v61
    %vm128 = vcmp.eq.s32.totalorder %v28, %v61
    %vm129 = vcmp.eq.s32.totalorder %v27, %v68
    %vm130 = vcmp.eq.s32.totalorder %v28, %v68
    %vm131 = vcmp.eq.s32.totalorder %v27, %v72
    %vm132 = vcmp.eq.s32.totalorder %v28, %v72
    %vm133 = vcmp.eq.s32.totalorder %v27, %v79
    %vm134 = vcmp.eq.s32.totalorder %v28, %v79
    %vm135 = vcmp.eq.s32.totalorder %v27, %v83
    %vm136 = vcmp.eq.s32.totalorder %v28, %v83
    %vm137 = vcmp.eq.s32.totalorder %v27, %v90
    %vm138 = vcmp.eq.s32.totalorder %v28, %v90
    %vm139 = vcmp.eq.s32.totalorder %v27, %v94
    %vm140 = vcmp.eq.s32.totalorder %v28, %v94
    %vm141 = vcmp.eq.s32.totalorder %v27, %v101
    %vm142 = vcmp.eq.s32.totalorder %v28, %v101
    %vm143 = vcmp.eq.s32.totalorder %v27, %v105
    %vm144 = vcmp.eq.s32.totalorder %v28, %v105
    %vm145 = vcmp.eq.s32.totalorder %v27, %v112
    %vm146 = vcmp.eq.s32.totalorder %v28, %v112
    %vm147 = vcmp.eq.s32.totalorder %v27, %v116
    %vm148 = vcmp.eq.s32.totalorder %v28, %v116
    %s150 = sor.u32 256, 1
    %151 = vbcast.lane.b32.xlu0 %v32, %s150
    %v152 = vpop.permute.xlu0 %151
    %s154 = sor.u32 256, 9
    %155 = vbcast.lane.b32.xlu0 %v32, %s154
    %v156 = vpop.permute.xlu0 %155
    %s158 = sor.u32 256, 1
    %159 = vbcast.lane.b32.xlu0 %v43, %s158
    %v160 = vpop.permute.xlu0 %159
    %s162 = sor.u32 256, 9
    %163 = vbcast.lane.b32.xlu0 %v43, %s162
    %v164 = vpop.permute.xlu0 %163
    %s166 = sor.u32 256, 1
    %167 = vbcast.lane.b32.xlu0 %v54, %s166
    %v168 = vpop.permute.xlu0 %167
    %s170 = sor.u32 256, 9
    %171 = vbcast.lane.b32.xlu0 %v54, %s170
    %v172 = vpop.permute.xlu0 %171
    %s174 = sor.u32 256, 1
    %175 = vbcast.lane.b32.xlu0 %v65, %s174
    %v176 = vpop.permute.xlu0 %175
    %s178 = sor.u32 256, 9
    %179 = vbcast.lane.b32.xlu0 %v65, %s178
    %v180 = vpop.permute.xlu0 %179
    %s182 = sor.u32 256, 1
    %183 = vbcast.lane.b32.xlu0 %v76, %s182
    %v184 = vpop.permute.xlu0 %183
    %s186 = sor.u32 256, 9
    %187 = vbcast.lane.b32.xlu0 %v76, %s186
    %v188 = vpop.permute.xlu0 %187
    %s190 = sor.u32 256, 1
    %191 = vbcast.lane.b32.xlu0 %v87, %s190
    %v192 = vpop.permute.xlu0 %191
    %s194 = sor.u32 256, 9
    %195 = vbcast.lane.b32.xlu0 %v87, %s194
    %v196 = vpop.permute.xlu0 %195
    %s198 = sor.u32 256, 1
    %199 = vbcast.lane.b32.xlu0 %v98, %s198
    %v200 = vpop.permute.xlu0 %199
    %s202 = sor.u32 256, 9
    %203 = vbcast.lane.b32.xlu0 %v98, %s202
    %v204 = vpop.permute.xlu0 %203
    %s206 = sor.u32 256, 1
    %207 = vbcast.lane.b32.xlu0 %v109, %s206
    %v208 = vpop.permute.xlu0 %207
    %s210 = sor.u32 256, 9
    %211 = vbcast.lane.b32.xlu0 %v109, %s210
    %v212 = vpop.permute.xlu0 %211
    %v213 = vadd.s32 %v152, 64
    %v214 = vadd.s32 %v156, 64
    %v215 = vadd.s32 %v160, 64
    %v216 = vadd.s32 %v164, 64
    %v217 = vadd.s32 %v168, 64
    %v218 = vadd.s32 %v172, 64
    %v219 = vadd.s32 %v176, 64
    %v220 = vadd.s32 %v180, 64
    %v221 = vadd.s32 %v184, 64
    %v222 = vadd.s32 %v188, 64
    %v223 = vadd.s32 %v192, 64
    %v224 = vadd.s32 %v196, 64
    %v225 = vadd.s32 %v200, 64
    %v226 = vadd.s32 %v204, 64
    %v227 = vadd.s32 %v208, 64
    %v228 = vadd.s32 %v212, 64
    %vm229 = vcmp.eq.s32.totalorder %v27, %v213
    %vm230 = vcmp.eq.s32.totalorder %v28, %v213
    %vm231 = vcmp.eq.s32.totalorder %v27, %v214
    %vm232 = vcmp.eq.s32.totalorder %v28, %v214
    %vm233 = vcmp.eq.s32.totalorder %v27, %v215
    %vm234 = vcmp.eq.s32.totalorder %v28, %v215
    %vm235 = vcmp.eq.s32.totalorder %v27, %v216
    %vm236 = vcmp.eq.s32.totalorder %v28, %v216
    %vm237 = vcmp.eq.s32.totalorder %v27, %v217
    %vm238 = vcmp.eq.s32.totalorder %v28, %v217
    %vm239 = vcmp.eq.s32.totalorder %v27, %v218
    %vm240 = vcmp.eq.s32.totalorder %v28, %v218
    %vm241 = vcmp.eq.s32.totalorder %v27, %v219
    %vm242 = vcmp.eq.s32.totalorder %v28, %v219
    %vm243 = vcmp.eq.s32.totalorder %v27, %v220
    %vm244 = vcmp.eq.s32.totalorder %v28, %v220
    %vm245 = vcmp.eq.s32.totalorder %v27, %v221
    %vm246 = vcmp.eq.s32.totalorder %v28, %v221
    %vm247 = vcmp.eq.s32.totalorder %v27, %v222
    %vm248 = vcmp.eq.s32.totalorder %v28, %v222
    %vm249 = vcmp.eq.s32.totalorder %v27, %v223
    %vm250 = vcmp.eq.s32.totalorder %v28, %v223
    %vm251 = vcmp.eq.s32.totalorder %v27, %v224
    %vm252 = vcmp.eq.s32.totalorder %v28, %v224
    %vm253 = vcmp.eq.s32.totalorder %v27, %v225
    %vm254 = vcmp.eq.s32.totalorder %v28, %v225
    %vm255 = vcmp.eq.s32.totalorder %v27, %v226
    %vm256 = vcmp.eq.s32.totalorder %v28, %v226
    %vm257 = vcmp.eq.s32.totalorder %v27, %v227
    %vm258 = vcmp.eq.s32.totalorder %v28, %v227
    %vm259 = vcmp.eq.s32.totalorder %v27, %v228
    %vm260 = vcmp.eq.s32.totalorder %v28, %v228
    %vm261 = vmor %vm117, %vm229
    %vm262 = vmor %vm118, %vm230
    %vm263 = vmor %vm119, %vm231
    %vm264 = vmor %vm120, %vm232
    %vm265 = vmor %vm121, %vm233
    %vm266 = vmor %vm122, %vm234
    %vm267 = vmor %vm123, %vm235
    %vm268 = vmor %vm124, %vm236
    %vm269 = vmor %vm125, %vm237
    %vm270 = vmor %vm126, %vm238
    %vm271 = vmor %vm127, %vm239
    %vm272 = vmor %vm128, %vm240
    %vm273 = vmor %vm129, %vm241
    %vm274 = vmor %vm130, %vm242
    %vm275 = vmor %vm131, %vm243
    %vm276 = vmor %vm132, %vm244
    %vm277 = vmor %vm133, %vm245
    %vm278 = vmor %vm134, %vm246
    %vm279 = vmor %vm135, %vm247
    %vm280 = vmor %vm136, %vm248
    %vm281 = vmor %vm137, %vm249
    %vm282 = vmor %vm138, %vm250
    %vm283 = vmor %vm139, %vm251
    %vm284 = vmor %vm140, %vm252
    %vm285 = vmor %vm141, %vm253
    %vm286 = vmor %vm142, %vm254
    %vm287 = vmor %vm143, %vm255
    %vm288 = vmor %vm144, %vm256
    %vm289 = vmor %vm145, %vm257
    %vm290 = vmor %vm146, %vm258
    %vm291 = vmor %vm147, %vm259
    %vm292 = vmor %vm148, %vm260
    %s294 = sor.u32 256, 2
    %295 = vbcast.lane.b32.xlu0 %v32, %s294
    %v296 = vpop.permute.xlu0 %295
    %s298 = sor.u32 256, 10
    %299 = vbcast.lane.b32.xlu0 %v32, %s298
    %v300 = vpop.permute.xlu0 %299
    %s302 = sor.u32 256, 2
    %303 = vbcast.lane.b32.xlu0 %v43, %s302
    %v304 = vpop.permute.xlu0 %303
    %s306 = sor.u32 256, 10
    %307 = vbcast.lane.b32.xlu0 %v43, %s306
    %v308 = vpop.permute.xlu0 %307
    %s310 = sor.u32 256, 2
    %311 = vbcast.lane.b32.xlu0 %v54, %s310
    %v312 = vpop.permute.xlu0 %311
    %s314 = sor.u32 256, 10
    %315 = vbcast.lane.b32.xlu0 %v54, %s314
    %v316 = vpop.permute.xlu0 %315
    %s318 = sor.u32 256, 2
    %319 = vbcast.lane.b32.xlu0 %v65, %s318
    %v320 = vpop.permute.xlu0 %319
    %s322 = sor.u32 256, 10
    %323 = vbcast.lane.b32.xlu0 %v65, %s322
    %v324 = vpop.permute.xlu0 %323
    %s326 = sor.u32 256, 2
    %327 = vbcast.lane.b32.xlu0 %v76, %s326
    %v328 = vpop.permute.xlu0 %327
    %s330 = sor.u32 256, 10
    %331 = vbcast.lane.b32.xlu0 %v76, %s330
    %v332 = vpop.permute.xlu0 %331
    %s334 = sor.u32 256, 2
    %335 = vbcast.lane.b32.xlu0 %v87, %s334
    %v336 = vpop.permute.xlu0 %335
    %s338 = sor.u32 256, 10
    %339 = vbcast.lane.b32.xlu0 %v87, %s338
    %v340 = vpop.permute.xlu0 %339
    %s342 = sor.u32 256, 2
    %343 = vbcast.lane.b32.xlu0 %v98, %s342
    %v344 = vpop.permute.xlu0 %343
    %s346 = sor.u32 256, 10
    %347 = vbcast.lane.b32.xlu0 %v98, %s346
    %v348 = vpop.permute.xlu0 %347
    %s350 = sor.u32 256, 2
    %351 = vbcast.lane.b32.xlu0 %v109, %s350
    %v352 = vpop.permute.xlu0 %351
    %s354 = sor.u32 256, 10
    %355 = vbcast.lane.b32.xlu0 %v109, %s354
    %v356 = vpop.permute.xlu0 %355
    %v357 = vadd.s32 %v296, 128
    %v358 = vadd.s32 %v300, 128
    %v359 = vadd.s32 %v304, 128
    %v360 = vadd.s32 %v308, 128
    %v361 = vadd.s32 %v312, 128
    %v362 = vadd.s32 %v316, 128
    %v363 = vadd.s32 %v320, 128
    %v364 = vadd.s32 %v324, 128
    %v365 = vadd.s32 %v328, 128
    %v366 = vadd.s32 %v332, 128
    %v367 = vadd.s32 %v336, 128
    %v368 = vadd.s32 %v340, 128
    %v369 = vadd.s32 %v344, 128
    %v370 = vadd.s32 %v348, 128
    %v371 = vadd.s32 %v352, 128
    %v372 = vadd.s32 %v356, 128
    %vm373 = vcmp.eq.s32.totalorder %v27, %v357
    %vm374 = vcmp.eq.s32.totalorder %v28, %v357
    %vm375 = vcmp.eq.s32.totalorder %v27, %v358
    %vm376 = vcmp.eq.s32.totalorder %v28, %v358
    %vm377 = vcmp.eq.s32.totalorder %v27, %v359
    %vm378 = vcmp.eq.s32.totalorder %v28, %v359
    %vm379 = vcmp.eq.s32.totalorder %v27, %v360
    %vm380 = vcmp.eq.s32.totalorder %v28, %v360
    %vm381 = vcmp.eq.s32.totalorder %v27, %v361
    %vm382 = vcmp.eq.s32.totalorder %v28, %v361
    %vm383 = vcmp.eq.s32.totalorder %v27, %v362
    %vm384 = vcmp.eq.s32.totalorder %v28, %v362
    %vm385 = vcmp.eq.s32.totalorder %v27, %v363
    %vm386 = vcmp.eq.s32.totalorder %v28, %v363
    %vm387 = vcmp.eq.s32.totalorder %v27, %v364
    %vm388 = vcmp.eq.s32.totalorder %v28, %v364
    %vm389 = vcmp.eq.s32.totalorder %v27, %v365
    %vm390 = vcmp.eq.s32.totalorder %v28, %v365
    %vm391 = vcmp.eq.s32.totalorder %v27, %v366
    %vm392 = vcmp.eq.s32.totalorder %v28, %v366
    %vm393 = vcmp.eq.s32.totalorder %v27, %v367
    %vm394 = vcmp.eq.s32.totalorder %v28, %v367
    %vm395 = vcmp.eq.s32.totalorder %v27, %v368
    %vm396 = vcmp.eq.s32.totalorder %v28, %v368
    %vm397 = vcmp.eq.s32.totalorder %v27, %v369
    %vm398 = vcmp.eq.s32.totalorder %v28, %v369
    %vm399 = vcmp.eq.s32.totalorder %v27, %v370
    %vm400 = vcmp.eq.s32.totalorder %v28, %v370
    %vm401 = vcmp.eq.s32.totalorder %v27, %v371
    %vm402 = vcmp.eq.s32.totalorder %v28, %v371
    %vm403 = vcmp.eq.s32.totalorder %v27, %v372
    %vm404 = vcmp.eq.s32.totalorder %v28, %v372
    %vm405 = vmor %vm261, %vm373
    %vm406 = vmor %vm262, %vm374
    %vm407 = vmor %vm263, %vm375
    %vm408 = vmor %vm264, %vm376
    %vm409 = vmor %vm265, %vm377
    %vm410 = vmor %vm266, %vm378
    %vm411 = vmor %vm267, %vm379
    %vm412 = vmor %vm268, %vm380
    %vm413 = vmor %vm269, %vm381
    %vm414 = vmor %vm270, %vm382
    %vm415 = vmor %vm271, %vm383
    %vm416 = vmor %vm272, %vm384
    %vm417 = vmor %vm273, %vm385
    %vm418 = vmor %vm274, %vm386
    %vm419 = vmor %vm275, %vm387
    %vm420 = vmor %vm276, %vm388
    %vm421 = vmor %vm277, %vm389
    %vm422 = vmor %vm278, %vm390
    %vm423 = vmor %vm279, %vm391
    %vm424 = vmor %vm280, %vm392
    %vm425 = vmor %vm281, %vm393
    %vm426 = vmor %vm282, %vm394
    %vm427 = vmor %vm283, %vm395
    %vm428 = vmor %vm284, %vm396
    %vm429 = vmor %vm285, %vm397
    %vm430 = vmor %vm286, %vm398
    %vm431 = vmor %vm287, %vm399
    %vm432 = vmor %vm288, %vm400
    %vm433 = vmor %vm289, %vm401
    %vm434 = vmor %vm290, %vm402
    %vm435 = vmor %vm291, %vm403
    %vm436 = vmor %vm292, %vm404
    %s438 = sor.u32 256, 3
    %439 = vbcast.lane.b32.xlu0 %v32, %s438
    %v440 = vpop.permute.xlu0 %439
    %s442 = sor.u32 256, 11
    %443 = vbcast.lane.b32.xlu0 %v32, %s442
    %v444 = vpop.permute.xlu0 %443
    %s446 = sor.u32 256, 3
    %447 = vbcast.lane.b32.xlu0 %v43, %s446
    %v448 = vpop.permute.xlu0 %447
    %s450 = sor.u32 256, 11
    %451 = vbcast.lane.b32.xlu0 %v43, %s450
    %v452 = vpop.permute.xlu0 %451
    %s454 = sor.u32 256, 3
    %455 = vbcast.lane.b32.xlu0 %v54, %s454
    %v456 = vpop.permute.xlu0 %455
    %s458 = sor.u32 256, 11
    %459 = vbcast.lane.b32.xlu0 %v54, %s458
    %v460 = vpop.permute.xlu0 %459
    %s462 = sor.u32 256, 3
    %463 = vbcast.lane.b32.xlu0 %v65, %s462
    %v464 = vpop.permute.xlu0 %463
    %s466 = sor.u32 256, 11
    %467 = vbcast.lane.b32.xlu0 %v65, %s466
    %v468 = vpop.permute.xlu0 %467
    %s470 = sor.u32 256, 3
    %471 = vbcast.lane.b32.xlu0 %v76, %s470
    %v472 = vpop.permute.xlu0 %471
    %s474 = sor.u32 256, 11
    %475 = vbcast.lane.b32.xlu0 %v76, %s474
    %v476 = vpop.permute.xlu0 %475
    %s478 = sor.u32 256, 3
    %479 = vbcast.lane.b32.xlu0 %v87, %s478
    %v480 = vpop.permute.xlu0 %479
    %s482 = sor.u32 256, 11
    %483 = vbcast.lane.b32.xlu0 %v87, %s482
    %v484 = vpop.permute.xlu0 %483
    %s486 = sor.u32 256, 3
    %487 = vbcast.lane.b32.xlu0 %v98, %s486
    %v488 = vpop.permute.xlu0 %487
    %s490 = sor.u32 256, 11
    %491 = vbcast.lane.b32.xlu0 %v98, %s490
    %v492 = vpop.permute.xlu0 %491
    %s494 = sor.u32 256, 3
    %495 = vbcast.lane.b32.xlu0 %v109, %s494
    %v496 = vpop.permute.xlu0 %495
    %s498 = sor.u32 256, 11
    %499 = vbcast.lane.b32.xlu0 %v109, %s498
    %v500 = vpop.permute.xlu0 %499
    %v501 = vadd.s32 %v440, 192
    %v502 = vadd.s32 %v444, 192
    %v503 = vadd.s32 %v448, 192
    %v504 = vadd.s32 %v452, 192
    %v505 = vadd.s32 %v456, 192
    %v506 = vadd.s32 %v460, 192
    %v507 = vadd.s32 %v464, 192
    %v508 = vadd.s32 %v468, 192
    %v509 = vadd.s32 %v472, 192
    %v510 = vadd.s32 %v476, 192
    %v511 = vadd.s32 %v480, 192
    %v512 = vadd.s32 %v484, 192
    %v513 = vadd.s32 %v488, 192
    %v514 = vadd.s32 %v492, 192
    %v515 = vadd.s32 %v496, 192
    %v516 = vadd.s32 %v500, 192
    %vm517 = vcmp.eq.s32.totalorder %v27, %v501
    %vm518 = vcmp.eq.s32.totalorder %v28, %v501
    %vm519 = vcmp.eq.s32.totalorder %v27, %v502
    %vm520 = vcmp.eq.s32.totalorder %v28, %v502
    %vm521 = vcmp.eq.s32.totalorder %v27, %v503
    %vm522 = vcmp.eq.s32.totalorder %v28, %v503
    %vm523 = vcmp.eq.s32.totalorder %v27, %v504
    %vm524 = vcmp.eq.s32.totalorder %v28, %v504
    %vm525 = vcmp.eq.s32.totalorder %v27, %v505
    %vm526 = vcmp.eq.s32.totalorder %v28, %v505
    %vm527 = vcmp.eq.s32.totalorder %v27, %v506
    %vm528 = vcmp.eq.s32.totalorder %v28, %v506
    %vm529 = vcmp.eq.s32.totalorder %v27, %v507
    %vm530 = vcmp.eq.s32.totalorder %v28, %v507
    %vm531 = vcmp.eq.s32.totalorder %v27, %v508
    %vm532 = vcmp.eq.s32.totalorder %v28, %v508
    %vm533 = vcmp.eq.s32.totalorder %v27, %v509
    %vm534 = vcmp.eq.s32.totalorder %v28, %v509
    %vm535 = vcmp.eq.s32.totalorder %v27, %v510
    %vm536 = vcmp.eq.s32.totalorder %v28, %v510
    %vm537 = vcmp.eq.s32.totalorder %v27, %v511
    %vm538 = vcmp.eq.s32.totalorder %v28, %v511
    %vm539 = vcmp.eq.s32.totalorder %v27, %v512
    %vm540 = vcmp.eq.s32.totalorder %v28, %v512
    %vm541 = vcmp.eq.s32.totalorder %v27, %v513
    %vm542 = vcmp.eq.s32.totalorder %v28, %v513
    %vm543 = vcmp.eq.s32.totalorder %v27, %v514
    %vm544 = vcmp.eq.s32.totalorder %v28, %v514
    %vm545 = vcmp.eq.s32.totalorder %v27, %v515
    %vm546 = vcmp.eq.s32.totalorder %v28, %v515
    %vm547 = vcmp.eq.s32.totalorder %v27, %v516
    %vm548 = vcmp.eq.s32.totalorder %v28, %v516
    %vm549 = vmor %vm405, %vm517
    %vm550 = vmor %vm406, %vm518
    %vm551 = vmor %vm407, %vm519
    %vm552 = vmor %vm408, %vm520
    %vm553 = vmor %vm409, %vm521
    %vm554 = vmor %vm410, %vm522
    %vm555 = vmor %vm411, %vm523
    %vm556 = vmor %vm412, %vm524
    %vm557 = vmor %vm413, %vm525
    %vm558 = vmor %vm414, %vm526
    %vm559 = vmor %vm415, %vm527
    %vm560 = vmor %vm416, %vm528
    %vm561 = vmor %vm417, %vm529
    %vm562 = vmor %vm418, %vm530
    %vm563 = vmor %vm419, %vm531
    %vm564 = vmor %vm420, %vm532
    %vm565 = vmor %vm421, %vm533
    %vm566 = vmor %vm422, %vm534
    %vm567 = vmor %vm423, %vm535
    %vm568 = vmor %vm424, %vm536
    %vm569 = vmor %vm425, %vm537
    %vm570 = vmor %vm426, %vm538
    %vm571 = vmor %vm427, %vm539
    %vm572 = vmor %vm428, %vm540
    %vm573 = vmor %vm429, %vm541
    %vm574 = vmor %vm430, %vm542
    %vm575 = vmor %vm431, %vm543
    %vm576 = vmor %vm432, %vm544
    %vm577 = vmor %vm433, %vm545
    %vm578 = vmor %vm434, %vm546
    %vm579 = vmor %vm435, %vm547
    %vm580 = vmor %vm436, %vm548
    %v581 = vsel %vm549, 1, 0
    %v582 = vsel %vm550, 1, 0
    %v583 = vsel %vm551, 1, 0
    %v584 = vsel %vm552, 1, 0
    %v585 = vsel %vm553, 1, 0
    %v586 = vsel %vm554, 1, 0
    %v587 = vsel %vm555, 1, 0
    %v588 = vsel %vm556, 1, 0
    %v589 = vsel %vm557, 1, 0
    %v590 = vsel %vm558, 1, 0
    %v591 = vsel %vm559, 1, 0
    %v592 = vsel %vm560, 1, 0
    %v593 = vsel %vm561, 1, 0
    %v594 = vsel %vm562, 1, 0
    %v595 = vsel %vm563, 1, 0
    %v596 = vsel %vm564, 1, 0
    %v597 = vsel %vm565, 1, 0
    %v598 = vsel %vm566, 1, 0
    %v599 = vsel %vm567, 1, 0
    %v600 = vsel %vm568, 1, 0
    %v601 = vsel %vm569, 1, 0
    %v602 = vsel %vm570, 1, 0
    %v603 = vsel %vm571, 1, 0
    %v604 = vsel %vm572, 1, 0
    %v605 = vsel %vm573, 1, 0
    %v606 = vsel %vm574, 1, 0
    %v607 = vsel %vm575, 1, 0
    %v608 = vsel %vm576, 1, 0
    %v609 = vsel %vm577, 1, 0
    %v610 = vsel %vm578, 1, 0
    %v611 = vsel %vm579, 1, 0
    %v612 = vsel %vm580, 1, 0
    %v613 = vcvt.s32.f32 %v581
    %v614 = vcvt.s32.f32 %v582
    %v615 = vcvt.s32.f32 %v583
    %v616 = vcvt.s32.f32 %v584
    %v617 = vcvt.s32.f32 %v585
    %v618 = vcvt.s32.f32 %v586
    %v619 = vcvt.s32.f32 %v587
    %v620 = vcvt.s32.f32 %v588
    %v621 = vcvt.s32.f32 %v589
    %v622 = vcvt.s32.f32 %v590
    %v623 = vcvt.s32.f32 %v591
    %v624 = vcvt.s32.f32 %v592
    %v625 = vcvt.s32.f32 %v593
    %v626 = vcvt.s32.f32 %v594
    %v627 = vcvt.s32.f32 %v595
    %v628 = vcvt.s32.f32 %v596
    %v629 = vcvt.s32.f32 %v597
    %v630 = vcvt.s32.f32 %v598
    %v631 = vcvt.s32.f32 %v599
    %v632 = vcvt.s32.f32 %v600
    %v633 = vcvt.s32.f32 %v601
    %v634 = vcvt.s32.f32 %v602
    %v635 = vcvt.s32.f32 %v603
    %v636 = vcvt.s32.f32 %v604
    %v637 = vcvt.s32.f32 %v605
    %v638 = vcvt.s32.f32 %v606
    %v639 = vcvt.s32.f32 %v607
    %v640 = vcvt.s32.f32 %v608
    %v641 = vcvt.s32.f32 %v609
    %v642 = vcvt.s32.f32 %v610
    %v643 = vcvt.s32.f32 %v611
    %v644 = vcvt.s32.f32 %v612
    %v645 = vpack.c.bf16 %v615, %v613
    %v646 = vpack.c.bf16 %v616, %v614
    %v647 = vpack.c.bf16 %v619, %v617
    %v648 = vpack.c.bf16 %v620, %v618
    %v649 = vpack.c.bf16 %v623, %v621
    %v650 = vpack.c.bf16 %v624, %v622
    %v651 = vpack.c.bf16 %v627, %v625
    %v652 = vpack.c.bf16 %v628, %v626
    %v653 = vpack.c.bf16 %v631, %v629
    %v654 = vpack.c.bf16 %v632, %v630
    %v655 = vpack.c.bf16 %v635, %v633
    %v656 = vpack.c.bf16 %v636, %v634
    %v657 = vpack.c.bf16 %v639, %v637
    %v658 = vpack.c.bf16 %v640, %v638
    %v659 = vpack.c.bf16 %v643, %v641
    %v660 = vpack.c.bf16 %v644, %v642
    %v661 = vld [vmem:[%s1] sm:$0xf]
    %v662 = vld [vmem:[%s1 + $0x4] sm:$0xf]
    %v663 = vld [vmem:[%s1 + $0x8] sm:$0xf]
    %v664 = vld [vmem:[%s1 + $0xc] sm:$0xf]
    %v665 = vld [vmem:[%s1 + $0x10] sm:$0xf]
    %v666 = vld [vmem:[%s1 + $0x14] sm:$0xf]
    %v667 = vld [vmem:[%s1 + $0x18] sm:$0xf]
    %v668 = vld [vmem:[%s1 + $0x1c] sm:$0xf]
    %v669 = vld [vmem:[%s1 + $0x20] sm:$0xf]
    %v670 = vld [vmem:[%s1 + $0x24] sm:$0xf]
    %v671 = vld [vmem:[%s1 + $0x28] sm:$0xf]
    %v672 = vld [vmem:[%s1 + $0x2c] sm:$0xf]
    %v673 = vld [vmem:[%s1 + $0x30] sm:$0xf]
    %v674 = vld [vmem:[%s1 + $0x34] sm:$0xf]
    %v675 = vld [vmem:[%s1 + $0x38] sm:$0xf]
    %v676 = vld [vmem:[%s1 + $0x3c] sm:$0xf]
    %v677 = vld [vmem:[%s1 + $0x40] sm:$0xf]
    %v678 = vld [vmem:[%s1 + $0x44] sm:$0xf]
    %v679 = vld [vmem:[%s1 + $0x48] sm:$0xf]
    %v680 = vld [vmem:[%s1 + $0x4c] sm:$0xf]
    %v681 = vld [vmem:[%s1 + $0x50] sm:$0xf]
    %v682 = vld [vmem:[%s1 + $0x54] sm:$0xf]
    %v683 = vld [vmem:[%s1 + $0x58] sm:$0xf]
    %v684 = vld [vmem:[%s1 + $0x5c] sm:$0xf]
    %v685 = vld [vmem:[%s1 + $0x60] sm:$0xf]
    %v686 = vld [vmem:[%s1 + $0x64] sm:$0xf]
    %v687 = vld [vmem:[%s1 + $0x68] sm:$0xf]
    %v688 = vld [vmem:[%s1 + $0x6c] sm:$0xf]
    %v689 = vld [vmem:[%s1 + $0x70] sm:$0xf]
    %v690 = vld [vmem:[%s1 + $0x74] sm:$0xf]
    %v691 = vld [vmem:[%s1 + $0x78] sm:$0xf]
    %v692 = vld [vmem:[%s1 + $0x7c] sm:$0xf]
    %v693 = vld [vmem:[%s3] sm:$0xff]
    %v694 = vld [vmem:[%s3 + $0x8] sm:$0x7f]
    %v711 = vcombine.low %v645, %v646
    %v712 = vcombine.high %v645, %v646
    %v714 = vunpack.c.l.s4 1966171168
    %v715 = vunpack.c.0.s8 %v714
    %v716 = vlaneseq
    %v717 = vshrl.u32 %v716, 7
    %v718 = vsub.s32 %v715, %v717
    %v719 = vrot.slane %v711, %v718
    %v721 = vunpack.c.l.s4 1966171168
    %v722 = vunpack.c.0.s8 %v721
    %v723 = vlaneseq
    %v724 = vshrl.u32 %v723, 7
    %v725 = vsub.s32 %v722, %v724
    %v726 = vrot.slane %v712, %v725
    %v727 = vcombine.high %v719, %v719
    %v728 = vcombine.high %v726, %v726
    %v730 = vunpack.c.l.s4 1966171168
    %v731 = vunpack.c.0.s8 %v730
    %v732 = vlaneseq
    %v733 = vshrl.u32 %v732, 7
    %v734 = vsub.s32 %v731, %v733
    %v735 = vrot.slane %v719, %v734
    %v737 = vunpack.c.l.s4 1966171168
    %v738 = vunpack.c.0.s8 %v737
    %v739 = vlaneseq
    %v740 = vshrl.u32 %v739, 7
    %v741 = vsub.s32 %v738, %v740
    %v742 = vrot.slane %v726, %v741
    %v744 = vunpack.c.l.s4 1966171168
    %v745 = vunpack.c.0.s8 %v744
    %v746 = vlaneseq
    %v747 = vshrl.u32 %v746, 7
    %v748 = vsub.s32 %v745, %v747
    %v749 = vrot.slane %v727, %v748
    %v751 = vunpack.c.l.s4 1966171168
    %v752 = vunpack.c.0.s8 %v751
    %v753 = vlaneseq
    %v754 = vshrl.u32 %v753, 7
    %v755 = vsub.s32 %v752, %v754
    %v756 = vrot.slane %v728, %v755
    %v757 = vcombine.high %v735, %v735
    %v758 = vcombine.high %v742, %v742
    %v759 = vcombine.high %v749, %v749
    %v760 = vcombine.high %v756, %v756
    %v761 = vcombine.low %v647, %v648
    %v762 = vcombine.high %v647, %v648
    %v764 = vunpack.c.l.s4 1966171168
    %v765 = vunpack.c.0.s8 %v764
    %v766 = vlaneseq
    %v767 = vshrl.u32 %v766, 7
    %v768 = vsub.s32 %v765, %v767
    %v769 = vrot.slane %v761, %v768
    %v771 = vunpack.c.l.s4 1966171168
    %v772 = vunpack.c.0.s8 %v771
    %v773 = vlaneseq
    %v774 = vshrl.u32 %v773, 7
    %v775 = vsub.s32 %v772, %v774
    %v776 = vrot.slane %v762, %v775
    %v777 = vcombine.high %v769, %v769
    %v778 = vcombine.high %v776, %v776
    %v780 = vunpack.c.l.s4 1966171168
    %v781 = vunpack.c.0.s8 %v780
    %v782 = vlaneseq
    %v783 = vshrl.u32 %v782, 7
    %v784 = vsub.s32 %v781, %v783
    %v785 = vrot.slane %v769, %v784
    %v787 = vunpack.c.l.s4 1966171168
    %v788 = vunpack.c.0.s8 %v787
    %v789 = vlaneseq
    %v790 = vshrl.u32 %v789, 7
    %v791 = vsub.s32 %v788, %v790
    %v792 = vrot.slane %v776, %v791
    %v794 = vunpack.c.l.s4 1966171168
    %v795 = vunpack.c.0.s8 %v794
    %v796 = vlaneseq
    %v797 = vshrl.u32 %v796, 7
    %v798 = vsub.s32 %v795, %v797
    %v799 = vrot.slane %v777, %v798
    %v801 = vunpack.c.l.s4 1966171168
    %v802 = vunpack.c.0.s8 %v801
    %v803 = vlaneseq
    %v804 = vshrl.u32 %v803, 7
    %v805 = vsub.s32 %v802, %v804
    %v806 = vrot.slane %v778, %v805
    %v807 = vcombine.high %v785, %v785
    %v808 = vcombine.high %v792, %v792
    %v809 = vcombine.high %v799, %v799
    %v810 = vcombine.high %v806, %v806
    %v811 = vcombine.low %v649, %v650
    %v812 = vcombine.high %v649, %v650
    %v814 = vunpack.c.l.s4 1966171168
    %v815 = vunpack.c.0.s8 %v814
    %v816 = vlaneseq
    %v817 = vshrl.u32 %v816, 7
    %v818 = vsub.s32 %v815, %v817
    %v819 = vrot.slane %v811, %v818
    %v821 = vunpack.c.l.s4 1966171168
    %v822 = vunpack.c.0.s8 %v821
    %v823 = vlaneseq
    %v824 = vshrl.u32 %v823, 7
    %v825 = vsub.s32 %v822, %v824
    %v826 = vrot.slane %v812, %v825
    %v827 = vcombine.high %v819, %v819
    %v828 = vcombine.high %v826, %v826
    %v830 = vunpack.c.l.s4 1966171168
    %v831 = vunpack.c.0.s8 %v830
    %v832 = vlaneseq
    %v833 = vshrl.u32 %v832, 7
    %v834 = vsub.s32 %v831, %v833
    %v835 = vrot.slane %v819, %v834
    %v837 = vunpack.c.l.s4 1966171168
    %v838 = vunpack.c.0.s8 %v837
    %v839 = vlaneseq
    %v840 = vshrl.u32 %v839, 7
    %v841 = vsub.s32 %v838, %v840
    %v842 = vrot.slane %v826, %v841
    %v844 = vunpack.c.l.s4 1966171168
    %v845 = vunpack.c.0.s8 %v844
    %v846 = vlaneseq
    %v847 = vshrl.u32 %v846, 7
    %v848 = vsub.s32 %v845, %v847
    %v849 = vrot.slane %v827, %v848
    %v851 = vunpack.c.l.s4 1966171168
    %v852 = vunpack.c.0.s8 %v851
    %v853 = vlaneseq
    %v854 = vshrl.u32 %v853, 7
    %v855 = vsub.s32 %v852, %v854
    %v856 = vrot.slane %v828, %v855
    %v857 = vcombine.high %v835, %v835
    %v858 = vcombine.high %v842, %v842
    %v859 = vcombine.high %v849, %v849
    %v860 = vcombine.high %v856, %v856
    %v861 = vcombine.low %v651, %v652
    %v862 = vcombine.high %v651, %v652
    %v864 = vunpack.c.l.s4 1966171168
    %v865 = vunpack.c.0.s8 %v864
    %v866 = vlaneseq
    %v867 = vshrl.u32 %v866, 7
    %v868 = vsub.s32 %v865, %v867
    %v869 = vrot.slane %v861, %v868
    %v871 = vunpack.c.l.s4 1966171168
    %v872 = vunpack.c.0.s8 %v871
    %v873 = vlaneseq
    %v874 = vshrl.u32 %v873, 7
    %v875 = vsub.s32 %v872, %v874
    %v876 = vrot.slane %v862, %v875
    %v877 = vcombine.high %v869, %v869
    %v878 = vcombine.high %v876, %v876
    %v880 = vunpack.c.l.s4 1966171168
    %v881 = vunpack.c.0.s8 %v880
    %v882 = vlaneseq
    %v883 = vshrl.u32 %v882, 7
    %v884 = vsub.s32 %v881, %v883
    %v885 = vrot.slane %v869, %v884
    %v887 = vunpack.c.l.s4 1966171168
    %v888 = vunpack.c.0.s8 %v887
    %v889 = vlaneseq
    %v890 = vshrl.u32 %v889, 7
    %v891 = vsub.s32 %v888, %v890
    %v892 = vrot.slane %v876, %v891
    %v894 = vunpack.c.l.s4 1966171168
    %v895 = vunpack.c.0.s8 %v894
    %v896 = vlaneseq
    %v897 = vshrl.u32 %v896, 7
    %v898 = vsub.s32 %v895, %v897
    %v899 = vrot.slane %v877, %v898
    %v901 = vunpack.c.l.s4 1966171168
    %v902 = vunpack.c.0.s8 %v901
    %v903 = vlaneseq
    %v904 = vshrl.u32 %v903, 7
    %v905 = vsub.s32 %v902, %v904
    %v906 = vrot.slane %v878, %v905
    %v907 = vcombine.high %v885, %v885
    %v908 = vcombine.high %v892, %v892
    %v909 = vcombine.high %v899, %v899
    %v910 = vcombine.high %v906, %v906
    %v911 = vcombine.low %v653, %v654
    %v912 = vcombine.high %v653, %v654
    %v914 = vunpack.c.l.s4 1966171168
    %v915 = vunpack.c.0.s8 %v914
    %v916 = vlaneseq
    %v917 = vshrl.u32 %v916, 7
    %v918 = vsub.s32 %v915, %v917
    %v919 = vrot.slane %v911, %v918
    %v921 = vunpack.c.l.s4 1966171168
    %v922 = vunpack.c.0.s8 %v921
    %v923 = vlaneseq
    %v924 = vshrl.u32 %v923, 7
    %v925 = vsub.s32 %v922, %v924
    %v926 = vrot.slane %v912, %v925
    %v927 = vcombine.high %v919, %v919
    %v928 = vcombine.high %v926, %v926
    %v930 = vunpack.c.l.s4 1966171168
    %v931 = vunpack.c.0.s8 %v930
    %v932 = vlaneseq
    %v933 = vshrl.u32 %v932, 7
    %v934 = vsub.s32 %v931, %v933
    %v935 = vrot.slane %v919, %v934
    %v937 = vunpack.c.l.s4 1966171168
    %v938 = vunpack.c.0.s8 %v937
    %v939 = vlaneseq
    %v940 = vshrl.u32 %v939, 7
    %v941 = vsub.s32 %v938, %v940
    %v942 = vrot.slane %v926, %v941
    %v944 = vunpack.c.l.s4 1966171168
    %v945 = vunpack.c.0.s8 %v944
    %v946 = vlaneseq
    %v947 = vshrl.u32 %v946, 7
    %v948 = vsub.s32 %v945, %v947
    %v949 = vrot.slane %v927, %v948
    %v951 = vunpack.c.l.s4 1966171168
    %v952 = vunpack.c.0.s8 %v951
    %v953 = vlaneseq
    %v954 = vshrl.u32 %v953, 7
    %v955 = vsub.s32 %v952, %v954
    %v956 = vrot.slane %v928, %v955
    %v957 = vcombine.high %v935, %v935
    %v958 = vcombine.high %v942, %v942
    %v959 = vcombine.high %v949, %v949
    %v960 = vcombine.high %v956, %v956
    %v961 = vcombine.low %v655, %v656
    %v962 = vcombine.high %v655, %v656
    %v964 = vunpack.c.l.s4 1966171168
    %v965 = vunpack.c.0.s8 %v964
    %v966 = vlaneseq
    %v967 = vshrl.u32 %v966, 7
    %v968 = vsub.s32 %v965, %v967
    %v969 = vrot.slane %v961, %v968
    %v971 = vunpack.c.l.s4 1966171168
    %v972 = vunpack.c.0.s8 %v971
    %v973 = vlaneseq
    %v974 = vshrl.u32 %v973, 7
    %v975 = vsub.s32 %v972, %v974
    %v976 = vrot.slane %v962, %v975
    %v977 = vcombine.high %v969, %v969
    %v978 = vcombine.high %v976, %v976
    %v980 = vunpack.c.l.s4 1966171168
    %v981 = vunpack.c.0.s8 %v980
    %v982 = vlaneseq
    %v983 = vshrl.u32 %v982, 7
    %v984 = vsub.s32 %v981, %v983
    %v985 = vrot.slane %v969, %v984
    %v987 = vunpack.c.l.s4 1966171168
    %v988 = vunpack.c.0.s8 %v987
    %v989 = vlaneseq
    %v990 = vshrl.u32 %v989, 7
    %v991 = vsub.s32 %v988, %v990
    %v992 = vrot.slane %v976, %v991
    %v994 = vunpack.c.l.s4 1966171168
    %v995 = vunpack.c.0.s8 %v994
    %v996 = vlaneseq
    %v997 = vshrl.u32 %v996, 7
    %v998 = vsub.s32 %v995, %v997
    %v999 = vrot.slane %v977, %v998
    %v1001 = vunpack.c.l.s4 1966171168
    %v1002 = vunpack.c.0.s8 %v1001
    %v1003 = vlaneseq
    %v1004 = vshrl.u32 %v1003, 7
    %v1005 = vsub.s32 %v1002, %v1004
    %v1006 = vrot.slane %v978, %v1005
    %v1007 = vcombine.high %v985, %v985
    %v1008 = vcombine.high %v992, %v992
    %v1009 = vcombine.high %v999, %v999
    %v1010 = vcombine.high %v1006, %v1006
    %v1011 = vcombine.low %v657, %v658
    %v1012 = vcombine.high %v657, %v658
    %v1014 = vunpack.c.l.s4 1966171168
    %v1015 = vunpack.c.0.s8 %v1014
    %v1016 = vlaneseq
    %v1017 = vshrl.u32 %v1016, 7
    %v1018 = vsub.s32 %v1015, %v1017
    %v1019 = vrot.slane %v1011, %v1018
    %v1021 = vunpack.c.l.s4 1966171168
    %v1022 = vunpack.c.0.s8 %v1021
    %v1023 = vlaneseq
    %v1024 = vshrl.u32 %v1023, 7
    %v1025 = vsub.s32 %v1022, %v1024
    %v1026 = vrot.slane %v1012, %v1025
    %v1027 = vcombine.high %v1019, %v1019
    %v1028 = vcombine.high %v1026, %v1026
    %v1030 = vunpack.c.l.s4 1966171168
    %v1031 = vunpack.c.0.s8 %v1030
    %v1032 = vlaneseq
    %v1033 = vshrl.u32 %v1032, 7
    %v1034 = vsub.s32 %v1031, %v1033
    %v1035 = vrot.slane %v1019, %v1034
    %v1037 = vunpack.c.l.s4 1966171168
    %v1038 = vunpack.c.0.s8 %v1037
    %v1039 = vlaneseq
    %v1040 = vshrl.u32 %v1039, 7
    %v1041 = vsub.s32 %v1038, %v1040
    %v1042 = vrot.slane %v1026, %v1041
    %v1044 = vunpack.c.l.s4 1966171168
    %v1045 = vunpack.c.0.s8 %v1044
    %v1046 = vlaneseq
    %v1047 = vshrl.u32 %v1046, 7
    %v1048 = vsub.s32 %v1045, %v1047
    %v1049 = vrot.slane %v1027, %v1048
    %v1051 = vunpack.c.l.s4 1966171168
    %v1052 = vunpack.c.0.s8 %v1051
    %v1053 = vlaneseq
    %v1054 = vshrl.u32 %v1053, 7
    %v1055 = vsub.s32 %v1052, %v1054
    %v1056 = vrot.slane %v1028, %v1055
    %v1057 = vcombine.high %v1035, %v1035
    %v1058 = vcombine.high %v1042, %v1042
    %v1059 = vcombine.high %v1049, %v1049
    %v1060 = vcombine.high %v1056, %v1056
    %v1061 = vcombine.low %v659, %v660
    %v1062 = vcombine.high %v659, %v660
    %v1064 = vunpack.c.l.s4 1966171168
    %v1065 = vunpack.c.0.s8 %v1064
    %v1066 = vlaneseq
    %v1067 = vshrl.u32 %v1066, 7
    %v1068 = vsub.s32 %v1065, %v1067
    %v1069 = vrot.slane %v1061, %v1068
    %v1071 = vunpack.c.l.s4 1966171168
    %v1072 = vunpack.c.0.s8 %v1071
    %v1073 = vlaneseq
    %v1074 = vshrl.u32 %v1073, 7
    %v1075 = vsub.s32 %v1072, %v1074
    %v1076 = vrot.slane %v1062, %v1075
    %v1077 = vcombine.high %v1069, %v1069
    %v1078 = vcombine.high %v1076, %v1076
    %v1080 = vunpack.c.l.s4 1966171168
    %v1081 = vunpack.c.0.s8 %v1080
    %v1082 = vlaneseq
    %v1083 = vshrl.u32 %v1082, 7
    %v1084 = vsub.s32 %v1081, %v1083
    %v1085 = vrot.slane %v1069, %v1084
    %v1087 = vunpack.c.l.s4 1966171168
    %v1088 = vunpack.c.0.s8 %v1087
    %v1089 = vlaneseq
    %v1090 = vshrl.u32 %v1089, 7
    %v1091 = vsub.s32 %v1088, %v1090
    %v1092 = vrot.slane %v1076, %v1091
    %v1094 = vunpack.c.l.s4 1966171168
    %v1095 = vunpack.c.0.s8 %v1094
    %v1096 = vlaneseq
    %v1097 = vshrl.u32 %v1096, 7
    %v1098 = vsub.s32 %v1095, %v1097
    %v1099 = vrot.slane %v1077, %v1098
    %v1101 = vunpack.c.l.s4 1966171168
    %v1102 = vunpack.c.0.s8 %v1101
    %v1103 = vlaneseq
    %v1104 = vshrl.u32 %v1103, 7
    %v1105 = vsub.s32 %v1102, %v1104
    %v1106 = vrot.slane %v1078, %v1105
    %v1107 = vcombine.high %v1085, %v1085
    %v1108 = vcombine.high %v1092, %v1092
    %v1109 = vcombine.high %v1099, %v1099
    %v1110 = vcombine.high %v1106, %v1106
    %v1111 = vunpack.i.l.s16 %v735
    %v1112 = vunpack.i.h.s16 %v735
    %v1113 = vunpack.i.l.s16 %v749
    %v1114 = vunpack.i.h.s16 %v749
    %v1115 = vunpack.i.l.s16 %v757
    %v1116 = vunpack.i.h.s16 %v757
    %v1117 = vunpack.i.l.s16 %v759
    %v1118 = vunpack.i.h.s16 %v759
    %v1119 = vunpack.i.l.s16 %v742
    %v1120 = vunpack.i.h.s16 %v742
    %v1121 = vunpack.i.l.s16 %v756
    %v1122 = vunpack.i.h.s16 %v756
    %v1123 = vunpack.i.l.s16 %v758
    %v1124 = vunpack.i.h.s16 %v758
    %v1125 = vunpack.i.l.s16 %v760
    %v1126 = vunpack.i.l.s16 %v785
    %v1127 = vunpack.i.h.s16 %v785
    %v1128 = vunpack.i.l.s16 %v799
    %v1129 = vunpack.i.h.s16 %v799
    %v1130 = vunpack.i.l.s16 %v807
    %v1131 = vunpack.i.h.s16 %v807
    %v1132 = vunpack.i.l.s16 %v809
    %v1133 = vunpack.i.h.s16 %v809
    %v1134 = vunpack.i.l.s16 %v792
    %v1135 = vunpack.i.h.s16 %v792
    %v1136 = vunpack.i.l.s16 %v806
    %v1137 = vunpack.i.h.s16 %v806
    %v1138 = vunpack.i.l.s16 %v808
    %v1139 = vunpack.i.h.s16 %v808
    %v1140 = vunpack.i.l.s16 %v810
    %v1141 = vunpack.i.l.s16 %v835
    %v1142 = vunpack.i.h.s16 %v835
    %v1143 = vunpack.i.l.s16 %v849
    %v1144 = vunpack.i.h.s16 %v849
    %v1145 = vunpack.i.l.s16 %v857
    %v1146 = vunpack.i.h.s16 %v857
    %v1147 = vunpack.i.l.s16 %v859
    %v1148 = vunpack.i.h.s16 %v859
    %v1149 = vunpack.i.l.s16 %v842
    %v1150 = vunpack.i.h.s16 %v842
    %v1151 = vunpack.i.l.s16 %v856
    %v1152 = vunpack.i.h.s16 %v856
    %v1153 = vunpack.i.l.s16 %v858
    %v1154 = vunpack.i.h.s16 %v858
    %v1155 = vunpack.i.l.s16 %v860
    %v1156 = vunpack.i.l.s16 %v885
    %v1157 = vunpack.i.h.s16 %v885
    %v1158 = vunpack.i.l.s16 %v899
    %v1159 = vunpack.i.h.s16 %v899
    %v1160 = vunpack.i.l.s16 %v907
    %v1161 = vunpack.i.h.s16 %v907
    %v1162 = vunpack.i.l.s16 %v909
    %v1163 = vunpack.i.h.s16 %v909
    %v1164 = vunpack.i.l.s16 %v892
    %v1165 = vunpack.i.h.s16 %v892
    %v1166 = vunpack.i.l.s16 %v906
    %v1167 = vunpack.i.h.s16 %v906
    %v1168 = vunpack.i.l.s16 %v908
    %v1169 = vunpack.i.h.s16 %v908
    %v1170 = vunpack.i.l.s16 %v910
    %v1171 = vunpack.i.l.s16 %v935
    %v1172 = vunpack.i.h.s16 %v935
    %v1173 = vunpack.i.l.s16 %v949
    %v1174 = vunpack.i.h.s16 %v949
    %v1175 = vunpack.i.l.s16 %v957
    %v1176 = vunpack.i.h.s16 %v957
    %v1177 = vunpack.i.l.s16 %v959
    %v1178 = vunpack.i.h.s16 %v959
    %v1179 = vunpack.i.l.s16 %v942
    %v1180 = vunpack.i.h.s16 %v942
    %v1181 = vunpack.i.l.s16 %v956
    %v1182 = vunpack.i.h.s16 %v956
    %v1183 = vunpack.i.l.s16 %v958
    %v1184 = vunpack.i.h.s16 %v958
    %v1185 = vunpack.i.l.s16 %v960
    %v1186 = vunpack.i.l.s16 %v985
    %v1187 = vunpack.i.h.s16 %v985
    %v1188 = vunpack.i.l.s16 %v999
    %v1189 = vunpack.i.h.s16 %v999
    %v1190 = vunpack.i.l.s16 %v1007
    %v1191 = vunpack.i.h.s16 %v1007
    %v1192 = vunpack.i.l.s16 %v1009
    %v1193 = vunpack.i.h.s16 %v1009
    %v1194 = vunpack.i.l.s16 %v992
    %v1195 = vunpack.i.h.s16 %v992
    %v1196 = vunpack.i.l.s16 %v1006
    %v1197 = vunpack.i.h.s16 %v1006
    %v1198 = vunpack.i.l.s16 %v1008
    %v1199 = vunpack.i.h.s16 %v1008
    %v1200 = vunpack.i.l.s16 %v1010
    %v1201 = vunpack.i.l.s16 %v1035
    %v1202 = vunpack.i.h.s16 %v1035
    %v1203 = vunpack.i.l.s16 %v1049
    %v1204 = vunpack.i.h.s16 %v1049
    %v1205 = vunpack.i.l.s16 %v1057
    %v1206 = vunpack.i.h.s16 %v1057
    %v1207 = vunpack.i.l.s16 %v1059
    %v1208 = vunpack.i.h.s16 %v1059
    %v1209 = vunpack.i.l.s16 %v1042
    %v1210 = vunpack.i.h.s16 %v1042
    %v1211 = vunpack.i.l.s16 %v1056
    %v1212 = vunpack.i.h.s16 %v1056
    %v1213 = vunpack.i.l.s16 %v1058
    %v1214 = vunpack.i.h.s16 %v1058
    %v1215 = vunpack.i.l.s16 %v1060
    %v1216 = vunpack.i.l.s16 %v1085
    %v1217 = vunpack.i.h.s16 %v1085
    %v1218 = vunpack.i.l.s16 %v1099
    %v1219 = vunpack.i.h.s16 %v1099
    %v1220 = vunpack.i.l.s16 %v1107
    %v1221 = vunpack.i.h.s16 %v1107
    %v1222 = vunpack.i.l.s16 %v1109
    %v1223 = vunpack.i.h.s16 %v1109
    %v1224 = vunpack.i.l.s16 %v1092
    %v1225 = vunpack.i.h.s16 %v1092
    %v1226 = vunpack.i.l.s16 %v1106
    %v1227 = vunpack.i.h.s16 %v1106
    %v1228 = vunpack.i.l.s16 %v1108
    %v1229 = vunpack.i.h.s16 %v1108
    %v1230 = vunpack.i.l.s16 %v1110
    %v1233 = vcombine.high %v693, %v693
    %v1235 = vunpack.c.l.s4 1966171168
    %v1236 = vunpack.c.0.s8 %v1235
    %v1237 = vlaneseq
    %v1238 = vshrl.u32 %v1237, 7
    %v1239 = vsub.s32 %v1236, %v1238
    %v1240 = vrot.slane %v693, %v1239
    %v1242 = vunpack.c.l.s4 1966171168
    %v1243 = vunpack.c.0.s8 %v1242
    %v1244 = vlaneseq
    %v1245 = vshrl.u32 %v1244, 7
    %v1246 = vsub.s32 %v1243, %v1245
    %v1247 = vrot.slane %v1233, %v1246
    %v1248 = vcombine.high %v1240, %v1240
    %v1249 = vcombine.high %v1247, %v1247
    %v1251 = vunpack.c.l.s4 1966171168
    %v1252 = vunpack.c.0.s8 %v1251
    %v1253 = vlaneseq
    %v1254 = vshrl.u32 %v1253, 7
    %v1255 = vsub.s32 %v1252, %v1254
    %v1256 = vrot.slane %v1240, %v1255
    %v1258 = vunpack.c.l.s4 1966171168
    %v1259 = vunpack.c.0.s8 %v1258
    %v1260 = vlaneseq
    %v1261 = vshrl.u32 %v1260, 7
    %v1262 = vsub.s32 %v1259, %v1261
    %v1263 = vrot.slane %v1247, %v1262
    %v1265 = vunpack.c.l.s4 1966171168
    %v1266 = vunpack.c.0.s8 %v1265
    %v1267 = vlaneseq
    %v1268 = vshrl.u32 %v1267, 7
    %v1269 = vsub.s32 %v1266, %v1268
    %v1270 = vrot.slane %v1248, %v1269
    %v1272 = vunpack.c.l.s4 1966171168
    %v1273 = vunpack.c.0.s8 %v1272
    %v1274 = vlaneseq
    %v1275 = vshrl.u32 %v1274, 7
    %v1276 = vsub.s32 %v1273, %v1275
    %v1277 = vrot.slane %v1249, %v1276
    %v1278 = vcombine.high %v1256, %v1256
    %v1279 = vcombine.high %v1263, %v1263
    %v1280 = vcombine.high %v1270, %v1270
    %v1281 = vcombine.high %v1277, %v1277
    %v1282 = vcombine.high %v694, %v694
    %v1284 = vunpack.c.l.s4 1966171168
    %v1285 = vunpack.c.0.s8 %v1284
    %v1286 = vlaneseq
    %v1287 = vshrl.u32 %v1286, 7
    %v1288 = vsub.s32 %v1285, %v1287
    %v1289 = vrot.slane %v694, %v1288
    %v1291 = vunpack.c.l.s4 1966171168
    %v1292 = vunpack.c.0.s8 %v1291
    %v1293 = vlaneseq
    %v1294 = vshrl.u32 %v1293, 7
    %v1295 = vsub.s32 %v1292, %v1294
    %v1296 = vrot.slane %v1282, %v1295
    %v1297 = vcombine.high %v1289, %v1289
    %v1298 = vcombine.high %v1296, %v1296
    %v1300 = vunpack.c.l.s4 1966171168
    %v1301 = vunpack.c.0.s8 %v1300
    %v1302 = vlaneseq
    %v1303 = vshrl.u32 %v1302, 7
    %v1304 = vsub.s32 %v1301, %v1303
    %v1305 = vrot.slane %v1289, %v1304
    %v1307 = vunpack.c.l.s4 1966171168
    %v1308 = vunpack.c.0.s8 %v1307
    %v1309 = vlaneseq
    %v1310 = vshrl.u32 %v1309, 7
    %v1311 = vsub.s32 %v1308, %v1310
    %v1312 = vrot.slane %v1296, %v1311
    %v1314 = vunpack.c.l.s4 1966171168
    %v1315 = vunpack.c.0.s8 %v1314
    %v1316 = vlaneseq
    %v1317 = vshrl.u32 %v1316, 7
    %v1318 = vsub.s32 %v1315, %v1317
    %v1319 = vrot.slane %v1297, %v1318
    %v1321 = vunpack.c.l.s4 1966171168
    %v1322 = vunpack.c.0.s8 %v1321
    %v1323 = vlaneseq
    %v1324 = vshrl.u32 %v1323, 7
    %v1325 = vsub.s32 %v1322, %v1324
    %v1326 = vrot.slane %v1298, %v1325
    %v1327 = vcombine.high %v1305, %v1305
    %v1328 = vcombine.high %v1312, %v1312
    %v1329 = vcombine.high %v1319, %v1319
    %v1330 = vpack.i.b16 %v1112, %v1111
    %v1331 = vpack.i.b16 %v1114, %v1113
    %v1332 = vpack.i.b16 %v1116, %v1115
    %v1333 = vpack.i.b16 %v1118, %v1117
    %v1334 = vpack.i.b16 %v1120, %v1119
    %v1335 = vpack.i.b16 %v1122, %v1121
    %v1336 = vpack.i.b16 %v1124, %v1123
    %v1337 = vpack.i.b16 %v1126, %v1125
    %v1338 = vpack.i.b16 %v1128, %v1127
    %v1339 = vpack.i.b16 %v1130, %v1129
    %v1340 = vpack.i.b16 %v1132, %v1131
    %v1341 = vpack.i.b16 %v1134, %v1133
    %v1342 = vpack.i.b16 %v1136, %v1135
    %v1343 = vpack.i.b16 %v1138, %v1137
    %v1344 = vpack.i.b16 %v1140, %v1139
    %v1345 = vpack.i.b16 %v1142, %v1141
    %v1346 = vpack.i.b16 %v1144, %v1143
    %v1347 = vpack.i.b16 %v1146, %v1145
    %v1348 = vpack.i.b16 %v1148, %v1147
    %v1349 = vpack.i.b16 %v1150, %v1149
    %v1350 = vpack.i.b16 %v1152, %v1151
    %v1351 = vpack.i.b16 %v1154, %v1153
    %v1352 = vpack.i.b16 %v1156, %v1155
    %v1353 = vpack.i.b16 %v1158, %v1157
    %v1354 = vpack.i.b16 %v1160, %v1159
    %v1355 = vpack.i.b16 %v1162, %v1161
    %v1356 = vpack.i.b16 %v1164, %v1163
    %v1357 = vpack.i.b16 %v1166, %v1165
    %v1358 = vpack.i.b16 %v1168, %v1167
    %v1359 = vpack.i.b16 %v1170, %v1169
    %v1360 = vpack.i.b16 %v1172, %v1171
    %v1361 = vpack.i.b16 %v1174, %v1173
    %v1362 = vpack.i.b16 %v1176, %v1175
    %v1363 = vpack.i.b16 %v1178, %v1177
    %v1364 = vpack.i.b16 %v1180, %v1179
    %v1365 = vpack.i.b16 %v1182, %v1181
    %v1366 = vpack.i.b16 %v1184, %v1183
    %v1367 = vpack.i.b16 %v1186, %v1185
    %v1368 = vpack.i.b16 %v1188, %v1187
    %v1369 = vpack.i.b16 %v1190, %v1189
    %v1370 = vpack.i.b16 %v1192, %v1191
    %v1371 = vpack.i.b16 %v1194, %v1193
    %v1372 = vpack.i.b16 %v1196, %v1195
    %v1373 = vpack.i.b16 %v1198, %v1197
    %v1374 = vpack.i.b16 %v1200, %v1199
    %v1375 = vpack.i.b16 %v1202, %v1201
    %v1376 = vpack.i.b16 %v1204, %v1203
    %v1377 = vpack.i.b16 %v1206, %v1205
    %v1378 = vpack.i.b16 %v1208, %v1207
    %v1379 = vpack.i.b16 %v1210, %v1209
    %v1380 = vpack.i.b16 %v1212, %v1211
    %v1381 = vpack.i.b16 %v1214, %v1213
    %v1382 = vpack.i.b16 %v1216, %v1215
    %v1383 = vpack.i.b16 %v1218, %v1217
    %v1384 = vpack.i.b16 %v1220, %v1219
    %v1385 = vpack.i.b16 %v1222, %v1221
    %v1386 = vpack.i.b16 %v1224, %v1223
    %v1387 = vpack.i.b16 %v1226, %v1225
    %v1388 = vpack.i.b16 %v1228, %v1227
    %v1389 = vpack.i.b16 %v1230, %v1229
    %v1390 = vcombine.low %v1330, %v1331
    %v1391 = vcombine.low %v1332, %v1333
    %v1392 = vcombine.low %v1334, %v1335
    %v1393 = vcombine.low %v1336, %v1337
    %v1395 = vunpack.c.l.s4 1966171168
    %v1396 = vunpack.c.0.s8 %v1395
    %v1397 = vlaneseq
    %v1398 = vshrl.u32 %v1397, 7
    %v1399 = vsub.s32 %v1396, %v1398
    %v1400 = vrot.slane %v1390, %v1399
    %v1402 = vunpack.c.l.s4 1966171168
    %v1403 = vunpack.c.0.s8 %v1402
    %v1404 = vlaneseq
    %v1405 = vshrl.u32 %v1404, 7
    %v1406 = vsub.s32 %v1403, %v1405
    %v1407 = vrot.slane %v1391, %v1406
    %v1409 = vunpack.c.l.s4 1966171168
    %v1410 = vunpack.c.0.s8 %v1409
    %v1411 = vlaneseq
    %v1412 = vshrl.u32 %v1411, 7
    %v1413 = vsub.s32 %v1410, %v1412
    %v1414 = vrot.slane %v1392, %v1413
    %v1416 = vunpack.c.l.s4 1966171168
    %v1417 = vunpack.c.0.s8 %v1416
    %v1418 = vlaneseq
    %v1419 = vshrl.u32 %v1418, 7
    %v1420 = vsub.s32 %v1417, %v1419
    %v1421 = vrot.slane %v1393, %v1420
    %v1422 = vcombine.low %v1400, %v1407
    %v1423 = vcombine.high %v1400, %v1407
    %v1424 = vcombine.low %v1414, %v1421
    %v1425 = vcombine.high %v1414, %v1421
    %v1427 = vunpack.c.l.s4 1966171168
    %v1428 = vunpack.c.0.s8 %v1427
    %v1429 = vlaneseq
    %v1430 = vshrl.u32 %v1429, 7
    %v1431 = vsub.s32 %v1428, %v1430
    %v1432 = vrot.slane %v1422, %v1431
    %v1434 = vunpack.c.l.s4 1966171168
    %v1435 = vunpack.c.0.s8 %v1434
    %v1436 = vlaneseq
    %v1437 = vshrl.u32 %v1436, 7
    %v1438 = vsub.s32 %v1435, %v1437
    %v1439 = vrot.slane %v1423, %v1438
    %v1441 = vunpack.c.l.s4 1966171168
    %v1442 = vunpack.c.0.s8 %v1441
    %v1443 = vlaneseq
    %v1444 = vshrl.u32 %v1443, 7
    %v1445 = vsub.s32 %v1442, %v1444
    %v1446 = vrot.slane %v1424, %v1445
    %v1448 = vunpack.c.l.s4 1966171168
    %v1449 = vunpack.c.0.s8 %v1448
    %v1450 = vlaneseq
    %v1451 = vshrl.u32 %v1450, 7
    %v1452 = vsub.s32 %v1449, %v1451
    %v1453 = vrot.slane %v1425, %v1452
    %v1454 = vcombine.low %v1432, %v1446
    %v1455 = vcombine.low %v1439, %v1453
    %v1456 = vcombine.low %v1338, %v1339
    %v1457 = vcombine.low %v1340, %v1341
    %v1458 = vcombine.low %v1342, %v1343
    %v1459 = vcombine.low %v1344, %v1345
    %v1461 = vunpack.c.l.s4 1966171168
    %v1462 = vunpack.c.0.s8 %v1461
    %v1463 = vlaneseq
    %v1464 = vshrl.u32 %v1463, 7
    %v1465 = vsub.s32 %v1462, %v1464
    %v1466 = vrot.slane %v1456, %v1465
    %v1468 = vunpack.c.l.s4 1966171168
    %v1469 = vunpack.c.0.s8 %v1468
    %v1470 = vlaneseq
    %v1471 = vshrl.u32 %v1470, 7
    %v1472 = vsub.s32 %v1469, %v1471
    %v1473 = vrot.slane %v1457, %v1472
    %v1475 = vunpack.c.l.s4 1966171168
    %v1476 = vunpack.c.0.s8 %v1475
    %v1477 = vlaneseq
    %v1478 = vshrl.u32 %v1477, 7
    %v1479 = vsub.s32 %v1476, %v1478
    %v1480 = vrot.slane %v1458, %v1479
    %v1482 = vunpack.c.l.s4 1966171168
    %v1483 = vunpack.c.0.s8 %v1482
    %v1484 = vlaneseq
    %v1485 = vshrl.u32 %v1484, 7
    %v1486 = vsub.s32 %v1483, %v1485
    %v1487 = vrot.slane %v1459, %v1486
    %v1488 = vcombine.low %v1466, %v1473
    %v1489 = vcombine.high %v1466, %v1473
    %v1490 = vcombine.low %v1480, %v1487
    %v1491 = vcombine.high %v1480, %v1487
    %v1493 = vunpack.c.l.s4 1966171168
    %v1494 = vunpack.c.0.s8 %v1493
    %v1495 = vlaneseq
    %v1496 = vshrl.u32 %v1495, 7
    %v1497 = vsub.s32 %v1494, %v1496
    %v1498 = vrot.slane %v1488, %v1497
    %v1500 = vunpack.c.l.s4 1966171168
    %v1501 = vunpack.c.0.s8 %v1500
    %v1502 = vlaneseq
    %v1503 = vshrl.u32 %v1502, 7
    %v1504 = vsub.s32 %v1501, %v1503
    %v1505 = vrot.slane %v1489, %v1504
    %v1507 = vunpack.c.l.s4 1966171168
    %v1508 = vunpack.c.0.s8 %v1507
    %v1509 = vlaneseq
    %v1510 = vshrl.u32 %v1509, 7
    %v1511 = vsub.s32 %v1508, %v1510
    %v1512 = vrot.slane %v1490, %v1511
    %v1514 = vunpack.c.l.s4 1966171168
    %v1515 = vunpack.c.0.s8 %v1514
    %v1516 = vlaneseq
    %v1517 = vshrl.u32 %v1516, 7
    %v1518 = vsub.s32 %v1515, %v1517
    %v1519 = vrot.slane %v1491, %v1518
    %v1520 = vcombine.low %v1498, %v1512
    %v1521 = vcombine.low %v1505, %v1519
    %v1522 = vcombine.low %v1346, %v1347
    %v1523 = vcombine.low %v1348, %v1349
    %v1524 = vcombine.low %v1350, %v1351
    %v1525 = vcombine.low %v1352, %v1353
    %v1527 = vunpack.c.l.s4 1966171168
    %v1528 = vunpack.c.0.s8 %v1527
    %v1529 = vlaneseq
    %v1530 = vshrl.u32 %v1529, 7
    %v1531 = vsub.s32 %v1528, %v1530
    %v1532 = vrot.slane %v1522, %v1531
    %v1534 = vunpack.c.l.s4 1966171168
    %v1535 = vunpack.c.0.s8 %v1534
    %v1536 = vlaneseq
    %v1537 = vshrl.u32 %v1536, 7
    %v1538 = vsub.s32 %v1535, %v1537
    %v1539 = vrot.slane %v1523, %v1538
    %v1541 = vunpack.c.l.s4 1966171168
    %v1542 = vunpack.c.0.s8 %v1541
    %v1543 = vlaneseq
    %v1544 = vshrl.u32 %v1543, 7
    %v1545 = vsub.s32 %v1542, %v1544
    %v1546 = vrot.slane %v1524, %v1545
    %v1548 = vunpack.c.l.s4 1966171168
    %v1549 = vunpack.c.0.s8 %v1548
    %v1550 = vlaneseq
    %v1551 = vshrl.u32 %v1550, 7
    %v1552 = vsub.s32 %v1549, %v1551
    %v1553 = vrot.slane %v1525, %v1552
    %v1554 = vcombine.low %v1532, %v1539
    %v1555 = vcombine.high %v1532, %v1539
    %v1556 = vcombine.low %v1546, %v1553
    %v1557 = vcombine.high %v1546, %v1553
    %v1559 = vunpack.c.l.s4 1966171168
    %v1560 = vunpack.c.0.s8 %v1559
    %v1561 = vlaneseq
    %v1562 = vshrl.u32 %v1561, 7
    %v1563 = vsub.s32 %v1560, %v1562
    %v1564 = vrot.slane %v1554, %v1563
    %v1566 = vunpack.c.l.s4 1966171168
    %v1567 = vunpack.c.0.s8 %v1566
    %v1568 = vlaneseq
    %v1569 = vshrl.u32 %v1568, 7
    %v1570 = vsub.s32 %v1567, %v1569
    %v1571 = vrot.slane %v1555, %v1570
    %v1573 = vunpack.c.l.s4 1966171168
    %v1574 = vunpack.c.0.s8 %v1573
    %v1575 = vlaneseq
    %v1576 = vshrl.u32 %v1575, 7
    %v1577 = vsub.s32 %v1574, %v1576
    %v1578 = vrot.slane %v1556, %v1577
    %v1580 = vunpack.c.l.s4 1966171168
    %v1581 = vunpack.c.0.s8 %v1580
    %v1582 = vlaneseq
    %v1583 = vshrl.u32 %v1582, 7
    %v1584 = vsub.s32 %v1581, %v1583
    %v1585 = vrot.slane %v1557, %v1584
    %v1586 = vcombine.low %v1564, %v1578
    %v1587 = vcombine.low %v1571, %v1585
    %v1588 = vcombine.low %v1354, %v1355
    %v1589 = vcombine.low %v1356, %v1357
    %v1590 = vcombine.low %v1358, %v1359
    %v1591 = vcombine.low %v1360, %v1361
    %v1593 = vunpack.c.l.s4 1966171168
    %v1594 = vunpack.c.0.s8 %v1593
    %v1595 = vlaneseq
    %v1596 = vshrl.u32 %v1595, 7
    %v1597 = vsub.s32 %v1594, %v1596
    %v1598 = vrot.slane %v1588, %v1597
    %v1600 = vunpack.c.l.s4 1966171168
    %v1601 = vunpack.c.0.s8 %v1600
    %v1602 = vlaneseq
    %v1603 = vshrl.u32 %v1602, 7
    %v1604 = vsub.s32 %v1601, %v1603
    %v1605 = vrot.slane %v1589, %v1604
    %v1607 = vunpack.c.l.s4 1966171168
    %v1608 = vunpack.c.0.s8 %v1607
    %v1609 = vlaneseq
    %v1610 = vshrl.u32 %v1609, 7
    %v1611 = vsub.s32 %v1608, %v1610
    %v1612 = vrot.slane %v1590, %v1611
    %v1614 = vunpack.c.l.s4 1966171168
    %v1615 = vunpack.c.0.s8 %v1614
    %v1616 = vlaneseq
    %v1617 = vshrl.u32 %v1616, 7
    %v1618 = vsub.s32 %v1615, %v1617
    %v1619 = vrot.slane %v1591, %v1618
    %v1620 = vcombine.low %v1598, %v1605
    %v1621 = vcombine.high %v1598, %v1605
    %v1622 = vcombine.low %v1612, %v1619
    %v1623 = vcombine.high %v1612, %v1619
    %v1625 = vunpack.c.l.s4 1966171168
    %v1626 = vunpack.c.0.s8 %v1625
    %v1627 = vlaneseq
    %v1628 = vshrl.u32 %v1627, 7
    %v1629 = vsub.s32 %v1626, %v1628
    %v1630 = vrot.slane %v1620, %v1629
    %v1632 = vunpack.c.l.s4 1966171168
    %v1633 = vunpack.c.0.s8 %v1632
    %v1634 = vlaneseq
    %v1635 = vshrl.u32 %v1634, 7
    %v1636 = vsub.s32 %v1633, %v1635
    %v1637 = vrot.slane %v1621, %v1636
    %v1639 = vunpack.c.l.s4 1966171168
    %v1640 = vunpack.c.0.s8 %v1639
    %v1641 = vlaneseq
    %v1642 = vshrl.u32 %v1641, 7
    %v1643 = vsub.s32 %v1640, %v1642
    %v1644 = vrot.slane %v1622, %v1643
    %v1646 = vunpack.c.l.s4 1966171168
    %v1647 = vunpack.c.0.s8 %v1646
    %v1648 = vlaneseq
    %v1649 = vshrl.u32 %v1648, 7
    %v1650 = vsub.s32 %v1647, %v1649
    %v1651 = vrot.slane %v1623, %v1650
    %v1652 = vcombine.low %v1630, %v1644
    %v1653 = vcombine.low %v1637, %v1651
    %v1654 = vcombine.low %v1362, %v1363
    %v1655 = vcombine.low %v1364, %v1365
    %v1656 = vcombine.low %v1366, %v1367
    %v1657 = vcombine.low %v1368, %v1369
    %v1659 = vunpack.c.l.s4 1966171168
    %v1660 = vunpack.c.0.s8 %v1659
    %v1661 = vlaneseq
    %v1662 = vshrl.u32 %v1661, 7
    %v1663 = vsub.s32 %v1660, %v1662
    %v1664 = vrot.slane %v1654, %v1663
    %v1666 = vunpack.c.l.s4 1966171168
    %v1667 = vunpack.c.0.s8 %v1666
    %v1668 = vlaneseq
    %v1669 = vshrl.u32 %v1668, 7
    %v1670 = vsub.s32 %v1667, %v1669
    %v1671 = vrot.slane %v1655, %v1670
    %v1673 = vunpack.c.l.s4 1966171168
    %v1674 = vunpack.c.0.s8 %v1673
    %v1675 = vlaneseq
    %v1676 = vshrl.u32 %v1675, 7
    %v1677 = vsub.s32 %v1674, %v1676
    %v1678 = vrot.slane %v1656, %v1677
    %v1680 = vunpack.c.l.s4 1966171168
    %v1681 = vunpack.c.0.s8 %v1680
    %v1682 = vlaneseq
    %v1683 = vshrl.u32 %v1682, 7
    %v1684 = vsub.s32 %v1681, %v1683
    %v1685 = vrot.slane %v1657, %v1684
    %v1686 = vcombine.low %v1664, %v1671
    %v1687 = vcombine.high %v1664, %v1671
    %v1688 = vcombine.low %v1678, %v1685
    %v1689 = vcombine.high %v1678, %v1685
    %v1691 = vunpack.c.l.s4 1966171168
    %v1692 = vunpack.c.0.s8 %v1691
    %v1693 = vlaneseq
    %v1694 = vshrl.u32 %v1693, 7
    %v1695 = vsub.s32 %v1692, %v1694
    %v1696 = vrot.slane %v1686, %v1695
    %v1698 = vunpack.c.l.s4 1966171168
    %v1699 = vunpack.c.0.s8 %v1698
    %v1700 = vlaneseq
    %v1701 = vshrl.u32 %v1700, 7
    %v1702 = vsub.s32 %v1699, %v1701
    %v1703 = vrot.slane %v1687, %v1702
    %v1705 = vunpack.c.l.s4 1966171168
    %v1706 = vunpack.c.0.s8 %v1705
    %v1707 = vlaneseq
    %v1708 = vshrl.u32 %v1707, 7
    %v1709 = vsub.s32 %v1706, %v1708
    %v1710 = vrot.slane %v1688, %v1709
    %v1712 = vunpack.c.l.s4 1966171168
    %v1713 = vunpack.c.0.s8 %v1712
    %v1714 = vlaneseq
    %v1715 = vshrl.u32 %v1714, 7
    %v1716 = vsub.s32 %v1713, %v1715
    %v1717 = vrot.slane %v1689, %v1716
    %v1718 = vcombine.low %v1696, %v1710
    %v1719 = vcombine.low %v1703, %v1717
    %v1720 = vcombine.low %v1370, %v1371
    %v1721 = vcombine.low %v1372, %v1373
    %v1722 = vcombine.low %v1374, %v1375
    %v1723 = vcombine.low %v1376, %v1377
    %v1725 = vunpack.c.l.s4 1966171168
    %v1726 = vunpack.c.0.s8 %v1725
    %v1727 = vlaneseq
    %v1728 = vshrl.u32 %v1727, 7
    %v1729 = vsub.s32 %v1726, %v1728
    %v1730 = vrot.slane %v1720, %v1729
    %v1732 = vunpack.c.l.s4 1966171168
    %v1733 = vunpack.c.0.s8 %v1732
    %v1734 = vlaneseq
    %v1735 = vshrl.u32 %v1734, 7
    %v1736 = vsub.s32 %v1733, %v1735
    %v1737 = vrot.slane %v1721, %v1736
    %v1739 = vunpack.c.l.s4 1966171168
    %v1740 = vunpack.c.0.s8 %v1739
    %v1741 = vlaneseq
    %v1742 = vshrl.u32 %v1741, 7
    %v1743 = vsub.s32 %v1740, %v1742
    %v1744 = vrot.slane %v1722, %v1743
    %v1746 = vunpack.c.l.s4 1966171168
    %v1747 = vunpack.c.0.s8 %v1746
    %v1748 = vlaneseq
    %v1749 = vshrl.u32 %v1748, 7
    %v1750 = vsub.s32 %v1747, %v1749
    %v1751 = vrot.slane %v1723, %v1750
    %v1752 = vcombine.low %v1730, %v1737
    %v1753 = vcombine.high %v1730, %v1737
    %v1754 = vcombine.low %v1744, %v1751
    %v1755 = vcombine.high %v1744, %v1751
    %v1757 = vunpack.c.l.s4 1966171168
    %v1758 = vunpack.c.0.s8 %v1757
    %v1759 = vlaneseq
    %v1760 = vshrl.u32 %v1759, 7
    %v1761 = vsub.s32 %v1758, %v1760
    %v1762 = vrot.slane %v1752, %v1761
    %v1764 = vunpack.c.l.s4 1966171168
    %v1765 = vunpack.c.0.s8 %v1764
    %v1766 = vlaneseq
    %v1767 = vshrl.u32 %v1766, 7
    %v1768 = vsub.s32 %v1765, %v1767
    %v1769 = vrot.slane %v1753, %v1768
    %v1771 = vunpack.c.l.s4 1966171168
    %v1772 = vunpack.c.0.s8 %v1771
    %v1773 = vlaneseq
    %v1774 = vshrl.u32 %v1773, 7
    %v1775 = vsub.s32 %v1772, %v1774
    %v1776 = vrot.slane %v1754, %v1775
    %v1778 = vunpack.c.l.s4 1966171168
    %v1779 = vunpack.c.0.s8 %v1778
    %v1780 = vlaneseq
    %v1781 = vshrl.u32 %v1780, 7
    %v1782 = vsub.s32 %v1779, %v1781
    %v1783 = vrot.slane %v1755, %v1782
    %v1784 = vcombine.low %v1762, %v1776
    %v1785 = vcombine.low %v1769, %v1783
    %v1786 = vcombine.low %v1378, %v1379
    %v1787 = vcombine.low %v1380, %v1381
    %v1788 = vcombine.low %v1382, %v1383
    %v1789 = vcombine.low %v1384, %v1385
    %v1791 = vunpack.c.l.s4 1966171168
    %v1792 = vunpack.c.0.s8 %v1791
    %v1793 = vlaneseq
    %v1794 = vshrl.u32 %v1793, 7
    %v1795 = vsub.s32 %v1792, %v1794
    %v1796 = vrot.slane %v1786, %v1795
    %v1798 = vunpack.c.l.s4 1966171168
    %v1799 = vunpack.c.0.s8 %v1798
    %v1800 = vlaneseq
    %v1801 = vshrl.u32 %v1800, 7
    %v1802 = vsub.s32 %v1799, %v1801
    %v1803 = vrot.slane %v1787, %v1802
    %v1805 = vunpack.c.l.s4 1966171168
    %v1806 = vunpack.c.0.s8 %v1805
    %v1807 = vlaneseq
    %v1808 = vshrl.u32 %v1807, 7
    %v1809 = vsub.s32 %v1806, %v1808
    %v1810 = vrot.slane %v1788, %v1809
    %v1812 = vunpack.c.l.s4 1966171168
    %v1813 = vunpack.c.0.s8 %v1812
    %v1814 = vlaneseq
    %v1815 = vshrl.u32 %v1814, 7
    %v1816 = vsub.s32 %v1813, %v1815
    %v1817 = vrot.slane %v1789, %v1816
    %v1818 = vcombine.low %v1796, %v1803
    %v1819 = vcombine.high %v1796, %v1803
    %v1820 = vcombine.low %v1810, %v1817
    %v1821 = vcombine.high %v1810, %v1817
    %v1823 = vunpack.c.l.s4 1966171168
    %v1824 = vunpack.c.0.s8 %v1823
    %v1825 = vlaneseq
    %v1826 = vshrl.u32 %v1825, 7
    %v1827 = vsub.s32 %v1824, %v1826
    %v1828 = vrot.slane %v1818, %v1827
    %v1830 = vunpack.c.l.s4 1966171168
    %v1831 = vunpack.c.0.s8 %v1830
    %v1832 = vlaneseq
    %v1833 = vshrl.u32 %v1832, 7
    %v1834 = vsub.s32 %v1831, %v1833
    %v1835 = vrot.slane %v1819, %v1834
    %v1837 = vunpack.c.l.s4 1966171168
    %v1838 = vunpack.c.0.s8 %v1837
    %v1839 = vlaneseq
    %v1840 = vshrl.u32 %v1839, 7
    %v1841 = vsub.s32 %v1838, %v1840
    %v1842 = vrot.slane %v1820, %v1841
    %v1844 = vunpack.c.l.s4 1966171168
    %v1845 = vunpack.c.0.s8 %v1844
    %v1846 = vlaneseq
    %v1847 = vshrl.u32 %v1846, 7
    %v1848 = vsub.s32 %v1845, %v1847
    %v1849 = vrot.slane %v1821, %v1848
    %v1850 = vcombine.low %v1828, %v1842
    %v1851 = vcombine.low %v1835, %v1849
    %v1852 = vcombine.low %v1386, %v1387
    %v1853 = vcombine.low %v1388, %v1389
    %v1855 = vunpack.c.l.s4 1966171168
    %v1856 = vunpack.c.0.s8 %v1855
    %v1857 = vlaneseq
    %v1858 = vshrl.u32 %v1857, 7
    %v1859 = vsub.s32 %v1856, %v1858
    %v1860 = vrot.slane %v1852, %v1859
    %v1862 = vunpack.c.l.s4 1966171168
    %v1863 = vunpack.c.0.s8 %v1862
    %v1864 = vlaneseq
    %v1865 = vshrl.u32 %v1864, 7
    %v1866 = vsub.s32 %v1863, %v1865
    %v1867 = vrot.slane %v1853, %v1866
    %v1868 = vcombine.low %v1860, %v1867
    %v1869 = vcombine.high %v1860, %v1867
    %v1871 = vunpack.c.l.s4 1966171168
    %v1872 = vunpack.c.0.s8 %v1871
    %v1873 = vlaneseq
    %v1874 = vshrl.u32 %v1873, 7
    %v1875 = vsub.s32 %v1872, %v1874
    %v1876 = vrot.slane %v1868, %v1875
    %v1878 = vunpack.c.l.s4 1966171168
    %v1879 = vunpack.c.0.s8 %v1878
    %v1880 = vlaneseq
    %v1881 = vshrl.u32 %v1880, 7
    %v1882 = vsub.s32 %v1879, %v1881
    %v1883 = vrot.slane %v1869, %v1882
    %v1932 = vunpack.c.l.b16 %v661
    %v1933 = vunpack.c.l.b16 %v662
    %v1934 = vunpack.c.l.b16 %v663
    %v1935 = vunpack.c.l.b16 %v664
    %v1936 = vunpack.c.l.b16 %v665
    %v1937 = vunpack.c.l.b16 %v666
    %v1938 = vunpack.c.l.b16 %v667
    %v1939 = vunpack.c.l.b16 %v668
    %v1940 = vunpack.c.l.b16 %v669
    %v1941 = vunpack.c.l.b16 %v670
    %v1942 = vunpack.c.l.b16 %v671
    %v1943 = vunpack.c.l.b16 %v672
    %v1944 = vunpack.c.l.b16 %v673
    %v1945 = vunpack.c.l.b16 %v674
    %v1946 = vunpack.c.l.b16 %v675
    %v1947 = vunpack.c.l.b16 %v676
    %v1948 = vunpack.c.l.b16 %v677
    %v1949 = vunpack.c.l.b16 %v678
    %v1950 = vunpack.c.l.b16 %v679
    %v1951 = vunpack.c.l.b16 %v680
    %v1952 = vunpack.c.l.b16 %v681
    %v1953 = vunpack.c.l.b16 %v682
    %v1954 = vunpack.c.l.b16 %v683
    %v1955 = vunpack.c.l.b16 %v684
    %v1956 = vunpack.c.l.b16 %v685
    %v1957 = vunpack.c.l.b16 %v686
    %v1958 = vunpack.c.l.b16 %v687
    %v1959 = vunpack.c.l.b16 %v688
    %v1960 = vunpack.c.l.b16 %v689
    %v1961 = vunpack.c.l.b16 %v690
    %v1962 = vunpack.c.l.b16 %v691
    %v1963 = vunpack.c.l.b16 %v692
    %v1964 = vpack.c.b16 %v1933, %v1932
    %v1965 = vpack.c.b16 %v1935, %v1934
    %v1966 = vpack.c.b16 %v1937, %v1936
    %v1967 = vpack.c.b16 %v1939, %v1938
    %v1968 = vpack.c.b16 %v1941, %v1940
    %v1969 = vpack.c.b16 %v1943, %v1942
    %v1970 = vpack.c.b16 %v1945, %v1944
    %v1971 = vpack.c.b16 %v1947, %v1946
    %v1972 = vpack.c.b16 %v1949, %v1948
    %v1973 = vpack.c.b16 %v1951, %v1950
    %v1974 = vpack.c.b16 %v1953, %v1952
    %v1975 = vpack.c.b16 %v1955, %v1954
    %v1976 = vpack.c.b16 %v1957, %v1956
    %v1977 = vpack.c.b16 %v1959, %v1958
    %v1978 = vpack.c.b16 %v1961, %v1960
    %v1979 = vpack.c.b16 %v1963, %v1962
    %v1996 = vcombine.low %v1256, %v1270
    %v1997 = vcombine.low %v1278, %v1280
    %v1998 = vcombine.low %v1263, %v1277
    %v1999 = vcombine.low %v1279, %v1281
    %v2001 = vunpack.c.l.s4 1966171168
    %v2002 = vunpack.c.0.s8 %v2001
    %v2003 = vlaneseq
    %v2004 = vshrl.u32 %v2003, 7
    %v2005 = vsub.s32 %v2002, %v2004
    %v2006 = vrot.slane %v1996, %v2005
    %v2008 = vunpack.c.l.s4 1966171168
    %v2009 = vunpack.c.0.s8 %v2008
    %v2010 = vlaneseq
    %v2011 = vshrl.u32 %v2010, 7
    %v2012 = vsub.s32 %v2009, %v2011
    %v2013 = vrot.slane %v1997, %v2012
    %v2015 = vunpack.c.l.s4 1966171168
    %v2016 = vunpack.c.0.s8 %v2015
    %v2017 = vlaneseq
    %v2018 = vshrl.u32 %v2017, 7
    %v2019 = vsub.s32 %v2016, %v2018
    %v2020 = vrot.slane %v1998, %v2019
    %v2022 = vunpack.c.l.s4 1966171168
    %v2023 = vunpack.c.0.s8 %v2022
    %v2024 = vlaneseq
    %v2025 = vshrl.u32 %v2024, 7
    %v2026 = vsub.s32 %v2023, %v2025
    %v2027 = vrot.slane %v1999, %v2026
    %v2028 = vcombine.low %v2006, %v2013
    %v2029 = vcombine.low %v2020, %v2027
    %v2031 = vunpack.c.l.s4 1966171168
    %v2032 = vunpack.c.0.s8 %v2031
    %v2033 = vlaneseq
    %v2034 = vshrl.u32 %v2033, 7
    %v2035 = vsub.s32 %v2032, %v2034
    %v2036 = vrot.slane %v2028, %v2035
    %v2038 = vunpack.c.l.s4 1966171168
    %v2039 = vunpack.c.0.s8 %v2038
    %v2040 = vlaneseq
    %v2041 = vshrl.u32 %v2040, 7
    %v2042 = vsub.s32 %v2039, %v2041
    %v2043 = vrot.slane %v2029, %v2042
    %v2044 = vcombine.low %v2036, %v2043
    %v2045 = vcombine.low %v1305, %v1319
    %v2046 = vcombine.low %v1327, %v1329
    %v2047 = vcombine.low %v1312, %v1326
    %v2048 = vcombine.low %v1328, %v1256
    %v2050 = vunpack.c.l.s4 1966171168
    %v2051 = vunpack.c.0.s8 %v2050
    %v2052 = vlaneseq
    %v2053 = vshrl.u32 %v2052, 7
    %v2054 = vsub.s32 %v2051, %v2053
    %v2055 = vrot.slane %v2045, %v2054
    %v2057 = vunpack.c.l.s4 1966171168
    %v2058 = vunpack.c.0.s8 %v2057
    %v2059 = vlaneseq
    %v2060 = vshrl.u32 %v2059, 7
    %v2061 = vsub.s32 %v2058, %v2060
    %v2062 = vrot.slane %v2046, %v2061
    %v2064 = vunpack.c.l.s4 1966171168
    %v2065 = vunpack.c.0.s8 %v2064
    %v2066 = vlaneseq
    %v2067 = vshrl.u32 %v2066, 7
    %v2068 = vsub.s32 %v2065, %v2067
    %v2069 = vrot.slane %v2047, %v2068
    %v2071 = vunpack.c.l.s4 1966171168
    %v2072 = vunpack.c.0.s8 %v2071
    %v2073 = vlaneseq
    %v2074 = vshrl.u32 %v2073, 7
    %v2075 = vsub.s32 %v2072, %v2074
    %v2076 = vrot.slane %v2048, %v2075
    %v2077 = vcombine.low %v2055, %v2062
    %v2078 = vcombine.low %v2069, %v2076
    %v2080 = vunpack.c.l.s4 1966171168
    %v2081 = vunpack.c.0.s8 %v2080
    %v2082 = vlaneseq
    %v2083 = vshrl.u32 %v2082, 7
    %v2084 = vsub.s32 %v2081, %v2083
    %v2085 = vrot.slane %v2077, %v2084
    %v2087 = vunpack.c.l.s4 1966171168
    %v2088 = vunpack.c.0.s8 %v2087
    %v2089 = vlaneseq
    %v2090 = vshrl.u32 %v2089, 7
    %v2091 = vsub.s32 %v2088, %v2090
    %v2092 = vrot.slane %v2078, %v2091
    %v2093 = vcombine.low %v2085, %v2092
    %v2094 = vcombine.low %v1270, %v1278
    %v2095 = vcombine.low %v1280, %v1263
    %v2096 = vcombine.low %v1277, %v1279
    %v2097 = vcombine.low %v1281, %v1305
    %v2099 = vunpack.c.l.s4 1966171168
    %v2100 = vunpack.c.0.s8 %v2099
    %v2101 = vlaneseq
    %v2102 = vshrl.u32 %v2101, 7
    %v2103 = vsub.s32 %v2100, %v2102
    %v2104 = vrot.slane %v2094, %v2103
    %v2106 = vunpack.c.l.s4 1966171168
    %v2107 = vunpack.c.0.s8 %v2106
    %v2108 = vlaneseq
    %v2109 = vshrl.u32 %v2108, 7
    %v2110 = vsub.s32 %v2107, %v2109
    %v2111 = vrot.slane %v2095, %v2110
    %v2113 = vunpack.c.l.s4 1966171168
    %v2114 = vunpack.c.0.s8 %v2113
    %v2115 = vlaneseq
    %v2116 = vshrl.u32 %v2115, 7
    %v2117 = vsub.s32 %v2114, %v2116
    %v2118 = vrot.slane %v2096, %v2117
    %v2120 = vunpack.c.l.s4 1966171168
    %v2121 = vunpack.c.0.s8 %v2120
    %v2122 = vlaneseq
    %v2123 = vshrl.u32 %v2122, 7
    %v2124 = vsub.s32 %v2121, %v2123
    %v2125 = vrot.slane %v2097, %v2124
    %v2126 = vcombine.low %v2104, %v2111
    %v2127 = vcombine.low %v2118, %v2125
    %v2129 = vunpack.c.l.s4 1966171168
    %v2130 = vunpack.c.0.s8 %v2129
    %v2131 = vlaneseq
    %v2132 = vshrl.u32 %v2131, 7
    %v2133 = vsub.s32 %v2130, %v2132
    %v2134 = vrot.slane %v2126, %v2133
    %v2136 = vunpack.c.l.s4 1966171168
    %v2137 = vunpack.c.0.s8 %v2136
    %v2138 = vlaneseq
    %v2139 = vshrl.u32 %v2138, 7
    %v2140 = vsub.s32 %v2137, %v2139
    %v2141 = vrot.slane %v2127, %v2140
    %v2142 = vcombine.low %v2134, %v2141
    %v2143 = vcombine.low %v1319, %v1327
    %v2144 = vcombine.low %v1329, %v1312
    %v2145 = vcombine.low %v1326, %v1328
    %v2147 = vunpack.c.l.s4 1966171168
    %v2148 = vunpack.c.0.s8 %v2147
    %v2149 = vlaneseq
    %v2150 = vshrl.u32 %v2149, 7
    %v2151 = vsub.s32 %v2148, %v2150
    %v2152 = vrot.slane %v2143, %v2151
    %v2154 = vunpack.c.l.s4 1966171168
    %v2155 = vunpack.c.0.s8 %v2154
    %v2156 = vlaneseq
    %v2157 = vshrl.u32 %v2156, 7
    %v2158 = vsub.s32 %v2155, %v2157
    %v2159 = vrot.slane %v2144, %v2158
    %v2161 = vunpack.c.l.s4 1966171168
    %v2162 = vunpack.c.0.s8 %v2161
    %v2163 = vlaneseq
    %v2164 = vshrl.u32 %v2163, 7
    %v2165 = vsub.s32 %v2162, %v2164
    %v2166 = vrot.slane %v2145, %v2165
    %v2167 = vcombine.low %v2152, %v2159
    %v2168 = vcombine.low %v2166, %v2006
    %v2170 = vunpack.c.l.s4 1966171168
    %v2171 = vunpack.c.0.s8 %v2170
    %v2172 = vlaneseq
    %v2173 = vshrl.u32 %v2172, 7
    %v2174 = vsub.s32 %v2171, %v2173
    %v2175 = vrot.slane %v2167, %v2174
    %v2177 = vunpack.c.l.s4 1966171168
    %v2178 = vunpack.c.0.s8 %v2177
    %v2179 = vlaneseq
    %v2180 = vshrl.u32 %v2179, 7
    %v2181 = vsub.s32 %v2178, %v2180
    %v2182 = vrot.slane %v2168, %v2181
    %v2183 = vcombine.low %v2175, %v2182
    %v2184 = vcombine.low %v2013, %v2020
    %v2185 = vcombine.low %v2027, %v2055
    %v2187 = vunpack.c.l.s4 1966171168
    %v2188 = vunpack.c.0.s8 %v2187
    %v2189 = vlaneseq
    %v2190 = vshrl.u32 %v2189, 7
    %v2191 = vsub.s32 %v2188, %v2190
    %v2192 = vrot.slane %v2184, %v2191
    %v2194 = vunpack.c.l.s4 1966171168
    %v2195 = vunpack.c.0.s8 %v2194
    %v2196 = vlaneseq
    %v2197 = vshrl.u32 %v2196, 7
    %v2198 = vsub.s32 %v2195, %v2197
    %v2199 = vrot.slane %v2185, %v2198
    %v2200 = vcombine.low %v2192, %v2199
    %v2201 = vcombine.low %v2062, %v2069
    %v2202 = vcombine.low %v2076, %v2104
    %v2204 = vunpack.c.l.s4 1966171168
    %v2205 = vunpack.c.0.s8 %v2204
    %v2206 = vlaneseq
    %v2207 = vshrl.u32 %v2206, 7
    %v2208 = vsub.s32 %v2205, %v2207
    %v2209 = vrot.slane %v2201, %v2208
    %v2211 = vunpack.c.l.s4 1966171168
    %v2212 = vunpack.c.0.s8 %v2211
    %v2213 = vlaneseq
    %v2214 = vshrl.u32 %v2213, 7
    %v2215 = vsub.s32 %v2212, %v2214
    %v2216 = vrot.slane %v2202, %v2215
    %v2217 = vcombine.low %v2209, %v2216
    %v2218 = vcombine.low %v2111, %v2118
    %v2219 = vcombine.low %v2125, %v2152
    %v2221 = vunpack.c.l.s4 1966171168
    %v2222 = vunpack.c.0.s8 %v2221
    %v2223 = vlaneseq
    %v2224 = vshrl.u32 %v2223, 7
    %v2225 = vsub.s32 %v2222, %v2224
    %v2226 = vrot.slane %v2218, %v2225
    %v2228 = vunpack.c.l.s4 1966171168
    %v2229 = vunpack.c.0.s8 %v2228
    %v2230 = vlaneseq
    %v2231 = vshrl.u32 %v2230, 7
    %v2232 = vsub.s32 %v2229, %v2231
    %v2233 = vrot.slane %v2219, %v2232
    %v2234 = vcombine.low %v2226, %v2233
    %v2235 = vcombine.low %v2159, %v2166
    %v2237 = vunpack.c.l.s4 1966171168
    %v2238 = vunpack.c.0.s8 %v2237
    %v2239 = vlaneseq
    %v2240 = vshrl.u32 %v2239, 7
    %v2241 = vsub.s32 %v2238, %v2240
    %v2242 = vrot.slane %v2235, %v2241
    %v2243 = vcombine.low %v2242, %v2036
    %v2244 = vcombine.low %v2043, %v2085
    %v2245 = vcombine.low %v2092, %v2134
    %v2246 = vcombine.low %v2141, %v2175
    %v2247 = vcombine.low %v2182, %v2192
    %v2248 = vcombine.low %v2199, %v2209
    %v2249 = vcombine.low %v2216, %v2226
    %v2250 = vcombine.low %v2233, %v2242
    %2266 = vmatprep.subr.bf16.mxu0 0
    %2267 = vmatpush1.bf16.msra.mxu0 %v1971
    %2268 = vmatprep.subr.bf16.mxu0 0
    %2269 = vmatpush1.bf16.msra.mxu0 %v1970
    %2270 = vmatprep.subr.bf16.mxu0 0
    %2271 = vmatpush1.bf16.msra.mxu0 %v1969
    %2272 = vmatprep.subr.bf16.mxu0 0
    %2273 = vmatpush1.bf16.msra.mxu0 %v1968
    %2274 = vmatprep.subr.bf16.mxu0 0
    %2275 = vmatpush1.bf16.msra.mxu0 %v1967
    %2276 = vmatprep.subr.bf16.mxu0 0
    %2277 = vmatpush1.bf16.msra.mxu0 %v1966
    %2278 = vmatprep.subr.bf16.mxu0 0
    %2279 = vmatpush1.bf16.msra.mxu0 %v1965
    %2280 = vmatprep.subr.bf16.mxu0 0
    %2281 = vmatpush1.bf16.msra.mxu0 %v1964
    %2282 = vmatprep.subr.bf16.mxu0 0
    %2283 = vmatpush2.bf16.msra.mxu0 %v1979
    %2284 = vmatprep.subr.bf16.mxu0 0
    %2285 = vmatpush2.bf16.msra.mxu0 %v1978
    %2286 = vmatprep.subr.bf16.mxu0 0
    %2287 = vmatpush2.bf16.msra.mxu0 %v1977
    %2288 = vmatprep.subr.bf16.mxu0 0
    %2289 = vmatpush2.bf16.msra.mxu0 %v1976
    %2290 = vmatprep.subr.bf16.mxu0 0
    %2291 = vmatpush2.bf16.msra.mxu0 %v1975
    %2292 = vmatprep.subr.bf16.mxu0 0
    %2293 = vmatpush2.bf16.msra.mxu0 %v1974
    %2294 = vmatprep.subr.bf16.mxu0 0
    %2295 = vmatpush2.bf16.msra.mxu0 %v1973
    %2296 = vmatprep.subr.bf16.mxu0 0
    %2297 = vmatpush2.bf16.msra.mxu0 %v1972
    %2298 = vmatprep.mubr.bf16.mxu0 %v1455
    %2299 = vmatmul.mubr.bf16.gmra.mxu0 %v1454
    %v2300 = vpop.f32.mrf.mxu0
    %v2301 = vadd.f32 %v2044, %v2300
    %v2302 = vpop.f32.mrf.mxu0
    %v2303 = vpop.f32.mrf.mxu0
    %v2304 = vadd.f32 %v2093, %v2303
    %v2305 = vpop.f32.mrf.mxu0
    %2306 = vmatprep.mubr.bf16.mxu0 %v1521
    %2307 = vmatmul.mubr.bf16.gmra.mxu0 %v1520
    %v2308 = vpop.f32.mrf.mxu0
    %v2309 = vadd.f32 %v2142, %v2308
    %v2310 = vpop.f32.mrf.mxu0
    %v2311 = vpop.f32.mrf.mxu0
    %v2312 = vadd.f32 %v2183, %v2311
    %v2313 = vpop.f32.mrf.mxu0
    %2314 = vmatprep.mubr.bf16.mxu0 %v1587
    %2315 = vmatmul.mubr.bf16.gmra.mxu0 %v1586
    %v2316 = vpop.f32.mrf.mxu0
    %v2317 = vadd.f32 %v2200, %v2316
    %v2318 = vpop.f32.mrf.mxu0
    %v2319 = vpop.f32.mrf.mxu0
    %v2320 = vadd.f32 %v2217, %v2319
    %v2321 = vpop.f32.mrf.mxu0
    %2322 = vmatprep.mubr.bf16.mxu0 %v1653
    %2323 = vmatmul.mubr.bf16.gmra.mxu0 %v1652
    %v2324 = vpop.f32.mrf.mxu0
    %v2325 = vadd.f32 %v2234, %v2324
    %v2326 = vpop.f32.mrf.mxu0
    %v2327 = vpop.f32.mrf.mxu0
    %v2328 = vadd.f32 %v2243, %v2327
    %v2329 = vpop.f32.mrf.mxu0
    %2330 = vmatprep.mubr.bf16.mxu0 %v1719
    %2331 = vmatmul.mubr.bf16.gmra.mxu0 %v1718
    %v2332 = vpop.f32.mrf.mxu0
    %v2333 = vadd.f32 %v2244, %v2332
    %v2334 = vpop.f32.mrf.mxu0
    %v2335 = vpop.f32.mrf.mxu0
    %v2336 = vadd.f32 %v2245, %v2335
    %v2337 = vpop.f32.mrf.mxu0
    %2338 = vmatprep.mubr.bf16.mxu0 %v1785
    %2339 = vmatmul.mubr.bf16.gmra.mxu0 %v1784
    %v2340 = vpop.f32.mrf.mxu0
    %v2341 = vadd.f32 %v2246, %v2340
    %v2342 = vpop.f32.mrf.mxu0
    %v2343 = vpop.f32.mrf.mxu0
    %v2344 = vadd.f32 %v2247, %v2343
    %v2345 = vpop.f32.mrf.mxu0
    %2346 = vmatprep.mubr.bf16.mxu0 %v1851
    %2347 = vmatmul.mubr.bf16.gmra.mxu0 %v1850
    %v2348 = vpop.f32.mrf.mxu0
    %v2349 = vadd.f32 %v2248, %v2348
    %v2350 = vpop.f32.mrf.mxu0
    %v2351 = vpop.f32.mrf.mxu0
    %v2352 = vadd.f32 %v2249, %v2351
    %v2353 = vpop.f32.mrf.mxu0
    %2354 = vmatprep.mubr.bf16.mxu0 %v1883
    %2355 = vmatmul.mubr.bf16.gmra.mxu0 %v1876
    %v2356 = vpop.f32.mrf.mxu0
    %v2357 = vadd.f32 %v2250, %v2356
    %v2358 = vpop.f32.mrf.mxu0
    %v2359 = vpop.f32.mrf.mxu0
    %v2360 = vpop.f32.mrf.mxu0
    %2361 = vdwg.mxu0
    %v2377 = vcombine.high %v2301, %v2301
    %v2379 = vunpack.c.l.s4 1966171168
    %v2380 = vunpack.c.0.s8 %v2379
    %v2381 = vlaneseq
    %v2382 = vshrl.u32 %v2381, 7
    %v2383 = vsub.s32 %v2380, %v2382
    %v2384 = vrot.slane %v2301, %v2383
    %v2386 = vunpack.c.l.s4 1966171168
    %v2387 = vunpack.c.0.s8 %v2386
    %v2388 = vlaneseq
    %v2389 = vshrl.u32 %v2388, 7
    %v2390 = vsub.s32 %v2387, %v2389
    %v2391 = vrot.slane %v2377, %v2390
    %v2392 = vcombine.high %v2384, %v2384
    %v2393 = vcombine.high %v2391, %v2391
    %v2395 = vunpack.c.l.s4 1966171168
    %v2396 = vunpack.c.0.s8 %v2395
    %v2397 = vlaneseq
    %v2398 = vshrl.u32 %v2397, 7
    %v2399 = vsub.s32 %v2396, %v2398
    %v2400 = vrot.slane %v2384, %v2399
    %v2402 = vunpack.c.l.s4 1966171168
    %v2403 = vunpack.c.0.s8 %v2402
    %v2404 = vlaneseq
    %v2405 = vshrl.u32 %v2404, 7
    %v2406 = vsub.s32 %v2403, %v2405
    %v2407 = vrot.slane %v2391, %v2406
    %v2409 = vunpack.c.l.s4 1966171168
    %v2410 = vunpack.c.0.s8 %v2409
    %v2411 = vlaneseq
    %v2412 = vshrl.u32 %v2411, 7
    %v2413 = vsub.s32 %v2410, %v2412
    %v2414 = vrot.slane %v2392, %v2413
    %v2416 = vunpack.c.l.s4 1966171168
    %v2417 = vunpack.c.0.s8 %v2416
    %v2418 = vlaneseq
    %v2419 = vshrl.u32 %v2418, 7
    %v2420 = vsub.s32 %v2417, %v2419
    %v2421 = vrot.slane %v2393, %v2420
    %v2422 = vcombine.high %v2400, %v2400
    %v2423 = vcombine.high %v2407, %v2407
    %v2424 = vcombine.high %v2414, %v2414
    %v2425 = vcombine.high %v2421, %v2421
    %v2426 = vcombine.high %v2304, %v2304
    %v2428 = vunpack.c.l.s4 1966171168
    %v2429 = vunpack.c.0.s8 %v2428
    %v2430 = vlaneseq
    %v2431 = vshrl.u32 %v2430, 7
    %v2432 = vsub.s32 %v2429, %v2431
    %v2433 = vrot.slane %v2304, %v2432
    %v2435 = vunpack.c.l.s4 1966171168
    %v2436 = vunpack.c.0.s8 %v2435
    %v2437 = vlaneseq
    %v2438 = vshrl.u32 %v2437, 7
    %v2439 = vsub.s32 %v2436, %v2438
    %v2440 = vrot.slane %v2426, %v2439
    %v2441 = vcombine.high %v2433, %v2433
    %v2442 = vcombine.high %v2440, %v2440
    %v2444 = vunpack.c.l.s4 1966171168
    %v2445 = vunpack.c.0.s8 %v2444
    %v2446 = vlaneseq
    %v2447 = vshrl.u32 %v2446, 7
    %v2448 = vsub.s32 %v2445, %v2447
    %v2449 = vrot.slane %v2433, %v2448
    %v2451 = vunpack.c.l.s4 1966171168
    %v2452 = vunpack.c.0.s8 %v2451
    %v2453 = vlaneseq
    %v2454 = vshrl.u32 %v2453, 7
    %v2455 = vsub.s32 %v2452, %v2454
    %v2456 = vrot.slane %v2440, %v2455
    %v2458 = vunpack.c.l.s4 1966171168
    %v2459 = vunpack.c.0.s8 %v2458
    %v2460 = vlaneseq
    %v2461 = vshrl.u32 %v2460, 7
    %v2462 = vsub.s32 %v2459, %v2461
    %v2463 = vrot.slane %v2441, %v2462
    %v2465 = vunpack.c.l.s4 1966171168
    %v2466 = vunpack.c.0.s8 %v2465
    %v2467 = vlaneseq
    %v2468 = vshrl.u32 %v2467, 7
    %v2469 = vsub.s32 %v2466, %v2468
    %v2470 = vrot.slane %v2442, %v2469
    %v2471 = vcombine.high %v2449, %v2449
    %v2472 = vcombine.high %v2456, %v2456
    %v2473 = vcombine.high %v2463, %v2463
    %v2474 = vcombine.high %v2470, %v2470
    %v2475 = vcombine.high %v2309, %v2309
    %v2477 = vunpack.c.l.s4 1966171168
    %v2478 = vunpack.c.0.s8 %v2477
    %v2479 = vlaneseq
    %v2480 = vshrl.u32 %v2479, 7
    %v2481 = vsub.s32 %v2478, %v2480
    %v2482 = vrot.slane %v2309, %v2481
    %v2484 = vunpack.c.l.s4 1966171168
    %v2485 = vunpack.c.0.s8 %v2484
    %v2486 = vlaneseq
    %v2487 = vshrl.u32 %v2486, 7
    %v2488 = vsub.s32 %v2485, %v2487
    %v2489 = vrot.slane %v2475, %v2488
    %v2490 = vcombine.high %v2482, %v2482
    %v2491 = vcombine.high %v2489, %v2489
    %v2493 = vunpack.c.l.s4 1966171168
    %v2494 = vunpack.c.0.s8 %v2493
    %v2495 = vlaneseq
    %v2496 = vshrl.u32 %v2495, 7
    %v2497 = vsub.s32 %v2494, %v2496
    %v2498 = vrot.slane %v2482, %v2497
    %v2500 = vunpack.c.l.s4 1966171168
    %v2501 = vunpack.c.0.s8 %v2500
    %v2502 = vlaneseq
    %v2503 = vshrl.u32 %v2502, 7
    %v2504 = vsub.s32 %v2501, %v2503
    %v2505 = vrot.slane %v2489, %v2504
    %v2507 = vunpack.c.l.s4 1966171168
    %v2508 = vunpack.c.0.s8 %v2507
    %v2509 = vlaneseq
    %v2510 = vshrl.u32 %v2509, 7
    %v2511 = vsub.s32 %v2508, %v2510
    %v2512 = vrot.slane %v2490, %v2511
    %v2514 = vunpack.c.l.s4 1966171168
    %v2515 = vunpack.c.0.s8 %v2514
    %v2516 = vlaneseq
    %v2517 = vshrl.u32 %v2516, 7
    %v2518 = vsub.s32 %v2515, %v2517
    %v2519 = vrot.slane %v2491, %v2518
    %v2520 = vcombine.high %v2498, %v2498
    %v2521 = vcombine.high %v2505, %v2505
    %v2522 = vcombine.high %v2512, %v2512
    %v2523 = vcombine.high %v2519, %v2519
    %v2524 = vcombine.high %v2312, %v2312
    %v2526 = vunpack.c.l.s4 1966171168
    %v2527 = vunpack.c.0.s8 %v2526
    %v2528 = vlaneseq
    %v2529 = vshrl.u32 %v2528, 7
    %v2530 = vsub.s32 %v2527, %v2529
    %v2531 = vrot.slane %v2312, %v2530
    %v2533 = vunpack.c.l.s4 1966171168
    %v2534 = vunpack.c.0.s8 %v2533
    %v2535 = vlaneseq
    %v2536 = vshrl.u32 %v2535, 7
    %v2537 = vsub.s32 %v2534, %v2536
    %v2538 = vrot.slane %v2524, %v2537
    %v2539 = vcombine.high %v2531, %v2531
    %v2540 = vcombine.high %v2538, %v2538
    %v2542 = vunpack.c.l.s4 1966171168
    %v2543 = vunpack.c.0.s8 %v2542
    %v2544 = vlaneseq
    %v2545 = vshrl.u32 %v2544, 7
    %v2546 = vsub.s32 %v2543, %v2545
    %v2547 = vrot.slane %v2531, %v2546
    %v2549 = vunpack.c.l.s4 1966171168
    %v2550 = vunpack.c.0.s8 %v2549
    %v2551 = vlaneseq
    %v2552 = vshrl.u32 %v2551, 7
    %v2553 = vsub.s32 %v2550, %v2552
    %v2554 = vrot.slane %v2538, %v2553
    %v2556 = vunpack.c.l.s4 1966171168
    %v2557 = vunpack.c.0.s8 %v2556
    %v2558 = vlaneseq
    %v2559 = vshrl.u32 %v2558, 7
    %v2560 = vsub.s32 %v2557, %v2559
    %v2561 = vrot.slane %v2539, %v2560
    %v2563 = vunpack.c.l.s4 1966171168
    %v2564 = vunpack.c.0.s8 %v2563
    %v2565 = vlaneseq
    %v2566 = vshrl.u32 %v2565, 7
    %v2567 = vsub.s32 %v2564, %v2566
    %v2568 = vrot.slane %v2540, %v2567
    %v2569 = vcombine.high %v2547, %v2547
    %v2570 = vcombine.high %v2554, %v2554
    %v2571 = vcombine.high %v2561, %v2561
    %v2572 = vcombine.high %v2568, %v2568
    %v2573 = vcombine.high %v2317, %v2317
    %v2575 = vunpack.c.l.s4 1966171168
    %v2576 = vunpack.c.0.s8 %v2575
    %v2577 = vlaneseq
    %v2578 = vshrl.u32 %v2577, 7
    %v2579 = vsub.s32 %v2576, %v2578
    %v2580 = vrot.slane %v2317, %v2579
    %v2582 = vunpack.c.l.s4 1966171168
    %v2583 = vunpack.c.0.s8 %v2582
    %v2584 = vlaneseq
    %v2585 = vshrl.u32 %v2584, 7
    %v2586 = vsub.s32 %v2583, %v2585
    %v2587 = vrot.slane %v2573, %v2586
    %v2588 = vcombine.high %v2580, %v2580
    %v2589 = vcombine.high %v2587, %v2587
    %v2591 = vunpack.c.l.s4 1966171168
    %v2592 = vunpack.c.0.s8 %v2591
    %v2593 = vlaneseq
    %v2594 = vshrl.u32 %v2593, 7
    %v2595 = vsub.s32 %v2592, %v2594
    %v2596 = vrot.slane %v2580, %v2595
    %v2598 = vunpack.c.l.s4 1966171168
    %v2599 = vunpack.c.0.s8 %v2598
    %v2600 = vlaneseq
    %v2601 = vshrl.u32 %v2600, 7
    %v2602 = vsub.s32 %v2599, %v2601
    %v2603 = vrot.slane %v2587, %v2602
    %v2605 = vunpack.c.l.s4 1966171168
    %v2606 = vunpack.c.0.s8 %v2605
    %v2607 = vlaneseq
    %v2608 = vshrl.u32 %v2607, 7
    %v2609 = vsub.s32 %v2606, %v2608
    %v2610 = vrot.slane %v2588, %v2609
    %v2612 = vunpack.c.l.s4 1966171168
    %v2613 = vunpack.c.0.s8 %v2612
    %v2614 = vlaneseq
    %v2615 = vshrl.u32 %v2614, 7
    %v2616 = vsub.s32 %v2613, %v2615
    %v2617 = vrot.slane %v2589, %v2616
    %v2618 = vcombine.high %v2596, %v2596
    %v2619 = vcombine.high %v2603, %v2603
    %v2620 = vcombine.high %v2610, %v2610
    %v2621 = vcombine.high %v2617, %v2617
    %v2622 = vcombine.high %v2320, %v2320
    %v2624 = vunpack.c.l.s4 1966171168
    %v2625 = vunpack.c.0.s8 %v2624
    %v2626 = vlaneseq
    %v2627 = vshrl.u32 %v2626, 7
    %v2628 = vsub.s32 %v2625, %v2627
    %v2629 = vrot.slane %v2320, %v2628
    %v2631 = vunpack.c.l.s4 1966171168
    %v2632 = vunpack.c.0.s8 %v2631
    %v2633 = vlaneseq
    %v2634 = vshrl.u32 %v2633, 7
    %v2635 = vsub.s32 %v2632, %v2634
    %v2636 = vrot.slane %v2622, %v2635
    %v2637 = vcombine.high %v2629, %v2629
    %v2638 = vcombine.high %v2636, %v2636
    %v2640 = vunpack.c.l.s4 1966171168
    %v2641 = vunpack.c.0.s8 %v2640
    %v2642 = vlaneseq
    %v2643 = vshrl.u32 %v2642, 7
    %v2644 = vsub.s32 %v2641, %v2643
    %v2645 = vrot.slane %v2629, %v2644
    %v2647 = vunpack.c.l.s4 1966171168
    %v2648 = vunpack.c.0.s8 %v2647
    %v2649 = vlaneseq
    %v2650 = vshrl.u32 %v2649, 7
    %v2651 = vsub.s32 %v2648, %v2650
    %v2652 = vrot.slane %v2636, %v2651
    %v2654 = vunpack.c.l.s4 1966171168
    %v2655 = vunpack.c.0.s8 %v2654
    %v2656 = vlaneseq
    %v2657 = vshrl.u32 %v2656, 7
    %v2658 = vsub.s32 %v2655, %v2657
    %v2659 = vrot.slane %v2637, %v2658
    %v2661 = vunpack.c.l.s4 1966171168
    %v2662 = vunpack.c.0.s8 %v2661
    %v2663 = vlaneseq
    %v2664 = vshrl.u32 %v2663, 7
    %v2665 = vsub.s32 %v2662, %v2664
    %v2666 = vrot.slane %v2638, %v2665
    %v2667 = vcombine.high %v2645, %v2645
    %v2668 = vcombine.high %v2652, %v2652
    %v2669 = vcombine.high %v2659, %v2659
    %v2670 = vcombine.high %v2666, %v2666
    %v2671 = vcombine.high %v2325, %v2325
    %v2673 = vunpack.c.l.s4 1966171168
    %v2674 = vunpack.c.0.s8 %v2673
    %v2675 = vlaneseq
    %v2676 = vshrl.u32 %v2675, 7
    %v2677 = vsub.s32 %v2674, %v2676
    %v2678 = vrot.slane %v2325, %v2677
    %v2680 = vunpack.c.l.s4 1966171168
    %v2681 = vunpack.c.0.s8 %v2680
    %v2682 = vlaneseq
    %v2683 = vshrl.u32 %v2682, 7
    %v2684 = vsub.s32 %v2681, %v2683
    %v2685 = vrot.slane %v2671, %v2684
    %v2686 = vcombine.high %v2678, %v2678
    %v2687 = vcombine.high %v2685, %v2685
    %v2689 = vunpack.c.l.s4 1966171168
    %v2690 = vunpack.c.0.s8 %v2689
    %v2691 = vlaneseq
    %v2692 = vshrl.u32 %v2691, 7
    %v2693 = vsub.s32 %v2690, %v2692
    %v2694 = vrot.slane %v2678, %v2693
    %v2696 = vunpack.c.l.s4 1966171168
    %v2697 = vunpack.c.0.s8 %v2696
    %v2698 = vlaneseq
    %v2699 = vshrl.u32 %v2698, 7
    %v2700 = vsub.s32 %v2697, %v2699
    %v2701 = vrot.slane %v2685, %v2700
    %v2703 = vunpack.c.l.s4 1966171168
    %v2704 = vunpack.c.0.s8 %v2703
    %v2705 = vlaneseq
    %v2706 = vshrl.u32 %v2705, 7
    %v2707 = vsub.s32 %v2704, %v2706
    %v2708 = vrot.slane %v2686, %v2707
    %v2710 = vunpack.c.l.s4 1966171168
    %v2711 = vunpack.c.0.s8 %v2710
    %v2712 = vlaneseq
    %v2713 = vshrl.u32 %v2712, 7
    %v2714 = vsub.s32 %v2711, %v2713
    %v2715 = vrot.slane %v2687, %v2714
    %v2716 = vcombine.high %v2694, %v2694
    %v2717 = vcombine.high %v2701, %v2701
    %v2718 = vcombine.high %v2708, %v2708
    %v2719 = vcombine.high %v2715, %v2715
    %v2720 = vcombine.high %v2328, %v2328
    %v2722 = vunpack.c.l.s4 1966171168
    %v2723 = vunpack.c.0.s8 %v2722
    %v2724 = vlaneseq
    %v2725 = vshrl.u32 %v2724, 7
    %v2726 = vsub.s32 %v2723, %v2725
    %v2727 = vrot.slane %v2328, %v2726
    %v2729 = vunpack.c.l.s4 1966171168
    %v2730 = vunpack.c.0.s8 %v2729
    %v2731 = vlaneseq
    %v2732 = vshrl.u32 %v2731, 7
    %v2733 = vsub.s32 %v2730, %v2732
    %v2734 = vrot.slane %v2720, %v2733
    %v2735 = vcombine.high %v2727, %v2727
    %v2736 = vcombine.high %v2734, %v2734
    %v2738 = vunpack.c.l.s4 1966171168
    %v2739 = vunpack.c.0.s8 %v2738
    %v2740 = vlaneseq
    %v2741 = vshrl.u32 %v2740, 7
    %v2742 = vsub.s32 %v2739, %v2741
    %v2743 = vrot.slane %v2727, %v2742
    %v2745 = vunpack.c.l.s4 1966171168
    %v2746 = vunpack.c.0.s8 %v2745
    %v2747 = vlaneseq
    %v2748 = vshrl.u32 %v2747, 7
    %v2749 = vsub.s32 %v2746, %v2748
    %v2750 = vrot.slane %v2734, %v2749
    %v2752 = vunpack.c.l.s4 1966171168
    %v2753 = vunpack.c.0.s8 %v2752
    %v2754 = vlaneseq
    %v2755 = vshrl.u32 %v2754, 7
    %v2756 = vsub.s32 %v2753, %v2755
    %v2757 = vrot.slane %v2735, %v2756
    %v2759 = vunpack.c.l.s4 1966171168
    %v2760 = vunpack.c.0.s8 %v2759
    %v2761 = vlaneseq
    %v2762 = vshrl.u32 %v2761, 7
    %v2763 = vsub.s32 %v2760, %v2762
    %v2764 = vrot.slane %v2736, %v2763
    %v2765 = vcombine.high %v2743, %v2743
    %v2766 = vcombine.high %v2750, %v2750
    %v2767 = vcombine.high %v2757, %v2757
    %v2768 = vcombine.high %v2764, %v2764
    %v2769 = vcombine.high %v2333, %v2333
    %v2771 = vunpack.c.l.s4 1966171168
    %v2772 = vunpack.c.0.s8 %v2771
    %v2773 = vlaneseq
    %v2774 = vshrl.u32 %v2773, 7
    %v2775 = vsub.s32 %v2772, %v2774
    %v2776 = vrot.slane %v2333, %v2775
    %v2778 = vunpack.c.l.s4 1966171168
    %v2779 = vunpack.c.0.s8 %v2778
    %v2780 = vlaneseq
    %v2781 = vshrl.u32 %v2780, 7
    %v2782 = vsub.s32 %v2779, %v2781
    %v2783 = vrot.slane %v2769, %v2782
    %v2784 = vcombine.high %v2776, %v2776
    %v2785 = vcombine.high %v2783, %v2783
    %v2787 = vunpack.c.l.s4 1966171168
    %v2788 = vunpack.c.0.s8 %v2787
    %v2789 = vlaneseq
    %v2790 = vshrl.u32 %v2789, 7
    %v2791 = vsub.s32 %v2788, %v2790
    %v2792 = vrot.slane %v2776, %v2791
    %v2794 = vunpack.c.l.s4 1966171168
    %v2795 = vunpack.c.0.s8 %v2794
    %v2796 = vlaneseq
    %v2797 = vshrl.u32 %v2796, 7
    %v2798 = vsub.s32 %v2795, %v2797
    %v2799 = vrot.slane %v2783, %v2798
    %v2801 = vunpack.c.l.s4 1966171168
    %v2802 = vunpack.c.0.s8 %v2801
    %v2803 = vlaneseq
    %v2804 = vshrl.u32 %v2803, 7
    %v2805 = vsub.s32 %v2802, %v2804
    %v2806 = vrot.slane %v2784, %v2805
    %v2808 = vunpack.c.l.s4 1966171168
    %v2809 = vunpack.c.0.s8 %v2808
    %v2810 = vlaneseq
    %v2811 = vshrl.u32 %v2810, 7
    %v2812 = vsub.s32 %v2809, %v2811
    %v2813 = vrot.slane %v2785, %v2812
    %v2814 = vcombine.high %v2792, %v2792
    %v2815 = vcombine.high %v2799, %v2799
    %v2816 = vcombine.high %v2806, %v2806
    %v2817 = vcombine.high %v2813, %v2813
    %v2818 = vcombine.high %v2336, %v2336
    %v2820 = vunpack.c.l.s4 1966171168
    %v2821 = vunpack.c.0.s8 %v2820
    %v2822 = vlaneseq
    %v2823 = vshrl.u32 %v2822, 7
    %v2824 = vsub.s32 %v2821, %v2823
    %v2825 = vrot.slane %v2336, %v2824
    %v2827 = vunpack.c.l.s4 1966171168
    %v2828 = vunpack.c.0.s8 %v2827
    %v2829 = vlaneseq
    %v2830 = vshrl.u32 %v2829, 7
    %v2831 = vsub.s32 %v2828, %v2830
    %v2832 = vrot.slane %v2818, %v2831
    %v2833 = vcombine.high %v2825, %v2825
    %v2834 = vcombine.high %v2832, %v2832
    %v2836 = vunpack.c.l.s4 1966171168
    %v2837 = vunpack.c.0.s8 %v2836
    %v2838 = vlaneseq
    %v2839 = vshrl.u32 %v2838, 7
    %v2840 = vsub.s32 %v2837, %v2839
    %v2841 = vrot.slane %v2825, %v2840
    %v2843 = vunpack.c.l.s4 1966171168
    %v2844 = vunpack.c.0.s8 %v2843
    %v2845 = vlaneseq
    %v2846 = vshrl.u32 %v2845, 7
    %v2847 = vsub.s32 %v2844, %v2846
    %v2848 = vrot.slane %v2832, %v2847
    %v2850 = vunpack.c.l.s4 1966171168
    %v2851 = vunpack.c.0.s8 %v2850
    %v2852 = vlaneseq
    %v2853 = vshrl.u32 %v2852, 7
    %v2854 = vsub.s32 %v2851, %v2853
    %v2855 = vrot.slane %v2833, %v2854
    %v2857 = vunpack.c.l.s4 1966171168
    %v2858 = vunpack.c.0.s8 %v2857
    %v2859 = vlaneseq
    %v2860 = vshrl.u32 %v2859, 7
    %v2861 = vsub.s32 %v2858, %v2860
    %v2862 = vrot.slane %v2834, %v2861
    %v2863 = vcombine.high %v2841, %v2841
    %v2864 = vcombine.high %v2848, %v2848
    %v2865 = vcombine.high %v2855, %v2855
    %v2866 = vcombine.high %v2862, %v2862
    %v2867 = vcombine.high %v2341, %v2341
    %v2869 = vunpack.c.l.s4 1966171168
    %v2870 = vunpack.c.0.s8 %v2869
    %v2871 = vlaneseq
    %v2872 = vshrl.u32 %v2871, 7
    %v2873 = vsub.s32 %v2870, %v2872
    %v2874 = vrot.slane %v2341, %v2873
    %v2876 = vunpack.c.l.s4 1966171168
    %v2877 = vunpack.c.0.s8 %v2876
    %v2878 = vlaneseq
    %v2879 = vshrl.u32 %v2878, 7
    %v2880 = vsub.s32 %v2877, %v2879
    %v2881 = vrot.slane %v2867, %v2880
    %v2882 = vcombine.high %v2874, %v2874
    %v2883 = vcombine.high %v2881, %v2881
    %v2885 = vunpack.c.l.s4 1966171168
    %v2886 = vunpack.c.0.s8 %v2885
    %v2887 = vlaneseq
    %v2888 = vshrl.u32 %v2887, 7
    %v2889 = vsub.s32 %v2886, %v2888
    %v2890 = vrot.slane %v2874, %v2889
    %v2892 = vunpack.c.l.s4 1966171168
    %v2893 = vunpack.c.0.s8 %v2892
    %v2894 = vlaneseq
    %v2895 = vshrl.u32 %v2894, 7
    %v2896 = vsub.s32 %v2893, %v2895
    %v2897 = vrot.slane %v2881, %v2896
    %v2899 = vunpack.c.l.s4 1966171168
    %v2900 = vunpack.c.0.s8 %v2899
    %v2901 = vlaneseq
    %v2902 = vshrl.u32 %v2901, 7
    %v2903 = vsub.s32 %v2900, %v2902
    %v2904 = vrot.slane %v2882, %v2903
    %v2906 = vunpack.c.l.s4 1966171168
    %v2907 = vunpack.c.0.s8 %v2906
    %v2908 = vlaneseq
    %v2909 = vshrl.u32 %v2908, 7
    %v2910 = vsub.s32 %v2907, %v2909
    %v2911 = vrot.slane %v2883, %v2910
    %v2912 = vcombine.high %v2890, %v2890
    %v2913 = vcombine.high %v2897, %v2897
    %v2914 = vcombine.high %v2904, %v2904
    %v2915 = vcombine.high %v2911, %v2911
    %v2916 = vcombine.high %v2344, %v2344
    %v2918 = vunpack.c.l.s4 1966171168
    %v2919 = vunpack.c.0.s8 %v2918
    %v2920 = vlaneseq
    %v2921 = vshrl.u32 %v2920, 7
    %v2922 = vsub.s32 %v2919, %v2921
    %v2923 = vrot.slane %v2344, %v2922
    %v2925 = vunpack.c.l.s4 1966171168
    %v2926 = vunpack.c.0.s8 %v2925
    %v2927 = vlaneseq
    %v2928 = vshrl.u32 %v2927, 7
    %v2929 = vsub.s32 %v2926, %v2928
    %v2930 = vrot.slane %v2916, %v2929
    %v2931 = vcombine.high %v2923, %v2923
    %v2932 = vcombine.high %v2930, %v2930
    %v2934 = vunpack.c.l.s4 1966171168
    %v2935 = vunpack.c.0.s8 %v2934
    %v2936 = vlaneseq
    %v2937 = vshrl.u32 %v2936, 7
    %v2938 = vsub.s32 %v2935, %v2937
    %v2939 = vrot.slane %v2923, %v2938
    %v2941 = vunpack.c.l.s4 1966171168
    %v2942 = vunpack.c.0.s8 %v2941
    %v2943 = vlaneseq
    %v2944 = vshrl.u32 %v2943, 7
    %v2945 = vsub.s32 %v2942, %v2944
    %v2946 = vrot.slane %v2930, %v2945
    %v2948 = vunpack.c.l.s4 1966171168
    %v2949 = vunpack.c.0.s8 %v2948
    %v2950 = vlaneseq
    %v2951 = vshrl.u32 %v2950, 7
    %v2952 = vsub.s32 %v2949, %v2951
    %v2953 = vrot.slane %v2931, %v2952
    %v2955 = vunpack.c.l.s4 1966171168
    %v2956 = vunpack.c.0.s8 %v2955
    %v2957 = vlaneseq
    %v2958 = vshrl.u32 %v2957, 7
    %v2959 = vsub.s32 %v2956, %v2958
    %v2960 = vrot.slane %v2932, %v2959
    %v2961 = vcombine.high %v2939, %v2939
    %v2962 = vcombine.high %v2946, %v2946
    %v2963 = vcombine.high %v2953, %v2953
    %v2964 = vcombine.high %v2960, %v2960
    %v2965 = vcombine.high %v2349, %v2349
    %v2967 = vunpack.c.l.s4 1966171168
    %v2968 = vunpack.c.0.s8 %v2967
    %v2969 = vlaneseq
    %v2970 = vshrl.u32 %v2969, 7
    %v2971 = vsub.s32 %v2968, %v2970
    %v2972 = vrot.slane %v2349, %v2971
    %v2974 = vunpack.c.l.s4 1966171168
    %v2975 = vunpack.c.0.s8 %v2974
    %v2976 = vlaneseq
    %v2977 = vshrl.u32 %v2976, 7
    %v2978 = vsub.s32 %v2975, %v2977
    %v2979 = vrot.slane %v2965, %v2978
    %v2980 = vcombine.high %v2972, %v2972
    %v2981 = vcombine.high %v2979, %v2979
    %v2983 = vunpack.c.l.s4 1966171168
    %v2984 = vunpack.c.0.s8 %v2983
    %v2985 = vlaneseq
    %v2986 = vshrl.u32 %v2985, 7
    %v2987 = vsub.s32 %v2984, %v2986
    %v2988 = vrot.slane %v2972, %v2987
    %v2990 = vunpack.c.l.s4 1966171168
    %v2991 = vunpack.c.0.s8 %v2990
    %v2992 = vlaneseq
    %v2993 = vshrl.u32 %v2992, 7
    %v2994 = vsub.s32 %v2991, %v2993
    %v2995 = vrot.slane %v2979, %v2994
    %v2997 = vunpack.c.l.s4 1966171168
    %v2998 = vunpack.c.0.s8 %v2997
    %v2999 = vlaneseq
    %v3000 = vshrl.u32 %v2999, 7
    %v3001 = vsub.s32 %v2998, %v3000
    %v3002 = vrot.slane %v2980, %v3001
    %v3004 = vunpack.c.l.s4 1966171168
    %v3005 = vunpack.c.0.s8 %v3004
    %v3006 = vlaneseq
    %v3007 = vshrl.u32 %v3006, 7
    %v3008 = vsub.s32 %v3005, %v3007
    %v3009 = vrot.slane %v2981, %v3008
    %v3010 = vcombine.high %v2988, %v2988
    %v3011 = vcombine.high %v2995, %v2995
    %v3012 = vcombine.high %v3002, %v3002
    %v3013 = vcombine.high %v3009, %v3009
    %v3014 = vcombine.high %v2352, %v2352
    %v3016 = vunpack.c.l.s4 1966171168
    %v3017 = vunpack.c.0.s8 %v3016
    %v3018 = vlaneseq
    %v3019 = vshrl.u32 %v3018, 7
    %v3020 = vsub.s32 %v3017, %v3019
    %v3021 = vrot.slane %v2352, %v3020
    %v3023 = vunpack.c.l.s4 1966171168
    %v3024 = vunpack.c.0.s8 %v3023
    %v3025 = vlaneseq
    %v3026 = vshrl.u32 %v3025, 7
    %v3027 = vsub.s32 %v3024, %v3026
    %v3028 = vrot.slane %v3014, %v3027
    %v3029 = vcombine.high %v3021, %v3021
    %v3030 = vcombine.high %v3028, %v3028
    %v3032 = vunpack.c.l.s4 1966171168
    %v3033 = vunpack.c.0.s8 %v3032
    %v3034 = vlaneseq
    %v3035 = vshrl.u32 %v3034, 7
    %v3036 = vsub.s32 %v3033, %v3035
    %v3037 = vrot.slane %v3021, %v3036
    %v3039 = vunpack.c.l.s4 1966171168
    %v3040 = vunpack.c.0.s8 %v3039
    %v3041 = vlaneseq
    %v3042 = vshrl.u32 %v3041, 7
    %v3043 = vsub.s32 %v3040, %v3042
    %v3044 = vrot.slane %v3028, %v3043
    %v3046 = vunpack.c.l.s4 1966171168
    %v3047 = vunpack.c.0.s8 %v3046
    %v3048 = vlaneseq
    %v3049 = vshrl.u32 %v3048, 7
    %v3050 = vsub.s32 %v3047, %v3049
    %v3051 = vrot.slane %v3029, %v3050
    %v3053 = vunpack.c.l.s4 1966171168
    %v3054 = vunpack.c.0.s8 %v3053
    %v3055 = vlaneseq
    %v3056 = vshrl.u32 %v3055, 7
    %v3057 = vsub.s32 %v3054, %v3056
    %v3058 = vrot.slane %v3030, %v3057
    %v3059 = vcombine.high %v3037, %v3037
    %v3060 = vcombine.high %v3044, %v3044
    %v3061 = vcombine.high %v3051, %v3051
    %v3062 = vcombine.high %v3058, %v3058
    %v3063 = vcombine.high %v2357, %v2357
    %v3065 = vunpack.c.l.s4 1966171168
    %v3066 = vunpack.c.0.s8 %v3065
    %v3067 = vlaneseq
    %v3068 = vshrl.u32 %v3067, 7
    %v3069 = vsub.s32 %v3066, %v3068
    %v3070 = vrot.slane %v2357, %v3069
    %v3072 = vunpack.c.l.s4 1966171168
    %v3073 = vunpack.c.0.s8 %v3072
    %v3074 = vlaneseq
    %v3075 = vshrl.u32 %v3074, 7
    %v3076 = vsub.s32 %v3073, %v3075
    %v3077 = vrot.slane %v3063, %v3076
    %v3078 = vcombine.high %v3070, %v3070
    %v3079 = vcombine.high %v3077, %v3077
    %v3081 = vunpack.c.l.s4 1966171168
    %v3082 = vunpack.c.0.s8 %v3081
    %v3083 = vlaneseq
    %v3084 = vshrl.u32 %v3083, 7
    %v3085 = vsub.s32 %v3082, %v3084
    %v3086 = vrot.slane %v3070, %v3085
    %v3088 = vunpack.c.l.s4 1966171168
    %v3089 = vunpack.c.0.s8 %v3088
    %v3090 = vlaneseq
    %v3091 = vshrl.u32 %v3090, 7
    %v3092 = vsub.s32 %v3089, %v3091
    %v3093 = vrot.slane %v3077, %v3092
    %v3095 = vunpack.c.l.s4 1966171168
    %v3096 = vunpack.c.0.s8 %v3095
    %v3097 = vlaneseq
    %v3098 = vshrl.u32 %v3097, 7
    %v3099 = vsub.s32 %v3096, %v3098
    %v3100 = vrot.slane %v3078, %v3099
    %v3102 = vunpack.c.l.s4 1966171168
    %v3103 = vunpack.c.0.s8 %v3102
    %v3104 = vlaneseq
    %v3105 = vshrl.u32 %v3104, 7
    %v3106 = vsub.s32 %v3103, %v3105
    %v3107 = vrot.slane %v3079, %v3106
    %v3108 = vcombine.high %v3086, %v3086
    %v3109 = vcombine.high %v3093, %v3093
    %v3110 = vcombine.high %v3100, %v3100
    %v3111 = vcombine.high %v3107, %v3107
    %v3112 = vcombine.low %v2400, %v2414
    %v3113 = vcombine.low %v2422, %v2424
    %v3114 = vcombine.low %v2407, %v2421
    %v3115 = vcombine.low %v2423, %v2425
    %v3117 = vunpack.c.l.s4 1966171168
    %v3118 = vunpack.c.0.s8 %v3117
    %v3119 = vlaneseq
    %v3120 = vshrl.u32 %v3119, 7
    %v3121 = vsub.s32 %v3118, %v3120
    %v3122 = vrot.slane %v3112, %v3121
    %v3124 = vunpack.c.l.s4 1966171168
    %v3125 = vunpack.c.0.s8 %v3124
    %v3126 = vlaneseq
    %v3127 = vshrl.u32 %v3126, 7
    %v3128 = vsub.s32 %v3125, %v3127
    %v3129 = vrot.slane %v3113, %v3128
    %v3131 = vunpack.c.l.s4 1966171168
    %v3132 = vunpack.c.0.s8 %v3131
    %v3133 = vlaneseq
    %v3134 = vshrl.u32 %v3133, 7
    %v3135 = vsub.s32 %v3132, %v3134
    %v3136 = vrot.slane %v3114, %v3135
    %v3138 = vunpack.c.l.s4 1966171168
    %v3139 = vunpack.c.0.s8 %v3138
    %v3140 = vlaneseq
    %v3141 = vshrl.u32 %v3140, 7
    %v3142 = vsub.s32 %v3139, %v3141
    %v3143 = vrot.slane %v3115, %v3142
    %v3144 = vcombine.low %v3122, %v3129
    %v3145 = vcombine.low %v3136, %v3143
    %v3147 = vunpack.c.l.s4 1966171168
    %v3148 = vunpack.c.0.s8 %v3147
    %v3149 = vlaneseq
    %v3150 = vshrl.u32 %v3149, 7
    %v3151 = vsub.s32 %v3148, %v3150
    %v3152 = vrot.slane %v3144, %v3151
    %v3154 = vunpack.c.l.s4 1966171168
    %v3155 = vunpack.c.0.s8 %v3154
    %v3156 = vlaneseq
    %v3157 = vshrl.u32 %v3156, 7
    %v3158 = vsub.s32 %v3155, %v3157
    %v3159 = vrot.slane %v3145, %v3158
    %v3160 = vcombine.low %v3152, %v3159
    %v3161 = vcombine.low %v2449, %v2463
    %v3162 = vcombine.low %v2471, %v2473
    %v3163 = vcombine.low %v2456, %v2470
    %v3165 = vunpack.c.l.s4 1966171168
    %v3166 = vunpack.c.0.s8 %v3165
    %v3167 = vlaneseq
    %v3168 = vshrl.u32 %v3167, 7
    %v3169 = vsub.s32 %v3166, %v3168
    %v3170 = vrot.slane %v3161, %v3169
    %v3172 = vunpack.c.l.s4 1966171168
    %v3173 = vunpack.c.0.s8 %v3172
    %v3174 = vlaneseq
    %v3175 = vshrl.u32 %v3174, 7
    %v3176 = vsub.s32 %v3173, %v3175
    %v3177 = vrot.slane %v3162, %v3176
    %v3179 = vunpack.c.l.s4 1966171168
    %v3180 = vunpack.c.0.s8 %v3179
    %v3181 = vlaneseq
    %v3182 = vshrl.u32 %v3181, 7
    %v3183 = vsub.s32 %v3180, %v3182
    %v3184 = vrot.slane %v3163, %v3183
    %v3186 = vunpack.c.l.s4 1966171168
    %v3187 = vunpack.c.0.s8 %v3186
    %v3188 = vlaneseq
    %v3189 = vshrl.u32 %v3188, 7
    %v3190 = vsub.s32 %v3187, %v3189
    %v3191 = vrot.slane %v2472, %v3190
    %v3192 = vcombine.low %v3170, %v3177
    %v3193 = vcombine.low %v3184, %v3191
    %v3195 = vunpack.c.l.s4 1966171168
    %v3196 = vunpack.c.0.s8 %v3195
    %v3197 = vlaneseq
    %v3198 = vshrl.u32 %v3197, 7
    %v3199 = vsub.s32 %v3196, %v3198
    %v3200 = vrot.slane %v3192, %v3199
    %v3202 = vunpack.c.l.s4 1966171168
    %v3203 = vunpack.c.0.s8 %v3202
    %v3204 = vlaneseq
    %v3205 = vshrl.u32 %v3204, 7
    %v3206 = vsub.s32 %v3203, %v3205
    %v3207 = vrot.slane %v3193, %v3206
    %v3208 = vcombine.low %v3200, %v3207
    %v3209 = vcombine.low %v2474, %v2498
    %v3210 = vcombine.low %v2512, %v2520
    %v3211 = vcombine.low %v2522, %v2505
    %v3212 = vcombine.low %v2519, %v2521
    %v3214 = vunpack.c.l.s4 1966171168
    %v3215 = vunpack.c.0.s8 %v3214
    %v3216 = vlaneseq
    %v3217 = vshrl.u32 %v3216, 7
    %v3218 = vsub.s32 %v3215, %v3217
    %v3219 = vrot.slane %v3209, %v3218
    %v3221 = vunpack.c.l.s4 1966171168
    %v3222 = vunpack.c.0.s8 %v3221
    %v3223 = vlaneseq
    %v3224 = vshrl.u32 %v3223, 7
    %v3225 = vsub.s32 %v3222, %v3224
    %v3226 = vrot.slane %v3210, %v3225
    %v3228 = vunpack.c.l.s4 1966171168
    %v3229 = vunpack.c.0.s8 %v3228
    %v3230 = vlaneseq
    %v3231 = vshrl.u32 %v3230, 7
    %v3232 = vsub.s32 %v3229, %v3231
    %v3233 = vrot.slane %v3211, %v3232
    %v3235 = vunpack.c.l.s4 1966171168
    %v3236 = vunpack.c.0.s8 %v3235
    %v3237 = vlaneseq
    %v3238 = vshrl.u32 %v3237, 7
    %v3239 = vsub.s32 %v3236, %v3238
    %v3240 = vrot.slane %v3212, %v3239
    %v3241 = vcombine.low %v3219, %v3226
    %v3242 = vcombine.low %v3233, %v3240
    %v3244 = vunpack.c.l.s4 1966171168
    %v3245 = vunpack.c.0.s8 %v3244
    %v3246 = vlaneseq
    %v3247 = vshrl.u32 %v3246, 7
    %v3248 = vsub.s32 %v3245, %v3247
    %v3249 = vrot.slane %v3241, %v3248
    %v3251 = vunpack.c.l.s4 1966171168
    %v3252 = vunpack.c.0.s8 %v3251
    %v3253 = vlaneseq
    %v3254 = vshrl.u32 %v3253, 7
    %v3255 = vsub.s32 %v3252, %v3254
    %v3256 = vrot.slane %v3242, %v3255
    %v3257 = vcombine.low %v3249, %v3256
    %v3258 = vcombine.low %v2523, %v2547
    %v3259 = vcombine.low %v2561, %v2569
    %v3260 = vcombine.low %v2571, %v2554
    %v3262 = vunpack.c.l.s4 1966171168
    %v3263 = vunpack.c.0.s8 %v3262
    %v3264 = vlaneseq
    %v3265 = vshrl.u32 %v3264, 7
    %v3266 = vsub.s32 %v3263, %v3265
    %v3267 = vrot.slane %v3258, %v3266
    %v3269 = vunpack.c.l.s4 1966171168
    %v3270 = vunpack.c.0.s8 %v3269
    %v3271 = vlaneseq
    %v3272 = vshrl.u32 %v3271, 7
    %v3273 = vsub.s32 %v3270, %v3272
    %v3274 = vrot.slane %v3259, %v3273
    %v3276 = vunpack.c.l.s4 1966171168
    %v3277 = vunpack.c.0.s8 %v3276
    %v3278 = vlaneseq
    %v3279 = vshrl.u32 %v3278, 7
    %v3280 = vsub.s32 %v3277, %v3279
    %v3281 = vrot.slane %v3260, %v3280
    %v3283 = vunpack.c.l.s4 1966171168
    %v3284 = vunpack.c.0.s8 %v3283
    %v3285 = vlaneseq
    %v3286 = vshrl.u32 %v3285, 7
    %v3287 = vsub.s32 %v3284, %v3286
    %v3288 = vrot.slane %v2568, %v3287
    %v3289 = vcombine.low %v3267, %v3274
    %v3290 = vcombine.low %v3281, %v3288
    %v3292 = vunpack.c.l.s4 1966171168
    %v3293 = vunpack.c.0.s8 %v3292
    %v3294 = vlaneseq
    %v3295 = vshrl.u32 %v3294, 7
    %v3296 = vsub.s32 %v3293, %v3295
    %v3297 = vrot.slane %v3289, %v3296
    %v3299 = vunpack.c.l.s4 1966171168
    %v3300 = vunpack.c.0.s8 %v3299
    %v3301 = vlaneseq
    %v3302 = vshrl.u32 %v3301, 7
    %v3303 = vsub.s32 %v3300, %v3302
    %v3304 = vrot.slane %v3290, %v3303
    %v3305 = vcombine.low %v3297, %v3304
    %v3306 = vcombine.low %v2570, %v2572
    %v3307 = vcombine.low %v2596, %v2610
    %v3308 = vcombine.low %v2618, %v2620
    %v3309 = vcombine.low %v2603, %v2617
    %v3311 = vunpack.c.l.s4 1966171168
    %v3312 = vunpack.c.0.s8 %v3311
    %v3313 = vlaneseq
    %v3314 = vshrl.u32 %v3313, 7
    %v3315 = vsub.s32 %v3312, %v3314
    %v3316 = vrot.slane %v3306, %v3315
    %v3318 = vunpack.c.l.s4 1966171168
    %v3319 = vunpack.c.0.s8 %v3318
    %v3320 = vlaneseq
    %v3321 = vshrl.u32 %v3320, 7
    %v3322 = vsub.s32 %v3319, %v3321
    %v3323 = vrot.slane %v3307, %v3322
    %v3325 = vunpack.c.l.s4 1966171168
    %v3326 = vunpack.c.0.s8 %v3325
    %v3327 = vlaneseq
    %v3328 = vshrl.u32 %v3327, 7
    %v3329 = vsub.s32 %v3326, %v3328
    %v3330 = vrot.slane %v3308, %v3329
    %v3332 = vunpack.c.l.s4 1966171168
    %v3333 = vunpack.c.0.s8 %v3332
    %v3334 = vlaneseq
    %v3335 = vshrl.u32 %v3334, 7
    %v3336 = vsub.s32 %v3333, %v3335
    %v3337 = vrot.slane %v3309, %v3336
    %v3338 = vcombine.low %v3316, %v3323
    %v3339 = vcombine.low %v3330, %v3337
    %v3341 = vunpack.c.l.s4 1966171168
    %v3342 = vunpack.c.0.s8 %v3341
    %v3343 = vlaneseq
    %v3344 = vshrl.u32 %v3343, 7
    %v3345 = vsub.s32 %v3342, %v3344
    %v3346 = vrot.slane %v3338, %v3345
    %v3348 = vunpack.c.l.s4 1966171168
    %v3349 = vunpack.c.0.s8 %v3348
    %v3350 = vlaneseq
    %v3351 = vshrl.u32 %v3350, 7
    %v3352 = vsub.s32 %v3349, %v3351
    %v3353 = vrot.slane %v3339, %v3352
    %v3354 = vcombine.low %v3346, %v3353
    %v3355 = vcombine.low %v2619, %v2621
    %v3356 = vcombine.low %v2645, %v2659
    %v3357 = vcombine.low %v2667, %v2669
    %v3359 = vunpack.c.l.s4 1966171168
    %v3360 = vunpack.c.0.s8 %v3359
    %v3361 = vlaneseq
    %v3362 = vshrl.u32 %v3361, 7
    %v3363 = vsub.s32 %v3360, %v3362
    %v3364 = vrot.slane %v3355, %v3363
    %v3366 = vunpack.c.l.s4 1966171168
    %v3367 = vunpack.c.0.s8 %v3366
    %v3368 = vlaneseq
    %v3369 = vshrl.u32 %v3368, 7
    %v3370 = vsub.s32 %v3367, %v3369
    %v3371 = vrot.slane %v3356, %v3370
    %v3373 = vunpack.c.l.s4 1966171168
    %v3374 = vunpack.c.0.s8 %v3373
    %v3375 = vlaneseq
    %v3376 = vshrl.u32 %v3375, 7
    %v3377 = vsub.s32 %v3374, %v3376
    %v3378 = vrot.slane %v3357, %v3377
    %v3380 = vunpack.c.l.s4 1966171168
    %v3381 = vunpack.c.0.s8 %v3380
    %v3382 = vlaneseq
    %v3383 = vshrl.u32 %v3382, 7
    %v3384 = vsub.s32 %v3381, %v3383
    %v3385 = vrot.slane %v2652, %v3384
    %v3386 = vcombine.low %v3364, %v3371
    %v3387 = vcombine.low %v3378, %v3385
    %v3389 = vunpack.c.l.s4 1966171168
    %v3390 = vunpack.c.0.s8 %v3389
    %v3391 = vlaneseq
    %v3392 = vshrl.u32 %v3391, 7
    %v3393 = vsub.s32 %v3390, %v3392
    %v3394 = vrot.slane %v3386, %v3393
    %v3396 = vunpack.c.l.s4 1966171168
    %v3397 = vunpack.c.0.s8 %v3396
    %v3398 = vlaneseq
    %v3399 = vshrl.u32 %v3398, 7
    %v3400 = vsub.s32 %v3397, %v3399
    %v3401 = vrot.slane %v3387, %v3400
    %v3402 = vcombine.low %v3394, %v3401
    %v3403 = vcombine.low %v2666, %v2668
    %v3404 = vcombine.low %v2670, %v2694
    %v3405 = vcombine.low %v2708, %v2716
    %v3406 = vcombine.low %v2718, %v2701
    %v3408 = vunpack.c.l.s4 1966171168
    %v3409 = vunpack.c.0.s8 %v3408
    %v3410 = vlaneseq
    %v3411 = vshrl.u32 %v3410, 7
    %v3412 = vsub.s32 %v3409, %v3411
    %v3413 = vrot.slane %v3403, %v3412
    %v3415 = vunpack.c.l.s4 1966171168
    %v3416 = vunpack.c.0.s8 %v3415
    %v3417 = vlaneseq
    %v3418 = vshrl.u32 %v3417, 7
    %v3419 = vsub.s32 %v3416, %v3418
    %v3420 = vrot.slane %v3404, %v3419
    %v3422 = vunpack.c.l.s4 1966171168
    %v3423 = vunpack.c.0.s8 %v3422
    %v3424 = vlaneseq
    %v3425 = vshrl.u32 %v3424, 7
    %v3426 = vsub.s32 %v3423, %v3425
    %v3427 = vrot.slane %v3405, %v3426
    %v3429 = vunpack.c.l.s4 1966171168
    %v3430 = vunpack.c.0.s8 %v3429
    %v3431 = vlaneseq
    %v3432 = vshrl.u32 %v3431, 7
    %v3433 = vsub.s32 %v3430, %v3432
    %v3434 = vrot.slane %v3406, %v3433
    %v3435 = vcombine.low %v3413, %v3420
    %v3436 = vcombine.low %v3427, %v3434
    %v3438 = vunpack.c.l.s4 1966171168
    %v3439 = vunpack.c.0.s8 %v3438
    %v3440 = vlaneseq
    %v3441 = vshrl.u32 %v3440, 7
    %v3442 = vsub.s32 %v3439, %v3441
    %v3443 = vrot.slane %v3435, %v3442
    %v3445 = vunpack.c.l.s4 1966171168
    %v3446 = vunpack.c.0.s8 %v3445
    %v3447 = vlaneseq
    %v3448 = vshrl.u32 %v3447, 7
    %v3449 = vsub.s32 %v3446, %v3448
    %v3450 = vrot.slane %v3436, %v3449
    %v3451 = vcombine.low %v3443, %v3450
    %v3452 = vcombine.low %v2715, %v2717
    %v3453 = vcombine.low %v2719, %v2743
    %v3454 = vcombine.low %v2757, %v2765
    %v3456 = vunpack.c.l.s4 1966171168
    %v3457 = vunpack.c.0.s8 %v3456
    %v3458 = vlaneseq
    %v3459 = vshrl.u32 %v3458, 7
    %v3460 = vsub.s32 %v3457, %v3459
    %v3461 = vrot.slane %v3452, %v3460
    %v3463 = vunpack.c.l.s4 1966171168
    %v3464 = vunpack.c.0.s8 %v3463
    %v3465 = vlaneseq
    %v3466 = vshrl.u32 %v3465, 7
    %v3467 = vsub.s32 %v3464, %v3466
    %v3468 = vrot.slane %v3453, %v3467
    %v3470 = vunpack.c.l.s4 1966171168
    %v3471 = vunpack.c.0.s8 %v3470
    %v3472 = vlaneseq
    %v3473 = vshrl.u32 %v3472, 7
    %v3474 = vsub.s32 %v3471, %v3473
    %v3475 = vrot.slane %v3454, %v3474
    %v3477 = vunpack.c.l.s4 1966171168
    %v3478 = vunpack.c.0.s8 %v3477
    %v3479 = vlaneseq
    %v3480 = vshrl.u32 %v3479, 7
    %v3481 = vsub.s32 %v3478, %v3480
    %v3482 = vrot.slane %v2767, %v3481
    %v3483 = vcombine.low %v3461, %v3468
    %v3484 = vcombine.low %v3475, %v3482
    %v3486 = vunpack.c.l.s4 1966171168
    %v3487 = vunpack.c.0.s8 %v3486
    %v3488 = vlaneseq
    %v3489 = vshrl.u32 %v3488, 7
    %v3490 = vsub.s32 %v3487, %v3489
    %v3491 = vrot.slane %v3483, %v3490
    %v3493 = vunpack.c.l.s4 1966171168
    %v3494 = vunpack.c.0.s8 %v3493
    %v3495 = vlaneseq
    %v3496 = vshrl.u32 %v3495, 7
    %v3497 = vsub.s32 %v3494, %v3496
    %v3498 = vrot.slane %v3484, %v3497
    %v3499 = vcombine.low %v3491, %v3498
    %v3500 = vcombine.low %v2750, %v2764
    %v3501 = vcombine.low %v2766, %v2768
    %v3502 = vcombine.low %v2792, %v2806
    %v3503 = vcombine.low %v2814, %v2816
    %v3505 = vunpack.c.l.s4 1966171168
    %v3506 = vunpack.c.0.s8 %v3505
    %v3507 = vlaneseq
    %v3508 = vshrl.u32 %v3507, 7
    %v3509 = vsub.s32 %v3506, %v3508
    %v3510 = vrot.slane %v3500, %v3509
    %v3512 = vunpack.c.l.s4 1966171168
    %v3513 = vunpack.c.0.s8 %v3512
    %v3514 = vlaneseq
    %v3515 = vshrl.u32 %v3514, 7
    %v3516 = vsub.s32 %v3513, %v3515
    %v3517 = vrot.slane %v3501, %v3516
    %v3519 = vunpack.c.l.s4 1966171168
    %v3520 = vunpack.c.0.s8 %v3519
    %v3521 = vlaneseq
    %v3522 = vshrl.u32 %v3521, 7
    %v3523 = vsub.s32 %v3520, %v3522
    %v3524 = vrot.slane %v3502, %v3523
    %v3526 = vunpack.c.l.s4 1966171168
    %v3527 = vunpack.c.0.s8 %v3526
    %v3528 = vlaneseq
    %v3529 = vshrl.u32 %v3528, 7
    %v3530 = vsub.s32 %v3527, %v3529
    %v3531 = vrot.slane %v3503, %v3530
    %v3532 = vcombine.low %v3510, %v3517
    %v3533 = vcombine.low %v3524, %v3531
    %v3535 = vunpack.c.l.s4 1966171168
    %v3536 = vunpack.c.0.s8 %v3535
    %v3537 = vlaneseq
    %v3538 = vshrl.u32 %v3537, 7
    %v3539 = vsub.s32 %v3536, %v3538
    %v3540 = vrot.slane %v3532, %v3539
    %v3542 = vunpack.c.l.s4 1966171168
    %v3543 = vunpack.c.0.s8 %v3542
    %v3544 = vlaneseq
    %v3545 = vshrl.u32 %v3544, 7
    %v3546 = vsub.s32 %v3543, %v3545
    %v3547 = vrot.slane %v3533, %v3546
    %v3548 = vcombine.low %v3540, %v3547
    %v3549 = vcombine.low %v2799, %v2813
    %v3550 = vcombine.low %v2815, %v2817
    %v3551 = vcombine.low %v2841, %v2855
    %v3553 = vunpack.c.l.s4 1966171168
    %v3554 = vunpack.c.0.s8 %v3553
    %v3555 = vlaneseq
    %v3556 = vshrl.u32 %v3555, 7
    %v3557 = vsub.s32 %v3554, %v3556
    %v3558 = vrot.slane %v3549, %v3557
    %v3560 = vunpack.c.l.s4 1966171168
    %v3561 = vunpack.c.0.s8 %v3560
    %v3562 = vlaneseq
    %v3563 = vshrl.u32 %v3562, 7
    %v3564 = vsub.s32 %v3561, %v3563
    %v3565 = vrot.slane %v3550, %v3564
    %v3567 = vunpack.c.l.s4 1966171168
    %v3568 = vunpack.c.0.s8 %v3567
    %v3569 = vlaneseq
    %v3570 = vshrl.u32 %v3569, 7
    %v3571 = vsub.s32 %v3568, %v3570
    %v3572 = vrot.slane %v3551, %v3571
    %v3574 = vunpack.c.l.s4 1966171168
    %v3575 = vunpack.c.0.s8 %v3574
    %v3576 = vlaneseq
    %v3577 = vshrl.u32 %v3576, 7
    %v3578 = vsub.s32 %v3575, %v3577
    %v3579 = vrot.slane %v2863, %v3578
    %v3580 = vcombine.low %v3558, %v3565
    %v3581 = vcombine.low %v3572, %v3579
    %v3583 = vunpack.c.l.s4 1966171168
    %v3584 = vunpack.c.0.s8 %v3583
    %v3585 = vlaneseq
    %v3586 = vshrl.u32 %v3585, 7
    %v3587 = vsub.s32 %v3584, %v3586
    %v3588 = vrot.slane %v3580, %v3587
    %v3590 = vunpack.c.l.s4 1966171168
    %v3591 = vunpack.c.0.s8 %v3590
    %v3592 = vlaneseq
    %v3593 = vshrl.u32 %v3592, 7
    %v3594 = vsub.s32 %v3591, %v3593
    %v3595 = vrot.slane %v3581, %v3594
    %v3596 = vcombine.low %v3588, %v3595
    %v3597 = vcombine.low %v2865, %v2848
    %v3598 = vcombine.low %v2862, %v2864
    %v3599 = vcombine.low %v2866, %v2890
    %v3600 = vcombine.low %v2904, %v2912
    %v3602 = vunpack.c.l.s4 1966171168
    %v3603 = vunpack.c.0.s8 %v3602
    %v3604 = vlaneseq
    %v3605 = vshrl.u32 %v3604, 7
    %v3606 = vsub.s32 %v3603, %v3605
    %v3607 = vrot.slane %v3597, %v3606
    %v3609 = vunpack.c.l.s4 1966171168
    %v3610 = vunpack.c.0.s8 %v3609
    %v3611 = vlaneseq
    %v3612 = vshrl.u32 %v3611, 7
    %v3613 = vsub.s32 %v3610, %v3612
    %v3614 = vrot.slane %v3598, %v3613
    %v3616 = vunpack.c.l.s4 1966171168
    %v3617 = vunpack.c.0.s8 %v3616
    %v3618 = vlaneseq
    %v3619 = vshrl.u32 %v3618, 7
    %v3620 = vsub.s32 %v3617, %v3619
    %v3621 = vrot.slane %v3599, %v3620
    %v3623 = vunpack.c.l.s4 1966171168
    %v3624 = vunpack.c.0.s8 %v3623
    %v3625 = vlaneseq
    %v3626 = vshrl.u32 %v3625, 7
    %v3627 = vsub.s32 %v3624, %v3626
    %v3628 = vrot.slane %v3600, %v3627
    %v3629 = vcombine.low %v3607, %v3614
    %v3630 = vcombine.low %v3621, %v3628
    %v3632 = vunpack.c.l.s4 1966171168
    %v3633 = vunpack.c.0.s8 %v3632
    %v3634 = vlaneseq
    %v3635 = vshrl.u32 %v3634, 7
    %v3636 = vsub.s32 %v3633, %v3635
    %v3637 = vrot.slane %v3629, %v3636
    %v3639 = vunpack.c.l.s4 1966171168
    %v3640 = vunpack.c.0.s8 %v3639
    %v3641 = vlaneseq
    %v3642 = vshrl.u32 %v3641, 7
    %v3643 = vsub.s32 %v3640, %v3642
    %v3644 = vrot.slane %v3630, %v3643
    %v3645 = vcombine.low %v3637, %v3644
    %v3646 = vcombine.low %v2914, %v2897
    %v3647 = vcombine.low %v2911, %v2913
    %v3648 = vcombine.low %v2915, %v2939
    %v3650 = vunpack.c.l.s4 1966171168
    %v3651 = vunpack.c.0.s8 %v3650
    %v3652 = vlaneseq
    %v3653 = vshrl.u32 %v3652, 7
    %v3654 = vsub.s32 %v3651, %v3653
    %v3655 = vrot.slane %v3646, %v3654
    %v3657 = vunpack.c.l.s4 1966171168
    %v3658 = vunpack.c.0.s8 %v3657
    %v3659 = vlaneseq
    %v3660 = vshrl.u32 %v3659, 7
    %v3661 = vsub.s32 %v3658, %v3660
    %v3662 = vrot.slane %v3647, %v3661
    %v3664 = vunpack.c.l.s4 1966171168
    %v3665 = vunpack.c.0.s8 %v3664
    %v3666 = vlaneseq
    %v3667 = vshrl.u32 %v3666, 7
    %v3668 = vsub.s32 %v3665, %v3667
    %v3669 = vrot.slane %v3648, %v3668
    %v3671 = vunpack.c.l.s4 1966171168
    %v3672 = vunpack.c.0.s8 %v3671
    %v3673 = vlaneseq
    %v3674 = vshrl.u32 %v3673, 7
    %v3675 = vsub.s32 %v3672, %v3674
    %v3676 = vrot.slane %v2953, %v3675
    %v3677 = vcombine.low %v3655, %v3662
    %v3678 = vcombine.low %v3669, %v3676
    %v3680 = vunpack.c.l.s4 1966171168
    %v3681 = vunpack.c.0.s8 %v3680
    %v3682 = vlaneseq
    %v3683 = vshrl.u32 %v3682, 7
    %v3684 = vsub.s32 %v3681, %v3683
    %v3685 = vrot.slane %v3677, %v3684
    %v3687 = vunpack.c.l.s4 1966171168
    %v3688 = vunpack.c.0.s8 %v3687
    %v3689 = vlaneseq
    %v3690 = vshrl.u32 %v3689, 7
    %v3691 = vsub.s32 %v3688, %v3690
    %v3692 = vrot.slane %v3678, %v3691
    %v3693 = vcombine.low %v3685, %v3692
    %v3694 = vcombine.low %v2961, %v2963
    %v3695 = vcombine.low %v2946, %v2960
    %v3696 = vcombine.low %v2962, %v2964
    %v3697 = vcombine.low %v2988, %v3002
    %v3699 = vunpack.c.l.s4 1966171168
    %v3700 = vunpack.c.0.s8 %v3699
    %v3701 = vlaneseq
    %v3702 = vshrl.u32 %v3701, 7
    %v3703 = vsub.s32 %v3700, %v3702
    %v3704 = vrot.slane %v3694, %v3703
    %v3706 = vunpack.c.l.s4 1966171168
    %v3707 = vunpack.c.0.s8 %v3706
    %v3708 = vlaneseq
    %v3709 = vshrl.u32 %v3708, 7
    %v3710 = vsub.s32 %v3707, %v3709
    %v3711 = vrot.slane %v3695, %v3710
    %v3713 = vunpack.c.l.s4 1966171168
    %v3714 = vunpack.c.0.s8 %v3713
    %v3715 = vlaneseq
    %v3716 = vshrl.u32 %v3715, 7
    %v3717 = vsub.s32 %v3714, %v3716
    %v3718 = vrot.slane %v3696, %v3717
    %v3720 = vunpack.c.l.s4 1966171168
    %v3721 = vunpack.c.0.s8 %v3720
    %v3722 = vlaneseq
    %v3723 = vshrl.u32 %v3722, 7
    %v3724 = vsub.s32 %v3721, %v3723
    %v3725 = vrot.slane %v3697, %v3724
    %v3726 = vcombine.low %v3704, %v3711
    %v3727 = vcombine.low %v3718, %v3725
    %v3729 = vunpack.c.l.s4 1966171168
    %v3730 = vunpack.c.0.s8 %v3729
    %v3731 = vlaneseq
    %v3732 = vshrl.u32 %v3731, 7
    %v3733 = vsub.s32 %v3730, %v3732
    %v3734 = vrot.slane %v3726, %v3733
    %v3736 = vunpack.c.l.s4 1966171168
    %v3737 = vunpack.c.0.s8 %v3736
    %v3738 = vlaneseq
    %v3739 = vshrl.u32 %v3738, 7
    %v3740 = vsub.s32 %v3737, %v3739
    %v3741 = vrot.slane %v3727, %v3740
    %v3742 = vcombine.low %v3734, %v3741
    %v3743 = vcombine.low %v3010, %v3012
    %v3744 = vcombine.low %v2995, %v3009
    %v3745 = vcombine.low %v3011, %v3013
    %v3747 = vunpack.c.l.s4 1966171168
    %v3748 = vunpack.c.0.s8 %v3747
    %v3749 = vlaneseq
    %v3750 = vshrl.u32 %v3749, 7
    %v3751 = vsub.s32 %v3748, %v3750
    %v3752 = vrot.slane %v3743, %v3751
    %v3754 = vunpack.c.l.s4 1966171168
    %v3755 = vunpack.c.0.s8 %v3754
    %v3756 = vlaneseq
    %v3757 = vshrl.u32 %v3756, 7
    %v3758 = vsub.s32 %v3755, %v3757
    %v3759 = vrot.slane %v3744, %v3758
    %v3761 = vunpack.c.l.s4 1966171168
    %v3762 = vunpack.c.0.s8 %v3761
    %v3763 = vlaneseq
    %v3764 = vshrl.u32 %v3763, 7
    %v3765 = vsub.s32 %v3762, %v3764
    %v3766 = vrot.slane %v3745, %v3765
    %v3768 = vunpack.c.l.s4 1966171168
    %v3769 = vunpack.c.0.s8 %v3768
    %v3770 = vlaneseq
    %v3771 = vshrl.u32 %v3770, 7
    %v3772 = vsub.s32 %v3769, %v3771
    %v3773 = vrot.slane %v3037, %v3772
    %v3774 = vcombine.low %v3752, %v3759
    %v3775 = vcombine.low %v3766, %v3773
    %v3777 = vunpack.c.l.s4 1966171168
    %v3778 = vunpack.c.0.s8 %v3777
    %v3779 = vlaneseq
    %v3780 = vshrl.u32 %v3779, 7
    %v3781 = vsub.s32 %v3778, %v3780
    %v3782 = vrot.slane %v3774, %v3781
    %v3784 = vunpack.c.l.s4 1966171168
    %v3785 = vunpack.c.0.s8 %v3784
    %v3786 = vlaneseq
    %v3787 = vshrl.u32 %v3786, 7
    %v3788 = vsub.s32 %v3785, %v3787
    %v3789 = vrot.slane %v3775, %v3788
    %v3790 = vcombine.low %v3782, %v3789
    %v3791 = vcombine.low %v3051, %v3059
    %v3792 = vcombine.low %v3061, %v3044
    %v3793 = vcombine.low %v3058, %v3060
    %v3794 = vcombine.low %v3062, %v3086
    %v3796 = vunpack.c.l.s4 1966171168
    %v3797 = vunpack.c.0.s8 %v3796
    %v3798 = vlaneseq
    %v3799 = vshrl.u32 %v3798, 7
    %v3800 = vsub.s32 %v3797, %v3799
    %v3801 = vrot.slane %v3791, %v3800
    %v3803 = vunpack.c.l.s4 1966171168
    %v3804 = vunpack.c.0.s8 %v3803
    %v3805 = vlaneseq
    %v3806 = vshrl.u32 %v3805, 7
    %v3807 = vsub.s32 %v3804, %v3806
    %v3808 = vrot.slane %v3792, %v3807
    %v3810 = vunpack.c.l.s4 1966171168
    %v3811 = vunpack.c.0.s8 %v3810
    %v3812 = vlaneseq
    %v3813 = vshrl.u32 %v3812, 7
    %v3814 = vsub.s32 %v3811, %v3813
    %v3815 = vrot.slane %v3793, %v3814
    %v3817 = vunpack.c.l.s4 1966171168
    %v3818 = vunpack.c.0.s8 %v3817
    %v3819 = vlaneseq
    %v3820 = vshrl.u32 %v3819, 7
    %v3821 = vsub.s32 %v3818, %v3820
    %v3822 = vrot.slane %v3794, %v3821
    %v3823 = vcombine.low %v3801, %v3808
    %v3824 = vcombine.low %v3815, %v3822
    %v3826 = vunpack.c.l.s4 1966171168
    %v3827 = vunpack.c.0.s8 %v3826
    %v3828 = vlaneseq
    %v3829 = vshrl.u32 %v3828, 7
    %v3830 = vsub.s32 %v3827, %v3829
    %v3831 = vrot.slane %v3823, %v3830
    %v3833 = vunpack.c.l.s4 1966171168
    %v3834 = vunpack.c.0.s8 %v3833
    %v3835 = vlaneseq
    %v3836 = vshrl.u32 %v3835, 7
    %v3837 = vsub.s32 %v3834, %v3836
    %v3838 = vrot.slane %v3824, %v3837
    %v3839 = vcombine.low %v3831, %v3838
    %v3840 = vcombine.low %v3100, %v3108
    %v3841 = vcombine.low %v3110, %v3093
    %v3842 = vcombine.low %v3107, %v3109
    %v3844 = vunpack.c.l.s4 1966171168
    %v3845 = vunpack.c.0.s8 %v3844
    %v3846 = vlaneseq
    %v3847 = vshrl.u32 %v3846, 7
    %v3848 = vsub.s32 %v3845, %v3847
    %v3849 = vrot.slane %v3840, %v3848
    %v3851 = vunpack.c.l.s4 1966171168
    %v3852 = vunpack.c.0.s8 %v3851
    %v3853 = vlaneseq
    %v3854 = vshrl.u32 %v3853, 7
    %v3855 = vsub.s32 %v3852, %v3854
    %v3856 = vrot.slane %v3841, %v3855
    %v3858 = vunpack.c.l.s4 1966171168
    %v3859 = vunpack.c.0.s8 %v3858
    %v3860 = vlaneseq
    %v3861 = vshrl.u32 %v3860, 7
    %v3862 = vsub.s32 %v3859, %v3861
    %v3863 = vrot.slane %v3842, %v3862
    %v3865 = vunpack.c.l.s4 1966171168
    %v3866 = vunpack.c.0.s8 %v3865
    %v3867 = vlaneseq
    %v3868 = vshrl.u32 %v3867, 7
    %v3869 = vsub.s32 %v3866, %v3868
    %v3870 = vrot.slane %v3111, %v3869
    %v3871 = vcombine.low %v3849, %v3856
    %v3872 = vcombine.low %v3863, %v3870
    %v3874 = vunpack.c.l.s4 1966171168
    %v3875 = vunpack.c.0.s8 %v3874
    %v3876 = vlaneseq
    %v3877 = vshrl.u32 %v3876, 7
    %v3878 = vsub.s32 %v3875, %v3877
    %v3879 = vrot.slane %v3871, %v3878
    %v3881 = vunpack.c.l.s4 1966171168
    %v3882 = vunpack.c.0.s8 %v3881
    %v3883 = vlaneseq
    %v3884 = vshrl.u32 %v3883, 7
    %v3885 = vsub.s32 %v3882, %v3884
    %v3886 = vrot.slane %v3872, %v3885
    %v3887 = vcombine.low %v3879, %v3886
    %vm3904 = vcmask 195584
    %v3905 = vsel %vm3904, %v3160, -inf
    %vm3906 = vcmask 194560
    %v3907 = vsel %vm3906, %v3208, -inf
    %v3908 = vmax.f32 %v3905, %v3907
    %v3909 = vrot.slane %v3908, 4
    %v3910 = vmax.f32 %v3908, %v3909
    %v3911 = vrot.slane %v3910, 2
    %v3912 = vmax.f32 %v3910, %v3911
    %v3913 = vrot.slane %v3912, 1
    %v3914 = vmax.f32 %v3912, %v3913
    %v3915 = vsel %vm3904, %v3257, -inf
    %v3916 = vsel %vm3906, %v3305, -inf
    %v3917 = vmax.f32 %v3915, %v3916
    %v3918 = vrot.slane %v3917, 4
    %v3919 = vmax.f32 %v3917, %v3918
    %v3920 = vrot.slane %v3919, 2
    %v3921 = vmax.f32 %v3919, %v3920
    %v3922 = vrot.slane %v3921, 1
    %v3923 = vmax.f32 %v3921, %v3922
    %v3924 = vsel %vm3904, %v3354, -inf
    %v3925 = vsel %vm3906, %v3402, -inf
    %v3926 = vmax.f32 %v3924, %v3925
    %v3927 = vrot.slane %v3926, 4
    %v3928 = vmax.f32 %v3926, %v3927
    %v3929 = vrot.slane %v3928, 2
    %v3930 = vmax.f32 %v3928, %v3929
    %v3931 = vrot.slane %v3930, 1
    %v3932 = vmax.f32 %v3930, %v3931
    %v3933 = vsel %vm3904, %v3451, -inf
    %v3934 = vsel %vm3906, %v3499, -inf
    %v3935 = vmax.f32 %v3933, %v3934
    %v3936 = vrot.slane %v3935, 4
    %v3937 = vmax.f32 %v3935, %v3936
    %v3938 = vrot.slane %v3937, 2
    %v3939 = vmax.f32 %v3937, %v3938
    %v3940 = vrot.slane %v3939, 1
    %v3941 = vmax.f32 %v3939, %v3940
    %v3942 = vsel %vm3904, %v3548, -inf
    %v3943 = vsel %vm3906, %v3596, -inf
    %v3944 = vmax.f32 %v3942, %v3943
    %v3945 = vrot.slane %v3944, 4
    %v3946 = vmax.f32 %v3944, %v3945
    %v3947 = vrot.slane %v3946, 2
    %v3948 = vmax.f32 %v3946, %v3947
    %v3949 = vrot.slane %v3948, 1
    %v3950 = vmax.f32 %v3948, %v3949
    %v3951 = vsel %vm3904, %v3645, -inf
    %v3952 = vsel %vm3906, %v3693, -inf
    %v3953 = vmax.f32 %v3951, %v3952
    %v3954 = vrot.slane %v3953, 4
    %v3955 = vmax.f32 %v3953, %v3954
    %v3956 = vrot.slane %v3955, 2
    %v3957 = vmax.f32 %v3955, %v3956
    %v3958 = vrot.slane %v3957, 1
    %v3959 = vmax.f32 %v3957, %v3958
    %v3960 = vsel %vm3904, %v3742, -inf
    %v3961 = vsel %vm3906, %v3790, -inf
    %v3962 = vmax.f32 %v3960, %v3961
    %v3963 = vrot.slane %v3962, 4
    %v3964 = vmax.f32 %v3962, %v3963
    %v3965 = vrot.slane %v3964, 2
    %v3966 = vmax.f32 %v3964, %v3965
    %v3967 = vrot.slane %v3966, 1
    %v3968 = vmax.f32 %v3966, %v3967
    %v3969 = vsel %vm3904, %v3839, -inf
    %v3970 = vsel %vm3906, %v3887, -inf
    %v3971 = vmax.f32 %v3969, %v3970
    %v3972 = vrot.slane %v3971, 4
    %v3973 = vmax.f32 %v3971, %v3972
    %v3974 = vrot.slane %v3973, 2
    %v3975 = vmax.f32 %v3973, %v3974
    %v3976 = vrot.slane %v3975, 1
    %v3977 = vmax.f32 %v3975, %v3976
    %v3978 = vld [vmem:[%s2] sm:$0x1]
    %v3980 = vlaneseq
    %v3981 = vshrl.u32 %v3980, 7
    %v3982 = vsub.s32 0, %v3981
    %v3983 = vrot.slane %v3978, %v3982
    %v3985 = vadd.f32 %v3914, %v3983
    %v3986 = vadd.f32 %v3923, %v3983
    %v3987 = vadd.f32 %v3932, %v3983
    %v3988 = vadd.f32 %v3941, %v3983
    %v3989 = vadd.f32 %v3950, %v3983
    %v3990 = vadd.f32 %v3959, %v3983
    %v3991 = vadd.f32 %v3968, %v3983
    %v3992 = vadd.f32 %v3977, %v3983
    %v3993 = vmax.f32 %v3985, 0.0
    %v3994 = vmax.f32 %v3986, 0.0
    %v3995 = vmax.f32 %v3987, 0.0
    %v3996 = vmax.f32 %v3988, 0.0
    %v3997 = vmax.f32 %v3989, 0.0
    %v3998 = vmax.f32 %v3990, 0.0
    %v3999 = vmax.f32 %v3991, 0.0
    %v4000 = vmax.f32 %v3992, 0.0
    %v4001 = vld [vmem:[%s4] sm:$0xff]
    %v4002 = vld [vmem:[%s4 + $0x8] sm:$0xff]
    %v4003 = vld [vmem:[%s4 + $0x10] sm:$0xff]
    %v4004 = vld [vmem:[%s5] sm:$0x1]
    %v4006 = vlaneseq
    %v4007 = vshrl.u32 %v4006, 7
    %v4008 = vsub.s32 0, %v4007
    %v4009 = vrot.slane %v4004, %v4008
    %v4019 = vrot.slane %v3994, 7
    %vm4020 = vcmask 1041409
    %v4021 = vsel %vm4020, %v4019, %v3993
    %v4022 = vrot.slane %v3995, 6
    %vm4023 = vcmask 1042434
    %v4024 = vsel %vm4023, %v4022, %v4021
    %v4025 = vrot.slane %v3996, 5
    %vm4026 = vcmask 1043459
    %v4027 = vsel %vm4026, %v4025, %v4024
    %v4028 = vrot.slane %v3997, 4
    %vm4029 = vcmask 1044484
    %v4030 = vsel %vm4029, %v4028, %v4027
    %v4031 = vrot.slane %v3998, 3
    %vm4032 = vcmask 1045509
    %v4033 = vsel %vm4032, %v4031, %v4030
    %v4034 = vrot.slane %v3999, 2
    %vm4035 = vcmask 1046534
    %v4036 = vsel %vm4035, %v4034, %v4033
    %v4037 = vrot.slane %v4000, 1
    %vm4038 = vcmask 1047559
    %v4039 = vsel %vm4038, %v4037, %v4036
    %v4040 = vsel %vm3904, %v4039, 0
    %4042 = vmatprep.subr.mxu0 0.0
    %4043 = vmatpush1.msra.mxu0 0.0
    %4044 = vmatprep.subr.mxu0 0.0
    %4045 = vmatpush1.msra.mxu0 0.0
    %4046 = vmatprep.subr.mxu0 0.0
    %4047 = vmatpush1.msra.mxu0 0.0
    %4048 = vmatprep.subr.mxu0 0.0
    %4049 = vmatpush1.msra.mxu0 0.0
    %4050 = vmatprep.subr.mxu0 0.0
    %4051 = vmatpush1.msra.mxu0 0.0
    %4052 = vmatprep.subr.mxu0 0.0
    %4053 = vmatpush1.msra.mxu0 0.0
    %4054 = vmatprep.subr.mxu0 0.0
    %4055 = vmatpush1.msra.mxu0 0.0
    %4056 = vmatprep.subr.mxu0 0.0
    %4057 = vmatpush1.msra.mxu0 0.0
    %4058 = vmatprep.subr.mxu0 0.0
    %4059 = vmatpush1.msra.mxu0 0.0
    %4060 = vmatprep.subr.mxu0 0.0
    %4061 = vmatpush1.msra.mxu0 0.0
    %4062 = vmatprep.subr.mxu0 0.0
    %4063 = vmatpush1.msra.mxu0 0.0
    %4064 = vmatprep.subr.mxu0 0.0
    %4065 = vmatpush1.msra.mxu0 0.0
    %4066 = vmatprep.subr.mxu0 0.0
    %4067 = vmatpush1.msra.mxu0 0.0
    %4068 = vmatprep.subr.mxu0 0.0
    %4069 = vmatpush1.msra.mxu0 %v4003
    %4070 = vmatprep.subr.mxu0 0.0
    %4071 = vmatpush1.msra.mxu0 %v4002
    %4072 = vmatprep.subr.mxu0 0.0
    %4073 = vmatpush1.msra.mxu0 %v4001
    %4074 = vmatprep.subr.mxu0 0.0
    %4075 = vmatpush2.msra.mxu0 0.0
    %4076 = vmatprep.subr.mxu0 0.0
    %4077 = vmatpush2.msra.mxu0 0.0
    %4078 = vmatprep.subr.mxu0 0.0
    %4079 = vmatpush2.msra.mxu0 0.0
    %4080 = vmatprep.subr.mxu0 0.0
    %4081 = vmatpush2.msra.mxu0 0.0
    %4082 = vmatprep.subr.mxu0 0.0
    %4083 = vmatpush2.msra.mxu0 0.0
    %4084 = vmatprep.subr.mxu0 0.0
    %4085 = vmatpush2.msra.mxu0 0.0
    %4086 = vmatprep.subr.mxu0 0.0
    %4087 = vmatpush2.msra.mxu0 0.0
    %4088 = vmatprep.subr.mxu0 0.0
    %4089 = vmatpush2.msra.mxu0 0.0
    %4090 = vmatprep.subr.mxu0 0.0
    %4091 = vmatpush2.msra.mxu0 0.0
    %4092 = vmatprep.subr.mxu0 0.0
    %4093 = vmatpush2.msra.mxu0 0.0
    %4094 = vmatprep.subr.mxu0 0.0
    %4095 = vmatpush2.msra.mxu0 0.0
    %4096 = vmatprep.subr.mxu0 0.0
    %4097 = vmatpush2.msra.mxu0 0.0
    %4098 = vmatprep.subr.mxu0 0.0
    %4099 = vmatpush2.msra.mxu0 0.0
    %4100 = vmatprep.subr.mxu0 0.0
    %4101 = vmatpush2.msra.mxu0 0.0
    %4102 = vmatprep.subr.mxu0 0.0
    %4103 = vmatpush2.msra.mxu0 0.0
    %4104 = vmatprep.subr.mxu0 0.0
    %4105 = vmatpush2.msra.mxu0 0.0
    %4106 = vmatprep.mubr.f32.mxu0 0.0
    %4107 = vmatmul.mubr.f32.gmra.mxu0 %v4040
    %v4108 = vpop.f32.mrf.mxu0
    %v4109 = vadd.f32 %v4009, %v4108
    %v4110 = vpop.f32.mrf.mxu0
    %4111 = vdwg.mxu0
    %4112 = vst [vmem:[#allocation2] sm:$0xff] %v4109
    // Predicated region
    $region26: #{tpu_custom_call.1} parent=1 // pred_check
      _
    $region27: #{tpu_custom_call.1} parent=1 // pred_check_branch
      %4114 = sbr.rel (0) target = $region29
    $region28: #{tpu_custom_call.1} parent=1 // pred_region
      %s4116 = ssub.s32 128, 128
      %4117 = vsyncadd [#allocation3], %s4116
      %s4119 = sshll.u32 [#allocation2], 4
      %s4120 = int_to_ptr.vmem [resolvable:$true] %s4119
      %4122 = dma.vmem_to_hbm [thread:$0]  %s4120, 128, %s6, [#allocation3]
    $region29: #{tpu_custom_call.1} parent=1 // pred_fallthru
      _
    // Predicated region
    $region30: #{tpu_custom_call.1} parent=1 // pred_check
      _
    $region31: #{tpu_custom_call.1} parent=1 // pred_check_branch
      %4124 = sbr.rel (0) target = $region33
    $region32: #{tpu_custom_call.1} parent=1 // pred_region
      %4125 = dma.done [#allocation3], 128
    $region33: #{tpu_custom_call.1} parent=1 // pred_fallthru
      _
    %4126 = vsyncpa [#allocation3], 1

</llo_original>
